<compile_context>
chip_gen: v7x
topology: tpu7x:2x2x1
jax: 0.10.0
libtpu: 0.0.40
codegen_flags: <defaults>
</compile_context>

<pallas_src>
import jax
import jax.numpy as jnp
from jax import lax
from jax.experimental import pallas as pl
from jax.experimental.pallas import tpu as pltpu

PAD_token = 0

_LANE = 128      # vreg lane width
_SUBLANE = 8     # vreg sublane width (f32)


def _round_up(x, m):
    return (x + m - 1) // m * m


# ---------------------------------------------------------------------------
# Pallas GRU kernel: single invocation (no grid); the time recurrence is an
# unrolled in-kernel fori_loop.  Gate order follows PyTorch: [r, z, n].
# Weights are gate-concatenated and pre-transposed so that x @ W -> (B, 3*Hp).
# ---------------------------------------------------------------------------
def _gru_kernel(x_ref, wih_ref, whh_ref, bih_ref, bhh_ref, out_ref, hn_ref):
    L, Bp, Hp = x_ref.shape

    # Hoist the constant weights / biases out of the time loop.
    w_ih = wih_ref[...]          # (Hp, 3*Hp)
    w_hh = whh_ref[...]          # (Hp, 3*Hp)
    b_ih = bih_ref[...]          # (1, 3*Hp)
    b_hh = bhh_ref[...]          # (1, 3*Hp)

    def step(t, h):
        x = x_ref[t]                                               # (Bp, Hp)
        gi = jnp.dot(x, w_ih, preferred_element_type=jnp.float32) + b_ih
        gh = jnp.dot(h, w_hh, preferred_element_type=jnp.float32) + b_hh
        r = jax.nn.sigmoid(gi[:, 0 * Hp:1 * Hp] + gh[:, 0 * Hp:1 * Hp])
        z = jax.nn.sigmoid(gi[:, 1 * Hp:2 * Hp] + gh[:, 1 * Hp:2 * Hp])
        n = jnp.tanh(gi[:, 2 * Hp:3 * Hp] + r * gh[:, 2 * Hp:3 * Hp])
        h_new = (1.0 - z) * n + z * h
        out_ref[t] = h_new.astype(out_ref.dtype)                   # per-step output
        return h_new

    h0 = jnp.zeros((Bp, Hp), jnp.float32)
    h_final = lax.fori_loop(0, L, step, h0, unroll=True)
    hn_ref[0] = h_final.astype(hn_ref.dtype)                       # written once


def gru_pallas(embedded, w_ih, w_hh, b_ih, b_hh):
    """embedded: (L, B, H) f32.  w_*: (3, H, H) gate-major, pre-transposed for
    x @ W.  b_*: (3, H).  Returns (output (L, B, H), hidden (1, B, H))."""
    L, B, H = embedded.shape
    Bp = _round_up(max(B, _SUBLANE), _SUBLANE)
    Hp = _round_up(H, _LANE)

    # Zero-pad + gate-concatenate (plain-JAX glue, one-time):
    #   (3, H, H) -> (Hp, 3*Hp);   (3, H) -> (1, 3*Hp).
    def pad_w(w):
        wp = jnp.zeros((3, Hp, Hp), w.dtype).at[:, :H, :H].set(w)
        return jnp.concatenate([wp[0], wp[1], wp[2]], axis=1)

    def pad_b(b):
        return jnp.zeros((3, Hp), b.dtype).at[:, :H].set(b).reshape(1, 3 * Hp)

    x_p = jnp.zeros((L, Bp, Hp), jnp.float32).at[:, :B, :H].set(embedded)

    vmem = pl.BlockSpec(memory_space=pltpu.MemorySpace.VMEM)
    out_p, hn_p = pl.pallas_call(
        _gru_kernel,
        out_shape=(jax.ShapeDtypeStruct((L, Bp, Hp), jnp.float32),
                   jax.ShapeDtypeStruct((1, Bp, Hp), jnp.float32)),
        in_specs=[vmem, vmem, vmem, vmem, vmem],
        out_specs=(vmem, vmem),
    )(x_p, pad_w(w_ih), pad_w(w_hh), pad_b(b_ih), pad_b(b_hh))

    return out_p[:, :B, :H], hn_p[:, :B, :H]


# ---------------------------------------------------------------------------
# EncoderRNN forward (glue in plain JAX + Pallas GRU core)
# ---------------------------------------------------------------------------
def encoder_rnn_forward(input_data, params):
    """input_data: (B, L) int32 token ids. Returns (output, hidden)."""
    B, L = input_data.shape
    emb_table = params["embedding"]                     # (V, H)
    H = emb_table.shape[1]

    embedded = jnp.take(emb_table, input_data, axis=0)  # (B, L, H)
    # PyTorch: .view(max_length, batch_size, -1) -> raw memory reinterpret, NOT transpose.
    embedded = jnp.reshape(embedded, (L, B, H))
    # Dropout: eval mode -> identity.

    output, hidden = gru_pallas(
        embedded, params["w_ih"], params["w_hh"], params["b_ih"], params["b_hh"])
    return output, hidden


# ---------------------------------------------------------------------------
# Pure-JAX reference for correctness check
# ---------------------------------------------------------------------------
def gru_ref(embedded, w_ih, w_hh, b_ih, b_hh):
    L, B, H = embedded.shape

    def step(h, x):
        r = jax.nn.sigmoid(x @ w_ih[0] + b_ih[0] + h @ w_hh[0] + b_hh[0])
        z = jax.nn.sigmoid(x @ w_ih[1] + b_ih[1] + h @ w_hh[1] + b_hh[1])
        n = jnp.tanh(x @ w_ih[2] + b_ih[2] + r * (h @ w_hh[2] + b_hh[2]))
        h_new = (1.0 - z) * n + z * h
        return h_new, h_new

    h0 = jnp.zeros((B, H), jnp.float32)
    hT, ys = lax.scan(step, h0, embedded)
    return ys, hT[None]


# ---------------------------------------------------------------------------
if __name__ == "__main__":
    vocab_size, hidden_size = 20, 32
    batch, seq_len = 2, 8

    key = jax.random.PRNGKey(0)
    k_emb, k_wih, k_whh, k_bih, k_bhh, k_in = jax.random.split(key, 6)

    bound = 1.0 / jnp.sqrt(hidden_size)
    emb = jax.random.normal(k_emb, (vocab_size, hidden_size), jnp.float32)
    emb = emb.at[PAD_token].set(0.0)                      # padding_idx row zeroed
    params = {
        "embedding": emb,
        # (3, H, H): gate-major [r, z, n], already transposed for x @ W
        "w_ih": jax.random.uniform(k_wih, (3, hidden_size, hidden_size),
                                   jnp.float32, -bound, bound),
        "w_hh": jax.random.uniform(k_whh, (3, hidden_size, hidden_size),
                                   jnp.float32, -bound, bound),
        "b_ih": jax.random.uniform(k_bih, (3, hidden_size),
                                   jnp.float32, -bound, bound),
        "b_hh": jax.random.uniform(k_bhh, (3, hidden_size),
                                   jnp.float32, -bound, bound),
    }
    # NOTE: self.fc / self.dropout params exist in __init__ but are unused in forward.

    input_data = jax.random.randint(k_in, (batch, seq_len), 0, vocab_size,
                                    dtype=jnp.int32)

    output, hidden = encoder_rnn_forward(input_data, params)
    jax.block_until_ready((output, hidden))

    # reference check
    embedded = jnp.reshape(jnp.take(params["embedding"], input_data, axis=0),
                           (seq_len, batch, hidden_size))
    out_ref_, hid_ref_ = gru_ref(embedded, params["w_ih"], params["w_hh"],
                                 params["b_ih"], params["b_hh"])
    assert output.shape == (seq_len, batch, hidden_size)
    assert hidden.shape == (1, batch, hidden_size)
    assert jnp.allclose(output, out_ref_, atol=1e-5, rtol=1e-5)
    assert jnp.allclose(hidden, hid_ref_, atol=1e-5, rtol=1e-5)

    print("KERNEL_OK")
</pallas_src>

<mosaic_0001>
module attributes {stable_mosaic.version = 11 : i64} {
  func.func @_gru_kernel(%arg0: memref<8x8x128xf32, #tpu.memory_space<vmem>>, %arg1: memref<128x384xf32, #tpu.memory_space<vmem>>, %arg2: memref<128x384xf32, #tpu.memory_space<vmem>>, %arg3: memref<1x384xf32, #tpu.memory_space<vmem>>, %arg4: memref<1x384xf32, #tpu.memory_space<vmem>>, %arg5: memref<8x8x128xf32, #tpu.memory_space<vmem>>, %arg6: memref<1x8x128xf32, #tpu.memory_space<vmem>>) attributes {dimension_semantics = [], scalar_prefetch = 0 : i64, scratch_operands = 0 : i64, tpu.core_type = #tpu.core_type<tc>} {
    %c0 = arith.constant 0 : index
    %c0_0 = arith.constant 0 : index
    %0 = vector.load %arg1[%c0, %c0_0] : memref<128x384xf32, #tpu.memory_space<vmem>>, vector<128x384xf32>
    %c0_1 = arith.constant 0 : index
    %c0_2 = arith.constant 0 : index
    %1 = vector.load %arg2[%c0_1, %c0_2] : memref<128x384xf32, #tpu.memory_space<vmem>>, vector<128x384xf32>
    %c0_3 = arith.constant 0 : index
    %c0_4 = arith.constant 0 : index
    %2 = vector.load %arg3[%c0_3, %c0_4] : memref<1x384xf32, #tpu.memory_space<vmem>>, vector<1x384xf32>
    %c0_5 = arith.constant 0 : index
    %c0_6 = arith.constant 0 : index
    %3 = vector.load %arg4[%c0_5, %c0_6] : memref<1x384xf32, #tpu.memory_space<vmem>>, vector<1x384xf32>
    %cst = arith.constant 0.000000e+00 : f32
    %4 = vector.broadcast %cst : f32 to vector<8x128xf32>
    %c0_i32 = arith.constant 0 : i32
    %5 = arith.index_cast %c0_i32 : i32 to index
    %c0_7 = arith.constant 0 : index
    %c0_8 = arith.constant 0 : index
    %6 = vector.load %arg0[%5, %c0_7, %c0_8] : memref<8x8x128xf32, #tpu.memory_space<vmem>>, vector<1x8x128xf32>
    %7 = vector.shape_cast %6 : vector<1x8x128xf32> to vector<8x128xf32>
    %cst_9 = arith.constant dense<0.000000e+00> : vector<8x384xf32>
    %8 = tpu.matmul %7, %0, %cst_9 {dimension_numbers = #tpu.dot_dimension_numbers<[1], [0], [0], [1], [0, 0, 1, 1], [], []>} : vector<8x128xf32>, vector<128x384xf32>, vector<8x384xf32> -> vector<8x384xf32>
    %9 = vector.broadcast %2 : vector<1x384xf32> to vector<8x384xf32>
    %10 = arith.addf %8, %9 : vector<8x384xf32>
    %cst_10 = arith.constant dense<0.000000e+00> : vector<8x384xf32>
    %11 = tpu.matmul %4, %1, %cst_10 {dimension_numbers = #tpu.dot_dimension_numbers<[1], [0], [0], [1], [0, 0, 1, 1], [], []>} : vector<8x128xf32>, vector<128x384xf32>, vector<8x384xf32> -> vector<8x384xf32>
    %12 = vector.broadcast %3 : vector<1x384xf32> to vector<8x384xf32>
    %13 = arith.addf %11, %12 : vector<8x384xf32>
    %14 = vector.extract_strided_slice %10 {offsets = [0, 0], sizes = [8, 128], strides = [1, 1]} : vector<8x384xf32> to vector<8x128xf32>
    %15 = vector.extract_strided_slice %13 {offsets = [0, 0], sizes = [8, 128], strides = [1, 1]} : vector<8x384xf32> to vector<8x128xf32>
    %16 = arith.addf %14, %15 : vector<8x128xf32>
    %17 = arith.negf %16 : vector<8x128xf32>
    %18 = math.exp %17 : vector<8x128xf32>
    %cst_11 = arith.constant 1.000000e+00 : f32
    %19 = vector.broadcast %cst_11 : f32 to vector<8x128xf32>
    %20 = arith.addf %19, %18 : vector<8x128xf32>
    %21 = arith.divf %19, %20 : vector<8x128xf32>
    %22 = vector.extract_strided_slice %10 {offsets = [0, 128], sizes = [8, 128], strides = [1, 1]} : vector<8x384xf32> to vector<8x128xf32>
    %23 = vector.extract_strided_slice %13 {offsets = [0, 128], sizes = [8, 128], strides = [1, 1]} : vector<8x384xf32> to vector<8x128xf32>
    %24 = arith.addf %22, %23 : vector<8x128xf32>
    %25 = arith.negf %24 : vector<8x128xf32>
    %26 = math.exp %25 : vector<8x128xf32>
    %cst_12 = arith.constant 1.000000e+00 : f32
    %27 = vector.broadcast %cst_12 : f32 to vector<8x128xf32>
    %28 = arith.addf %27, %26 : vector<8x128xf32>
    %29 = arith.divf %27, %28 : vector<8x128xf32>
    %30 = vector.extract_strided_slice %10 {offsets = [0, 256], sizes = [8, 128], strides = [1, 1]} : vector<8x384xf32> to vector<8x128xf32>
    %31 = vector.extract_strided_slice %13 {offsets = [0, 256], sizes = [8, 128], strides = [1, 1]} : vector<8x384xf32> to vector<8x128xf32>
    %32 = arith.mulf %21, %31 : vector<8x128xf32>
    %33 = arith.addf %30, %32 : vector<8x128xf32>
    %34 = math.tanh %33 : vector<8x128xf32>
    %cst_13 = arith.constant 1.000000e+00 : f32
    %35 = vector.broadcast %cst_13 : f32 to vector<8x128xf32>
    %36 = arith.subf %35, %29 : vector<8x128xf32>
    %37 = arith.mulf %36, %34 : vector<8x128xf32>
    %38 = arith.mulf %29, %4 : vector<8x128xf32>
    %39 = arith.addf %37, %38 : vector<8x128xf32>
    %40 = arith.index_cast %c0_i32 : i32 to index
    %c0_14 = arith.constant 0 : index
    %c0_15 = arith.constant 0 : index
    %41 = vector.load %arg5[%40, %c0_14, %c0_15] : memref<8x8x128xf32, #tpu.memory_space<vmem>>, vector<1x8x128xf32>
    %42 = vector.shape_cast %41 : vector<1x8x128xf32> to vector<8x128xf32>
    %43 = vector.shape_cast %39 : vector<8x128xf32> to vector<1x8x128xf32>
    tpu.vector_store %arg5[%40, %c0_14, %c0_15], %43 {strides = array<i32>} : memref<8x8x128xf32, #tpu.memory_space<vmem>>, vector<1x8x128xf32>,
    %c1_i32 = arith.constant 1 : i32
    %44 = arith.index_cast %c1_i32 : i32 to index
    %c0_16 = arith.constant 0 : index
    %c0_17 = arith.constant 0 : index
    %45 = vector.load %arg0[%44, %c0_16, %c0_17] : memref<8x8x128xf32, #tpu.memory_space<vmem>>, vector<1x8x128xf32>
    %46 = vector.shape_cast %45 : vector<1x8x128xf32> to vector<8x128xf32>
    %cst_18 = arith.constant dense<0.000000e+00> : vector<8x384xf32>
    %47 = tpu.matmul %46, %0, %cst_18 {dimension_numbers = #tpu.dot_dimension_numbers<[1], [0], [0], [1], [0, 0, 1, 1], [], []>} : vector<8x128xf32>, vector<128x384xf32>, vector<8x384xf32> -> vector<8x384xf32>
    %48 = vector.broadcast %2 : vector<1x384xf32> to vector<8x384xf32>
    %49 = arith.addf %47, %48 : vector<8x384xf32>
    %cst_19 = arith.constant dense<0.000000e+00> : vector<8x384xf32>
    %50 = tpu.matmul %39, %1, %cst_19 {dimension_numbers = #tpu.dot_dimension_numbers<[1], [0], [0], [1], [0, 0, 1, 1], [], []>} : vector<8x128xf32>, vector<128x384xf32>, vector<8x384xf32> -> vector<8x384xf32>
    %51 = vector.broadcast %3 : vector<1x384xf32> to vector<8x384xf32>
    %52 = arith.addf %50, %51 : vector<8x384xf32>
    %53 = vector.extract_strided_slice %49 {offsets = [0, 0], sizes = [8, 128], strides = [1, 1]} : vector<8x384xf32> to vector<8x128xf32>
    %54 = vector.extract_strided_slice %52 {offsets = [0, 0], sizes = [8, 128], strides = [1, 1]} : vector<8x384xf32> to vector<8x128xf32>
    %55 = arith.addf %53, %54 : vector<8x128xf32>
    %56 = arith.negf %55 : vector<8x128xf32>
    %57 = math.exp %56 : vector<8x128xf32>
    %cst_20 = arith.constant 1.000000e+00 : f32
    %58 = vector.broadcast %cst_20 : f32 to vector<8x128xf32>
    %59 = arith.addf %58, %57 : vector<8x128xf32>
    %60 = arith.divf %58, %59 : vector<8x128xf32>
    %61 = vector.extract_strided_slice %49 {offsets = [0, 128], sizes = [8, 128], strides = [1, 1]} : vector<8x384xf32> to vector<8x128xf32>
    %62 = vector.extract_strided_slice %52 {offsets = [0, 128], sizes = [8, 128], strides = [1, 1]} : vector<8x384xf32> to vector<8x128xf32>
    %63 = arith.addf %61, %62 : vector<8x128xf32>
    %64 = arith.negf %63 : vector<8x128xf32>
    %65 = math.exp %64 : vector<8x128xf32>
    %cst_21 = arith.constant 1.000000e+00 : f32
    %66 = vector.broadcast %cst_21 : f32 to vector<8x128xf32>
    %67 = arith.addf %66, %65 : vector<8x128xf32>
    %68 = arith.divf %66, %67 : vector<8x128xf32>
    %69 = vector.extract_strided_slice %49 {offsets = [0, 256], sizes = [8, 128], strides = [1, 1]} : vector<8x384xf32> to vector<8x128xf32>
    %70 = vector.extract_strided_slice %52 {offsets = [0, 256], sizes = [8, 128], strides = [1, 1]} : vector<8x384xf32> to vector<8x128xf32>
    %71 = arith.mulf %60, %70 : vector<8x128xf32>
    %72 = arith.addf %69, %71 : vector<8x128xf32>
    %73 = math.tanh %72 : vector<8x128xf32>
    %cst_22 = arith.constant 1.000000e+00 : f32
    %74 = vector.broadcast %cst_22 : f32 to vector<8x128xf32>
    %75 = arith.subf %74, %68 : vector<8x128xf32>
    %76 = arith.mulf %75, %73 : vector<8x128xf32>
    %77 = arith.mulf %68, %39 : vector<8x128xf32>
    %78 = arith.addf %76, %77 : vector<8x128xf32>
    %79 = arith.index_cast %c1_i32 : i32 to index
    %c0_23 = arith.constant 0 : index
    %c0_24 = arith.constant 0 : index
    %80 = vector.load %arg5[%79, %c0_23, %c0_24] : memref<8x8x128xf32, #tpu.memory_space<vmem>>, vector<1x8x128xf32>
    %81 = vector.shape_cast %80 : vector<1x8x128xf32> to vector<8x128xf32>
    %82 = vector.shape_cast %78 : vector<8x128xf32> to vector<1x8x128xf32>
    tpu.vector_store %arg5[%79, %c0_23, %c0_24], %82 {strides = array<i32>} : memref<8x8x128xf32, #tpu.memory_space<vmem>>, vector<1x8x128xf32>,
    %c2_i32 = arith.constant 2 : i32
    %83 = arith.index_cast %c2_i32 : i32 to index
    %c0_25 = arith.constant 0 : index
    %c0_26 = arith.constant 0 : index
    %84 = vector.load %arg0[%83, %c0_25, %c0_26] : memref<8x8x128xf32, #tpu.memory_space<vmem>>, vector<1x8x128xf32>
    %85 = vector.shape_cast %84 : vector<1x8x128xf32> to vector<8x128xf32>
    %cst_27 = arith.constant dense<0.000000e+00> : vector<8x384xf32>
    %86 = tpu.matmul %85, %0, %cst_27 {dimension_numbers = #tpu.dot_dimension_numbers<[1], [0], [0], [1], [0, 0, 1, 1], [], []>} : vector<8x128xf32>, vector<128x384xf32>, vector<8x384xf32> -> vector<8x384xf32>
    %87 = vector.broadcast %2 : vector<1x384xf32> to vector<8x384xf32>
    %88 = arith.addf %86, %87 : vector<8x384xf32>
    %cst_28 = arith.constant dense<0.000000e+00> : vector<8x384xf32>
    %89 = tpu.matmul %78, %1, %cst_28 {dimension_numbers = #tpu.dot_dimension_numbers<[1], [0], [0], [1], [0, 0, 1, 1], [], []>} : vector<8x128xf32>, vector<128x384xf32>, vector<8x384xf32> -> vector<8x384xf32>
    %90 = vector.broadcast %3 : vector<1x384xf32> to vector<8x384xf32>
    %91 = arith.addf %89, %90 : vector<8x384xf32>
    %92 = vector.extract_strided_slice %88 {offsets = [0, 0], sizes = [8, 128], strides = [1, 1]} : vector<8x384xf32> to vector<8x128xf32>
    %93 = vector.extract_strided_slice %91 {offsets = [0, 0], sizes = [8, 128], strides = [1, 1]} : vector<8x384xf32> to vector<8x128xf32>
    %94 = arith.addf %92, %93 : vector<8x128xf32>
    %95 = arith.negf %94 : vector<8x128xf32>
    %96 = math.exp %95 : vector<8x128xf32>
    %cst_29 = arith.constant 1.000000e+00 : f32
    %97 = vector.broadcast %cst_29 : f32 to vector<8x128xf32>
    %98 = arith.addf %97, %96 : vector<8x128xf32>
    %99 = arith.divf %97, %98 : vector<8x128xf32>
    %100 = vector.extract_strided_slice %88 {offsets = [0, 128], sizes = [8, 128], strides = [1, 1]} : vector<8x384xf32> to vector<8x128xf32>
    %101 = vector.extract_strided_slice %91 {offsets = [0, 128], sizes = [8, 128], strides = [1, 1]} : vector<8x384xf32> to vector<8x128xf32>
    %102 = arith.addf %100, %101 : vector<8x128xf32>
    %103 = arith.negf %102 : vector<8x128xf32>
    %104 = math.exp %103 : vector<8x128xf32>
    %cst_30 = arith.constant 1.000000e+00 : f32
    %105 = vector.broadcast %cst_30 : f32 to vector<8x128xf32>
    %106 = arith.addf %105, %104 : vector<8x128xf32>
    %107 = arith.divf %105, %106 : vector<8x128xf32>
    %108 = vector.extract_strided_slice %88 {offsets = [0, 256], sizes = [8, 128], strides = [1, 1]} : vector<8x384xf32> to vector<8x128xf32>
    %109 = vector.extract_strided_slice %91 {offsets = [0, 256], sizes = [8, 128], strides = [1, 1]} : vector<8x384xf32> to vector<8x128xf32>
    %110 = arith.mulf %99, %109 : vector<8x128xf32>
    %111 = arith.addf %108, %110 : vector<8x128xf32>
    %112 = math.tanh %111 : vector<8x128xf32>
    %cst_31 = arith.constant 1.000000e+00 : f32
    %113 = vector.broadcast %cst_31 : f32 to vector<8x128xf32>
    %114 = arith.subf %113, %107 : vector<8x128xf32>
    %115 = arith.mulf %114, %112 : vector<8x128xf32>
    %116 = arith.mulf %107, %78 : vector<8x128xf32>
    %117 = arith.addf %115, %116 : vector<8x128xf32>
    %118 = arith.index_cast %c2_i32 : i32 to index
    %c0_32 = arith.constant 0 : index
    %c0_33 = arith.constant 0 : index
    %119 = vector.load %arg5[%118, %c0_32, %c0_33] : memref<8x8x128xf32, #tpu.memory_space<vmem>>, vector<1x8x128xf32>
    %120 = vector.shape_cast %119 : vector<1x8x128xf32> to vector<8x128xf32>
    %121 = vector.shape_cast %117 : vector<8x128xf32> to vector<1x8x128xf32>
    tpu.vector_store %arg5[%118, %c0_32, %c0_33], %121 {strides = array<i32>} : memref<8x8x128xf32, #tpu.memory_space<vmem>>, vector<1x8x128xf32>,
    %c3_i32 = arith.constant 3 : i32
    %122 = arith.index_cast %c3_i32 : i32 to index
    %c0_34 = arith.constant 0 : index
    %c0_35 = arith.constant 0 : index
    %123 = vector.load %arg0[%122, %c0_34, %c0_35] : memref<8x8x128xf32, #tpu.memory_space<vmem>>, vector<1x8x128xf32>
    %124 = vector.shape_cast %123 : vector<1x8x128xf32> to vector<8x128xf32>
    %cst_36 = arith.constant dense<0.000000e+00> : vector<8x384xf32>
    %125 = tpu.matmul %124, %0, %cst_36 {dimension_numbers = #tpu.dot_dimension_numbers<[1], [0], [0], [1], [0, 0, 1, 1], [], []>} : vector<8x128xf32>, vector<128x384xf32>, vector<8x384xf32> -> vector<8x384xf32>
    %126 = vector.broadcast %2 : vector<1x384xf32> to vector<8x384xf32>
    %127 = arith.addf %125, %126 : vector<8x384xf32>
    %cst_37 = arith.constant dense<0.000000e+00> : vector<8x384xf32>
    %128 = tpu.matmul %117, %1, %cst_37 {dimension_numbers = #tpu.dot_dimension_numbers<[1], [0], [0], [1], [0, 0, 1, 1], [], []>} : vector<8x128xf32>, vector<128x384xf32>, vector<8x384xf32> -> vector<8x384xf32>
    %129 = vector.broadcast %3 : vector<1x384xf32> to vector<8x384xf32>
    %130 = arith.addf %128, %129 : vector<8x384xf32>
    %131 = vector.extract_strided_slice %127 {offsets = [0, 0], sizes = [8, 128], strides = [1, 1]} : vector<8x384xf32> to vector<8x128xf32>
    %132 = vector.extract_strided_slice %130 {offsets = [0, 0], sizes = [8, 128], strides = [1, 1]} : vector<8x384xf32> to vector<8x128xf32>
    %133 = arith.addf %131, %132 : vector<8x128xf32>
    %134 = arith.negf %133 : vector<8x128xf32>
    %135 = math.exp %134 : vector<8x128xf32>
    %cst_38 = arith.constant 1.000000e+00 : f32
    %136 = vector.broadcast %cst_38 : f32 to vector<8x128xf32>
    %137 = arith.addf %136, %135 : vector<8x128xf32>
    %138 = arith.divf %136, %137 : vector<8x128xf32>
    %139 = vector.extract_strided_slice %127 {offsets = [0, 128], sizes = [8, 128], strides = [1, 1]} : vector<8x384xf32> to vector<8x128xf32>
    %140 = vector.extract_strided_slice %130 {offsets = [0, 128], sizes = [8, 128], strides = [1, 1]} : vector<8x384xf32> to vector<8x128xf32>
    %141 = arith.addf %139, %140 : vector<8x128xf32>
    %142 = arith.negf %141 : vector<8x128xf32>
    %143 = math.exp %142 : vector<8x128xf32>
    %cst_39 = arith.constant 1.000000e+00 : f32
    %144 = vector.broadcast %cst_39 : f32 to vector<8x128xf32>
    %145 = arith.addf %144, %143 : vector<8x128xf32>
    %146 = arith.divf %144, %145 : vector<8x128xf32>
    %147 = vector.extract_strided_slice %127 {offsets = [0, 256], sizes = [8, 128], strides = [1, 1]} : vector<8x384xf32> to vector<8x128xf32>
    %148 = vector.extract_strided_slice %130 {offsets = [0, 256], sizes = [8, 128], strides = [1, 1]} : vector<8x384xf32> to vector<8x128xf32>
    %149 = arith.mulf %138, %148 : vector<8x128xf32>
    %150 = arith.addf %147, %149 : vector<8x128xf32>
    %151 = math.tanh %150 : vector<8x128xf32>
    %cst_40 = arith.constant 1.000000e+00 : f32
    %152 = vector.broadcast %cst_40 : f32 to vector<8x128xf32>
    %153 = arith.subf %152, %146 : vector<8x128xf32>
    %154 = arith.mulf %153, %151 : vector<8x128xf32>
    %155 = arith.mulf %146, %117 : vector<8x128xf32>
    %156 = arith.addf %154, %155 : vector<8x128xf32>
    %157 = arith.index_cast %c3_i32 : i32 to index
    %c0_41 = arith.constant 0 : index
    %c0_42 = arith.constant 0 : index
    %158 = vector.load %arg5[%157, %c0_41, %c0_42] : memref<8x8x128xf32, #tpu.memory_space<vmem>>, vector<1x8x128xf32>
    %159 = vector.shape_cast %158 : vector<1x8x128xf32> to vector<8x128xf32>
    %160 = vector.shape_cast %156 : vector<8x128xf32> to vector<1x8x128xf32>
    tpu.vector_store %arg5[%157, %c0_41, %c0_42], %160 {strides = array<i32>} : memref<8x8x128xf32, #tpu.memory_space<vmem>>, vector<1x8x128xf32>,
    %c4_i32 = arith.constant 4 : i32
    %161 = arith.index_cast %c4_i32 : i32 to index
    %c0_43 = arith.constant 0 : index
    %c0_44 = arith.constant 0 : index
    %162 = vector.load %arg0[%161, %c0_43, %c0_44] : memref<8x8x128xf32, #tpu.memory_space<vmem>>, vector<1x8x128xf32>
    %163 = vector.shape_cast %162 : vector<1x8x128xf32> to vector<8x128xf32>
    %cst_45 = arith.constant dense<0.000000e+00> : vector<8x384xf32>
    %164 = tpu.matmul %163, %0, %cst_45 {dimension_numbers = #tpu.dot_dimension_numbers<[1], [0], [0], [1], [0, 0, 1, 1], [], []>} : vector<8x128xf32>, vector<128x384xf32>, vector<8x384xf32> -> vector<8x384xf32>
    %165 = vector.broadcast %2 : vector<1x384xf32> to vector<8x384xf32>
    %166 = arith.addf %164, %165 : vector<8x384xf32>
    %cst_46 = arith.constant dense<0.000000e+00> : vector<8x384xf32>
    %167 = tpu.matmul %156, %1, %cst_46 {dimension_numbers = #tpu.dot_dimension_numbers<[1], [0], [0], [1], [0, 0, 1, 1], [], []>} : vector<8x128xf32>, vector<128x384xf32>, vector<8x384xf32> -> vector<8x384xf32>
    %168 = vector.broadcast %3 : vector<1x384xf32> to vector<8x384xf32>
    %169 = arith.addf %167, %168 : vector<8x384xf32>
    %170 = vector.extract_strided_slice %166 {offsets = [0, 0], sizes = [8, 128], strides = [1, 1]} : vector<8x384xf32> to vector<8x128xf32>
    %171 = vector.extract_strided_slice %169 {offsets = [0, 0], sizes = [8, 128], strides = [1, 1]} : vector<8x384xf32> to vector<8x128xf32>
    %172 = arith.addf %170, %171 : vector<8x128xf32>
    %173 = arith.negf %172 : vector<8x128xf32>
    %174 = math.exp %173 : vector<8x128xf32>
    %cst_47 = arith.constant 1.000000e+00 : f32
    %175 = vector.broadcast %cst_47 : f32 to vector<8x128xf32>
    %176 = arith.addf %175, %174 : vector<8x128xf32>
    %177 = arith.divf %175, %176 : vector<8x128xf32>
    %178 = vector.extract_strided_slice %166 {offsets = [0, 128], sizes = [8, 128], strides = [1, 1]} : vector<8x384xf32> to vector<8x128xf32>
    %179 = vector.extract_strided_slice %169 {offsets = [0, 128], sizes = [8, 128], strides = [1, 1]} : vector<8x384xf32> to vector<8x128xf32>
    %180 = arith.addf %178, %179 : vector<8x128xf32>
    %181 = arith.negf %180 : vector<8x128xf32>
    %182 = math.exp %181 : vector<8x128xf32>
    %cst_48 = arith.constant 1.000000e+00 : f32
    %183 = vector.broadcast %cst_48 : f32 to vector<8x128xf32>
    %184 = arith.addf %183, %182 : vector<8x128xf32>
    %185 = arith.divf %183, %184 : vector<8x128xf32>
    %186 = vector.extract_strided_slice %166 {offsets = [0, 256], sizes = [8, 128], strides = [1, 1]} : vector<8x384xf32> to vector<8x128xf32>
    %187 = vector.extract_strided_slice %169 {offsets = [0, 256], sizes = [8, 128], strides = [1, 1]} : vector<8x384xf32> to vector<8x128xf32>
    %188 = arith.mulf %177, %187 : vector<8x128xf32>
    %189 = arith.addf %186, %188 : vector<8x128xf32>
    %190 = math.tanh %189 : vector<8x128xf32>
    %cst_49 = arith.constant 1.000000e+00 : f32
    %191 = vector.broadcast %cst_49 : f32 to vector<8x128xf32>
    %192 = arith.subf %191, %185 : vector<8x128xf32>
    %193 = arith.mulf %192, %190 : vector<8x128xf32>
    %194 = arith.mulf %185, %156 : vector<8x128xf32>
    %195 = arith.addf %193, %194 : vector<8x128xf32>
    %196 = arith.index_cast %c4_i32 : i32 to index
    %c0_50 = arith.constant 0 : index
    %c0_51 = arith.constant 0 : index
    %197 = vector.load %arg5[%196, %c0_50, %c0_51] : memref<8x8x128xf32, #tpu.memory_space<vmem>>, vector<1x8x128xf32>
    %198 = vector.shape_cast %197 : vector<1x8x128xf32> to vector<8x128xf32>
    %199 = vector.shape_cast %195 : vector<8x128xf32> to vector<1x8x128xf32>
    tpu.vector_store %arg5[%196, %c0_50, %c0_51], %199 {strides = array<i32>} : memref<8x8x128xf32, #tpu.memory_space<vmem>>, vector<1x8x128xf32>,
    %c5_i32 = arith.constant 5 : i32
    %200 = arith.index_cast %c5_i32 : i32 to index
    %c0_52 = arith.constant 0 : index
    %c0_53 = arith.constant 0 : index
    %201 = vector.load %arg0[%200, %c0_52, %c0_53] : memref<8x8x128xf32, #tpu.memory_space<vmem>>, vector<1x8x128xf32>
    %202 = vector.shape_cast %201 : vector<1x8x128xf32> to vector<8x128xf32>
    %cst_54 = arith.constant dense<0.000000e+00> : vector<8x384xf32>
    %203 = tpu.matmul %202, %0, %cst_54 {dimension_numbers = #tpu.dot_dimension_numbers<[1], [0], [0], [1], [0, 0, 1, 1], [], []>} : vector<8x128xf32>, vector<128x384xf32>, vector<8x384xf32> -> vector<8x384xf32>
    %204 = vector.broadcast %2 : vector<1x384xf32> to vector<8x384xf32>
    %205 = arith.addf %203, %204 : vector<8x384xf32>
    %cst_55 = arith.constant dense<0.000000e+00> : vector<8x384xf32>
    %206 = tpu.matmul %195, %1, %cst_55 {dimension_numbers = #tpu.dot_dimension_numbers<[1], [0], [0], [1], [0, 0, 1, 1], [], []>} : vector<8x128xf32>, vector<128x384xf32>, vector<8x384xf32> -> vector<8x384xf32>
    %207 = vector.broadcast %3 : vector<1x384xf32> to vector<8x384xf32>
    %208 = arith.addf %206, %207 : vector<8x384xf32>
    %209 = vector.extract_strided_slice %205 {offsets = [0, 0], sizes = [8, 128], strides = [1, 1]} : vector<8x384xf32> to vector<8x128xf32>
    %210 = vector.extract_strided_slice %208 {offsets = [0, 0], sizes = [8, 128], strides = [1, 1]} : vector<8x384xf32> to vector<8x128xf32>
    %211 = arith.addf %209, %210 : vector<8x128xf32>
    %212 = arith.negf %211 : vector<8x128xf32>
    %213 = math.exp %212 : vector<8x128xf32>
    %cst_56 = arith.constant 1.000000e+00 : f32
    %214 = vector.broadcast %cst_56 : f32 to vector<8x128xf32>
    %215 = arith.addf %214, %213 : vector<8x128xf32>
    %216 = arith.divf %214, %215 : vector<8x128xf32>
    %217 = vector.extract_strided_slice %205 {offsets = [0, 128], sizes = [8, 128], strides = [1, 1]} : vector<8x384xf32> to vector<8x128xf32>
    %218 = vector.extract_strided_slice %208 {offsets = [0, 128], sizes = [8, 128], strides = [1, 1]} : vector<8x384xf32> to vector<8x128xf32>
    %219 = arith.addf %217, %218 : vector<8x128xf32>
    %220 = arith.negf %219 : vector<8x128xf32>
    %221 = math.exp %220 : vector<8x128xf32>
    %cst_57 = arith.constant 1.000000e+00 : f32
    %222 = vector.broadcast %cst_57 : f32 to vector<8x128xf32>
    %223 = arith.addf %222, %221 : vector<8x128xf32>
    %224 = arith.divf %222, %223 : vector<8x128xf32>
    %225 = vector.extract_strided_slice %205 {offsets = [0, 256], sizes = [8, 128], strides = [1, 1]} : vector<8x384xf32> to vector<8x128xf32>
    %226 = vector.extract_strided_slice %208 {offsets = [0, 256], sizes = [8, 128], strides = [1, 1]} : vector<8x384xf32> to vector<8x128xf32>
    %227 = arith.mulf %216, %226 : vector<8x128xf32>
    %228 = arith.addf %225, %227 : vector<8x128xf32>
    %229 = math.tanh %228 : vector<8x128xf32>
    %cst_58 = arith.constant 1.000000e+00 : f32
    %230 = vector.broadcast %cst_58 : f32 to vector<8x128xf32>
    %231 = arith.subf %230, %224 : vector<8x128xf32>
    %232 = arith.mulf %231, %229 : vector<8x128xf32>
    %233 = arith.mulf %224, %195 : vector<8x128xf32>
    %234 = arith.addf %232, %233 : vector<8x128xf32>
    %235 = arith.index_cast %c5_i32 : i32 to index
    %c0_59 = arith.constant 0 : index
    %c0_60 = arith.constant 0 : index
    %236 = vector.load %arg5[%235, %c0_59, %c0_60] : memref<8x8x128xf32, #tpu.memory_space<vmem>>, vector<1x8x128xf32>
    %237 = vector.shape_cast %236 : vector<1x8x128xf32> to vector<8x128xf32>
    %238 = vector.shape_cast %234 : vector<8x128xf32> to vector<1x8x128xf32>
    tpu.vector_store %arg5[%235, %c0_59, %c0_60], %238 {strides = array<i32>} : memref<8x8x128xf32, #tpu.memory_space<vmem>>, vector<1x8x128xf32>,
    %c6_i32 = arith.constant 6 : i32
    %239 = arith.index_cast %c6_i32 : i32 to index
    %c0_61 = arith.constant 0 : index
    %c0_62 = arith.constant 0 : index
    %240 = vector.load %arg0[%239, %c0_61, %c0_62] : memref<8x8x128xf32, #tpu.memory_space<vmem>>, vector<1x8x128xf32>
    %241 = vector.shape_cast %240 : vector<1x8x128xf32> to vector<8x128xf32>
    %cst_63 = arith.constant dense<0.000000e+00> : vector<8x384xf32>
    %242 = tpu.matmul %241, %0, %cst_63 {dimension_numbers = #tpu.dot_dimension_numbers<[1], [0], [0], [1], [0, 0, 1, 1], [], []>} : vector<8x128xf32>, vector<128x384xf32>, vector<8x384xf32> -> vector<8x384xf32>
    %243 = vector.broadcast %2 : vector<1x384xf32> to vector<8x384xf32>
    %244 = arith.addf %242, %243 : vector<8x384xf32>
    %cst_64 = arith.constant dense<0.000000e+00> : vector<8x384xf32>
    %245 = tpu.matmul %234, %1, %cst_64 {dimension_numbers = #tpu.dot_dimension_numbers<[1], [0], [0], [1], [0, 0, 1, 1], [], []>} : vector<8x128xf32>, vector<128x384xf32>, vector<8x384xf32> -> vector<8x384xf32>
    %246 = vector.broadcast %3 : vector<1x384xf32> to vector<8x384xf32>
    %247 = arith.addf %245, %246 : vector<8x384xf32>
    %248 = vector.extract_strided_slice %244 {offsets = [0, 0], sizes = [8, 128], strides = [1, 1]} : vector<8x384xf32> to vector<8x128xf32>
    %249 = vector.extract_strided_slice %247 {offsets = [0, 0], sizes = [8, 128], strides = [1, 1]} : vector<8x384xf32> to vector<8x128xf32>
    %250 = arith.addf %248, %249 : vector<8x128xf32>
    %251 = arith.negf %250 : vector<8x128xf32>
    %252 = math.exp %251 : vector<8x128xf32>
    %cst_65 = arith.constant 1.000000e+00 : f32
    %253 = vector.broadcast %cst_65 : f32 to vector<8x128xf32>
    %254 = arith.addf %253, %252 : vector<8x128xf32>
    %255 = arith.divf %253, %254 : vector<8x128xf32>
    %256 = vector.extract_strided_slice %244 {offsets = [0, 128], sizes = [8, 128], strides = [1, 1]} : vector<8x384xf32> to vector<8x128xf32>
    %257 = vector.extract_strided_slice %247 {offsets = [0, 128], sizes = [8, 128], strides = [1, 1]} : vector<8x384xf32> to vector<8x128xf32>
    %258 = arith.addf %256, %257 : vector<8x128xf32>
    %259 = arith.negf %258 : vector<8x128xf32>
    %260 = math.exp %259 : vector<8x128xf32>
    %cst_66 = arith.constant 1.000000e+00 : f32
    %261 = vector.broadcast %cst_66 : f32 to vector<8x128xf32>
    %262 = arith.addf %261, %260 : vector<8x128xf32>
    %263 = arith.divf %261, %262 : vector<8x128xf32>
    %264 = vector.extract_strided_slice %244 {offsets = [0, 256], sizes = [8, 128], strides = [1, 1]} : vector<8x384xf32> to vector<8x128xf32>
    %265 = vector.extract_strided_slice %247 {offsets = [0, 256], sizes = [8, 128], strides = [1, 1]} : vector<8x384xf32> to vector<8x128xf32>
    %266 = arith.mulf %255, %265 : vector<8x128xf32>
    %267 = arith.addf %264, %266 : vector<8x128xf32>
    %268 = math.tanh %267 : vector<8x128xf32>
    %cst_67 = arith.constant 1.000000e+00 : f32
    %269 = vector.broadcast %cst_67 : f32 to vector<8x128xf32>
    %270 = arith.subf %269, %263 : vector<8x128xf32>
    %271 = arith.mulf %270, %268 : vector<8x128xf32>
    %272 = arith.mulf %263, %234 : vector<8x128xf32>
    %273 = arith.addf %271, %272 : vector<8x128xf32>
    %274 = arith.index_cast %c6_i32 : i32 to index
    %c0_68 = arith.constant 0 : index
    %c0_69 = arith.constant 0 : index
    %275 = vector.load %arg5[%274, %c0_68, %c0_69] : memref<8x8x128xf32, #tpu.memory_space<vmem>>, vector<1x8x128xf32>
    %276 = vector.shape_cast %275 : vector<1x8x128xf32> to vector<8x128xf32>
    %277 = vector.shape_cast %273 : vector<8x128xf32> to vector<1x8x128xf32>
    tpu.vector_store %arg5[%274, %c0_68, %c0_69], %277 {strides = array<i32>} : memref<8x8x128xf32, #tpu.memory_space<vmem>>, vector<1x8x128xf32>,
    %c7_i32 = arith.constant 7 : i32
    %278 = arith.index_cast %c7_i32 : i32 to index
    %c0_70 = arith.constant 0 : index
    %c0_71 = arith.constant 0 : index
    %279 = vector.load %arg0[%278, %c0_70, %c0_71] : memref<8x8x128xf32, #tpu.memory_space<vmem>>, vector<1x8x128xf32>
    %280 = vector.shape_cast %279 : vector<1x8x128xf32> to vector<8x128xf32>
    %cst_72 = arith.constant dense<0.000000e+00> : vector<8x384xf32>
    %281 = tpu.matmul %280, %0, %cst_72 {dimension_numbers = #tpu.dot_dimension_numbers<[1], [0], [0], [1], [0, 0, 1, 1], [], []>} : vector<8x128xf32>, vector<128x384xf32>, vector<8x384xf32> -> vector<8x384xf32>
    %282 = vector.broadcast %2 : vector<1x384xf32> to vector<8x384xf32>
    %283 = arith.addf %281, %282 : vector<8x384xf32>
    %cst_73 = arith.constant dense<0.000000e+00> : vector<8x384xf32>
    %284 = tpu.matmul %273, %1, %cst_73 {dimension_numbers = #tpu.dot_dimension_numbers<[1], [0], [0], [1], [0, 0, 1, 1], [], []>} : vector<8x128xf32>, vector<128x384xf32>, vector<8x384xf32> -> vector<8x384xf32>
    %285 = vector.broadcast %3 : vector<1x384xf32> to vector<8x384xf32>
    %286 = arith.addf %284, %285 : vector<8x384xf32>
    %287 = vector.extract_strided_slice %283 {offsets = [0, 0], sizes = [8, 128], strides = [1, 1]} : vector<8x384xf32> to vector<8x128xf32>
    %288 = vector.extract_strided_slice %286 {offsets = [0, 0], sizes = [8, 128], strides = [1, 1]} : vector<8x384xf32> to vector<8x128xf32>
    %289 = arith.addf %287, %288 : vector<8x128xf32>
    %290 = arith.negf %289 : vector<8x128xf32>
    %291 = math.exp %290 : vector<8x128xf32>
    %cst_74 = arith.constant 1.000000e+00 : f32
    %292 = vector.broadcast %cst_74 : f32 to vector<8x128xf32>
    %293 = arith.addf %292, %291 : vector<8x128xf32>
    %294 = arith.divf %292, %293 : vector<8x128xf32>
    %295 = vector.extract_strided_slice %283 {offsets = [0, 128], sizes = [8, 128], strides = [1, 1]} : vector<8x384xf32> to vector<8x128xf32>
    %296 = vector.extract_strided_slice %286 {offsets = [0, 128], sizes = [8, 128], strides = [1, 1]} : vector<8x384xf32> to vector<8x128xf32>
    %297 = arith.addf %295, %296 : vector<8x128xf32>
    %298 = arith.negf %297 : vector<8x128xf32>
    %299 = math.exp %298 : vector<8x128xf32>
    %cst_75 = arith.constant 1.000000e+00 : f32
    %300 = vector.broadcast %cst_75 : f32 to vector<8x128xf32>
    %301 = arith.addf %300, %299 : vector<8x128xf32>
    %302 = arith.divf %300, %301 : vector<8x128xf32>
    %303 = vector.extract_strided_slice %283 {offsets = [0, 256], sizes = [8, 128], strides = [1, 1]} : vector<8x384xf32> to vector<8x128xf32>
    %304 = vector.extract_strided_slice %286 {offsets = [0, 256], sizes = [8, 128], strides = [1, 1]} : vector<8x384xf32> to vector<8x128xf32>
    %305 = arith.mulf %294, %304 : vector<8x128xf32>
    %306 = arith.addf %303, %305 : vector<8x128xf32>
    %307 = math.tanh %306 : vector<8x128xf32>
    %cst_76 = arith.constant 1.000000e+00 : f32
    %308 = vector.broadcast %cst_76 : f32 to vector<8x128xf32>
    %309 = arith.subf %308, %302 : vector<8x128xf32>
    %310 = arith.mulf %309, %307 : vector<8x128xf32>
    %311 = arith.mulf %302, %273 : vector<8x128xf32>
    %312 = arith.addf %310, %311 : vector<8x128xf32>
    %313 = arith.index_cast %c7_i32 : i32 to index
    %c0_77 = arith.constant 0 : index
    %c0_78 = arith.constant 0 : index
    %314 = vector.load %arg5[%313, %c0_77, %c0_78] : memref<8x8x128xf32, #tpu.memory_space<vmem>>, vector<1x8x128xf32>
    %315 = vector.shape_cast %314 : vector<1x8x128xf32> to vector<8x128xf32>
    %316 = vector.shape_cast %312 : vector<8x128xf32> to vector<1x8x128xf32>
    tpu.vector_store %arg5[%313, %c0_77, %c0_78], %316 {strides = array<i32>} : memref<8x8x128xf32, #tpu.memory_space<vmem>>, vector<1x8x128xf32>,
    %c8_i32 = arith.constant 8 : i32
    %c0_79 = arith.constant 0 : index
    %c0_80 = arith.constant 0 : index
    %c0_81 = arith.constant 0 : index
    %317 = vector.load %arg6[%c0_79, %c0_80, %c0_81] : memref<1x8x128xf32, #tpu.memory_space<vmem>>, vector<1x8x128xf32>
    %318 = vector.shape_cast %317 : vector<1x8x128xf32> to vector<8x128xf32>
    %319 = vector.shape_cast %312 : vector<8x128xf32> to vector<1x8x128xf32>
    tpu.vector_store %arg6[%c0_79, %c0_80, %c0_81], %319 {strides = array<i32>} : memref<1x8x128xf32, #tpu.memory_space<vmem>>, vector<1x8x128xf32>,
    return
  }
}

</mosaic_0001>

<llo_original>
// kernel: tpu_custom_call.1
$region0: #{tpu_custom_call.1}
  #allocation0 [shape = 'u32[]', space=smem, size = 0x4, offset = 0x4, fixed_abs, tag = 'smem constant byte address 0x4 - core index']
  #allocation1 [shape = 'u32[144,128]{1,0:T(1,128)}', space=vmem, size = 0x12000, scoped, tag = 'internal scratch']
  %s0 = inlined_call_operand.hbm [shape: f32[8,8,128], index: 0, kind: input, shape index: {}]
  %s1 = inlined_call_operand.hbm [shape: f32[128,384], index: 1, kind: input, shape index: {}]
  %s2 = inlined_call_operand.hbm [shape: f32[128,384], index: 2, kind: input, shape index: {}]
  %s3 = inlined_call_operand.vmem [shape: f32[1,384], index: 3, kind: input, shape index: {}]
  %s4 = inlined_call_operand.vmem [shape: f32[1,384], index: 4, kind: input, shape index: {}]
  %s5 = inlined_call_operand.hbm [shape: f32[8,8,128], index: 5, kind: output, shape index: {0}]
  %s6 = inlined_call_operand.hbm [shape: f32[1,8,128], index: 6, kind: output, shape index: {1}]
  %7 = xla_tuple %s5, %s6
  %s8 = sld [smem:[#allocation0]]
  $region50: #{tpu_custom_call.1} parent=0
    _
  %s10 = ssub.s32 1, %s8
  %s11 = scalar_select 0, %s10, %s8
  $region1: #{tpu_custom_call.1} parent=0
    #allocation2 [shape = 'u8[32768]{0}', space=vmem, size = 0x8000, scoped, tag = 'input window, operand 0, single buffered']
    #allocation3 [shape = 's32[1]{0}', space=sflag, size = 0x4, scoped, tag = 'scoped memory for tpu_custom_call.1']
    #allocation4 [shape = 's32[1]{0}', space=sflag, size = 0x4, scoped, tag = 'scoped memory for tpu_custom_call.1']
    #allocation5 [shape = 'u8[196608]{0}', space=vmem, size = 0x30000, scoped, tag = 'input window, operand 1, single buffered']
    #allocation6 [shape = 's32[1]{0}', space=sflag, size = 0x4, scoped, tag = 'scoped memory for tpu_custom_call.1']
    #allocation7 [shape = 'u8[196608]{0}', space=vmem, size = 0x30000, scoped, tag = 'input window, operand 2, single buffered']
    #allocation8 [shape = 'u8[32768]{0}', space=vmem, size = 0x8000, scoped, tag = 'output window, operand 0, single buffered']
    #allocation9 [shape = 'u8[4096]{0}', space=vmem, size = 0x1000, scoped, tag = 'output window, operand 1, single buffered']
    #allocation10 [shape = 's32[1]{0}', space=sflag, size = 0x4, scoped, tag = 'scoped memory for tpu_custom_call.1']
    %12 = vsyncpa [#allocation3], 0
    %13 = vsyncpa [#allocation6], 0
    %14 = vsyncpa [#allocation4], 0
    %15 = vsyncpa [#allocation10], 0
    // Predicated region
    $region2: #{tpu_custom_call.1} parent=1 // pred_check
      _
    $region3: #{tpu_custom_call.1} parent=1 // pred_check_branch
      %17 = sbr.rel (0) target = $region5
    $region4: #{tpu_custom_call.1} parent=1 // pred_region
      %s19 = ssub.s32 1024, 1024
      %20 = vsyncadd [#allocation3], %s19
      %s21 = sshll.u32 [#allocation2], 4
      %s22 = int_to_ptr.vmem [resolvable:$true] %s21
      %27 = dma.hbm_to_vmem [thread:$0]  %s0, 1024, %s22, [#allocation3], 128, 128, 8
    $region5: #{tpu_custom_call.1} parent=1 // pred_fallthru
      _
    // Predicated region
    $region6: #{tpu_custom_call.1} parent=1 // pred_check
      _
    $region7: #{tpu_custom_call.1} parent=1 // pred_check_branch
      %29 = sbr.rel (0) target = $region9
    $region8: #{tpu_custom_call.1} parent=1 // pred_region
      %s31 = ssub.s32 6144, 6144
      %32 = vsyncadd [#allocation6], %s31
      %s33 = sshll.u32 [#allocation5], 4
      %s34 = int_to_ptr.vmem [resolvable:$true] %s33
      %39 = dma.hbm_to_vmem [thread:$0]  %s1, 6144, %s34, [#allocation6], 384, 384, 24
    $region9: #{tpu_custom_call.1} parent=1 // pred_fallthru
      _
    // Predicated region
    $region10: #{tpu_custom_call.1} parent=1 // pred_check
      _
    $region11: #{tpu_custom_call.1} parent=1 // pred_check_branch
      %41 = sbr.rel (0) target = $region13
    $region12: #{tpu_custom_call.1} parent=1 // pred_region
      %s43 = ssub.s32 6144, 6144
      %44 = vsyncadd [#allocation6], %s43
      %s45 = sshll.u32 [#allocation7], 4
      %s46 = int_to_ptr.vmem [resolvable:$true] %s45
      %51 = dma.hbm_to_vmem [thread:$0]  %s2, 6144, %s46, [#allocation6], 384, 384, 24
    $region13: #{tpu_custom_call.1} parent=1 // pred_fallthru
      _
    // Predicated region
    $region14: #{tpu_custom_call.1} parent=1 // pred_check
      _
    $region15: #{tpu_custom_call.1} parent=1 // pred_check_branch
      %53 = sbr.rel (0) target = $region17
    $region16: #{tpu_custom_call.1} parent=1 // pred_region
      _
    $region17: #{tpu_custom_call.1} parent=1 // pred_fallthru
      _
    // Predicated region
    $region18: #{tpu_custom_call.1} parent=1 // pred_check
      _
    $region19: #{tpu_custom_call.1} parent=1 // pred_check_branch
      %55 = sbr.rel (0) target = $region21
    $region20: #{tpu_custom_call.1} parent=1 // pred_region
      _
    $region21: #{tpu_custom_call.1} parent=1 // pred_fallthru
      _
    // Predicated region
    $region22: #{tpu_custom_call.1} parent=1 // pred_check
      _
    $region23: #{tpu_custom_call.1} parent=1 // pred_check_branch
      %57 = sbr.rel (0) target = $region25
    $region24: #{tpu_custom_call.1} parent=1 // pred_region
      %58 = dma.done [#allocation3], 1024
    $region25: #{tpu_custom_call.1} parent=1 // pred_fallthru
      _
    // Predicated region
    $region26: #{tpu_custom_call.1} parent=1 // pred_check
      _
    $region27: #{tpu_custom_call.1} parent=1 // pred_check_branch
      %60 = sbr.rel (0) target = $region29
    $region28: #{tpu_custom_call.1} parent=1 // pred_region
      %61 = dma.done [#allocation6], 6144
    $region29: #{tpu_custom_call.1} parent=1 // pred_fallthru
      _
    // Predicated region
    $region30: #{tpu_custom_call.1} parent=1 // pred_check
      _
    $region31: #{tpu_custom_call.1} parent=1 // pred_check_branch
      %63 = sbr.rel (0) target = $region33
    $region32: #{tpu_custom_call.1} parent=1 // pred_region
      %64 = dma.done [#allocation6], 6144
    $region33: #{tpu_custom_call.1} parent=1 // pred_fallthru
      _
    %v65 = vld [vmem:[#allocation5] sm:$0xff]
    %v66 = vld [vmem:[#allocation5 + $0x8] sm:$0xff]
    %v67 = vld [vmem:[#allocation5 + $0x10] sm:$0xff]
    %v68 = vld [vmem:[#allocation5 + $0x18] sm:$0xff]
    %v69 = vld [vmem:[#allocation5 + $0x20] sm:$0xff]
    %v70 = vld [vmem:[#allocation5 + $0x28] sm:$0xff]
    %v71 = vld [vmem:[#allocation5 + $0x30] sm:$0xff]
    %v72 = vld [vmem:[#allocation5 + $0x38] sm:$0xff]
    %v73 = vld [vmem:[#allocation5 + $0x40] sm:$0xff]
    %v74 = vld [vmem:[#allocation5 + $0x48] sm:$0xff]
    %v75 = vld [vmem:[#allocation5 + $0x50] sm:$0xff]
    %v76 = vld [vmem:[#allocation5 + $0x58] sm:$0xff]
    %v77 = vld [vmem:[#allocation5 + $0x60] sm:$0xff]
    %v78 = vld [vmem:[#allocation5 + $0x68] sm:$0xff]
    %v79 = vld [vmem:[#allocation5 + $0x70] sm:$0xff]
    %v80 = vld [vmem:[#allocation5 + $0x78] sm:$0xff]
    %v81 = vld [vmem:[#allocation5 + $0x80] sm:$0xff]
    %v82 = vld [vmem:[#allocation5 + $0x88] sm:$0xff]
    %v83 = vld [vmem:[#allocation5 + $0x90] sm:$0xff]
    %v84 = vld [vmem:[#allocation5 + $0x98] sm:$0xff]
    %v85 = vld [vmem:[#allocation5 + $0xa0] sm:$0xff]
    %v86 = vld [vmem:[#allocation5 + $0xa8] sm:$0xff]
    %v87 = vld [vmem:[#allocation5 + $0xb0] sm:$0xff]
    %v88 = vld [vmem:[#allocation5 + $0xb8] sm:$0xff]
    %v89 = vld [vmem:[#allocation5 + $0xc0] sm:$0xff]
    %v90 = vld [vmem:[#allocation5 + $0xc8] sm:$0xff]
    %v91 = vld [vmem:[#allocation5 + $0xd0] sm:$0xff]
    %v92 = vld [vmem:[#allocation5 + $0xd8] sm:$0xff]
    %v93 = vld [vmem:[#allocation5 + $0xe0] sm:$0xff]
    %v94 = vld [vmem:[#allocation5 + $0xe8] sm:$0xff]
    %v95 = vld [vmem:[#allocation5 + $0xf0] sm:$0xff]
    %v96 = vld [vmem:[#allocation5 + $0xf8] sm:$0xff]
    %v97 = vld [vmem:[#allocation5 + $0x100] sm:$0xff]
    %v98 = vld [vmem:[#allocation5 + $0x108] sm:$0xff]
    %v99 = vld [vmem:[#allocation5 + $0x110] sm:$0xff]
    %v100 = vld [vmem:[#allocation5 + $0x118] sm:$0xff]
    %v101 = vld [vmem:[#allocation5 + $0x120] sm:$0xff]
    %v102 = vld [vmem:[#allocation5 + $0x128] sm:$0xff]
    %v103 = vld [vmem:[#allocation5 + $0x130] sm:$0xff]
    %v104 = vld [vmem:[#allocation5 + $0x138] sm:$0xff]
    %v105 = vld [vmem:[#allocation5 + $0x140] sm:$0xff]
    %v106 = vld [vmem:[#allocation5 + $0x148] sm:$0xff]
    %v107 = vld [vmem:[#allocation5 + $0x150] sm:$0xff]
    %v108 = vld [vmem:[#allocation5 + $0x158] sm:$0xff]
    %v109 = vld [vmem:[#allocation5 + $0x160] sm:$0xff]
    %v110 = vld [vmem:[#allocation5 + $0x168] sm:$0xff]
    %v111 = vld [vmem:[#allocation5 + $0x170] sm:$0xff]
    %v112 = vld [vmem:[#allocation5 + $0x178] sm:$0xff]
    %v113 = vld [vmem:[#allocation7] sm:$0xff]
    %v114 = vld [vmem:[#allocation7 + $0x8] sm:$0xff]
    %v115 = vld [vmem:[#allocation7 + $0x10] sm:$0xff]
    %v116 = vld [vmem:[#allocation7 + $0x18] sm:$0xff]
    %v117 = vld [vmem:[#allocation7 + $0x20] sm:$0xff]
    %v118 = vld [vmem:[#allocation7 + $0x28] sm:$0xff]
    %v119 = vld [vmem:[#allocation7 + $0x30] sm:$0xff]
    %v120 = vld [vmem:[#allocation7 + $0x38] sm:$0xff]
    %v121 = vld [vmem:[#allocation7 + $0x40] sm:$0xff]
    %v122 = vld [vmem:[#allocation7 + $0x48] sm:$0xff]
    %v123 = vld [vmem:[#allocation7 + $0x50] sm:$0xff]
    %v124 = vld [vmem:[#allocation7 + $0x58] sm:$0xff]
    %v125 = vld [vmem:[#allocation7 + $0x60] sm:$0xff]
    %v126 = vld [vmem:[#allocation7 + $0x68] sm:$0xff]
    %v127 = vld [vmem:[#allocation7 + $0x70] sm:$0xff]
    %v128 = vld [vmem:[#allocation7 + $0x78] sm:$0xff]
    %v129 = vld [vmem:[#allocation7 + $0x80] sm:$0xff]
    %v130 = vld [vmem:[#allocation7 + $0x88] sm:$0xff]
    %v131 = vld [vmem:[#allocation7 + $0x90] sm:$0xff]
    %v132 = vld [vmem:[#allocation7 + $0x98] sm:$0xff]
    %v133 = vld [vmem:[#allocation7 + $0xa0] sm:$0xff]
    %v134 = vld [vmem:[#allocation7 + $0xa8] sm:$0xff]
    %v135 = vld [vmem:[#allocation7 + $0xb0] sm:$0xff]
    %v136 = vld [vmem:[#allocation7 + $0xb8] sm:$0xff]
    %v137 = vld [vmem:[#allocation7 + $0xc0] sm:$0xff]
    %v138 = vld [vmem:[#allocation7 + $0xc8] sm:$0xff]
    %v139 = vld [vmem:[#allocation7 + $0xd0] sm:$0xff]
    %v140 = vld [vmem:[#allocation7 + $0xd8] sm:$0xff]
    %v141 = vld [vmem:[#allocation7 + $0xe0] sm:$0xff]
    %v142 = vld [vmem:[#allocation7 + $0xe8] sm:$0xff]
    %v143 = vld [vmem:[#allocation7 + $0xf0] sm:$0xff]
    %v144 = vld [vmem:[#allocation7 + $0xf8] sm:$0xff]
    %v145 = vld [vmem:[#allocation7 + $0x100] sm:$0xff]
    %v146 = vld [vmem:[#allocation7 + $0x108] sm:$0xff]
    %v147 = vld [vmem:[#allocation7 + $0x110] sm:$0xff]
    %v148 = vld [vmem:[#allocation7 + $0x118] sm:$0xff]
    %v149 = vld [vmem:[#allocation7 + $0x120] sm:$0xff]
    %v150 = vld [vmem:[#allocation7 + $0x128] sm:$0xff]
    %v151 = vld [vmem:[#allocation7 + $0x130] sm:$0xff]
    %v152 = vld [vmem:[#allocation7 + $0x138] sm:$0xff]
    %v153 = vld [vmem:[#allocation7 + $0x140] sm:$0xff]
    %v154 = vld [vmem:[#allocation7 + $0x148] sm:$0xff]
    %v155 = vld [vmem:[#allocation7 + $0x150] sm:$0xff]
    %v156 = vld [vmem:[#allocation7 + $0x158] sm:$0xff]
    %v157 = vld [vmem:[#allocation7 + $0x160] sm:$0xff]
    %v158 = vld [vmem:[#allocation7 + $0x168] sm:$0xff]
    %v159 = vld [vmem:[#allocation7 + $0x170] sm:$0xff]
    %v160 = vld [vmem:[#allocation7 + $0x178] sm:$0xff]
    %v161 = vld [vmem:[%s3] sm:$0x7]
    %v162 = vld [vmem:[%s4] sm:$0x7]
    %v163 = vld [vmem:[#allocation2] sm:$0xff]
    %v165 = vlaneseq
    %v166 = vshrl.u32 %v165, 7
    %v167 = vsub.s32 0, %v166
    %v168 = vrot.slane %v161, %v167
    %v169 = vlaneseq
    %v170 = vshrl.u32 %v169, 7
    %v171 = vsub.s32 1, %v170
    %v172 = vrot.slane %v161, %v171
    %v173 = vlaneseq
    %v174 = vshrl.u32 %v173, 7
    %v175 = vsub.s32 2, %v174
    %v176 = vrot.slane %v161, %v175
    %180 = vmatprep.subr.mxu0 %v66
    %181 = vmatpush1.msra.mxu0 %v65
    %182 = vmatprep.subr.mxu0 %v69
    %183 = vmatpush1.msra.mxu0 %v68
    %184 = vmatprep.subr.mxu0 %v72
    %185 = vmatpush1.msra.mxu0 %v71
    %186 = vmatprep.subr.mxu0 %v75
    %187 = vmatpush1.msra.mxu0 %v74
    %188 = vmatprep.subr.mxu0 %v78
    %189 = vmatpush1.msra.mxu0 %v77
    %190 = vmatprep.subr.mxu0 %v81
    %191 = vmatpush1.msra.mxu0 %v80
    %192 = vmatprep.subr.mxu0 %v84
    %193 = vmatpush1.msra.mxu0 %v83
    %194 = vmatprep.subr.mxu0 %v87
    %195 = vmatpush1.msra.mxu0 %v86
    %196 = vmatprep.subr.mxu0 %v90
    %197 = vmatpush1.msra.mxu0 %v89
    %198 = vmatprep.subr.mxu0 %v93
    %199 = vmatpush1.msra.mxu0 %v92
    %200 = vmatprep.subr.mxu0 %v96
    %201 = vmatpush1.msra.mxu0 %v95
    %202 = vmatprep.subr.mxu0 %v99
    %203 = vmatpush1.msra.mxu0 %v98
    %204 = vmatprep.subr.mxu0 %v102
    %205 = vmatpush1.msra.mxu0 %v101
    %206 = vmatprep.subr.mxu0 %v105
    %207 = vmatpush1.msra.mxu0 %v104
    %208 = vmatprep.subr.mxu0 %v108
    %209 = vmatpush1.msra.mxu0 %v107
    %210 = vmatprep.subr.mxu0 %v111
    %211 = vmatpush1.msra.mxu0 %v110
    %212 = vmatprep.subr.mxu0 0.0
    %213 = vmatpush1.msra.mxu0 0.0
    %214 = vmatprep.subr.mxu0 0.0
    %215 = vmatpush1.msra.mxu0 0.0
    %216 = vmatprep.subr.mxu0 0.0
    %217 = vmatpush1.msra.mxu0 0.0
    %218 = vmatprep.subr.mxu0 0.0
    %219 = vmatpush1.msra.mxu0 0.0
    %220 = vmatprep.subr.mxu0 0.0
    %221 = vmatpush1.msra.mxu0 0.0
    %222 = vmatprep.subr.mxu0 0.0
    %223 = vmatpush1.msra.mxu0 0.0
    %224 = vmatprep.subr.mxu0 0.0
    %225 = vmatpush1.msra.mxu0 0.0
    %226 = vmatprep.subr.mxu0 0.0
    %227 = vmatpush1.msra.mxu0 0.0
    %228 = vmatprep.subr.mxu0 0.0
    %229 = vmatpush1.msra.mxu0 0.0
    %230 = vmatprep.subr.mxu0 0.0
    %231 = vmatpush1.msra.mxu0 0.0
    %232 = vmatprep.subr.mxu0 0.0
    %233 = vmatpush1.msra.mxu0 0.0
    %234 = vmatprep.subr.mxu0 0.0
    %235 = vmatpush1.msra.mxu0 0.0
    %236 = vmatprep.subr.mxu0 0.0
    %237 = vmatpush1.msra.mxu0 0.0
    %238 = vmatprep.subr.mxu0 0.0
    %239 = vmatpush1.msra.mxu0 0.0
    %240 = vmatprep.subr.mxu0 0.0
    %241 = vmatpush1.msra.mxu0 0.0
    %242 = vmatprep.subr.mxu0 0.0
    %243 = vmatpush1.msra.mxu0 0.0
    %244 = vmatprep.mubr.f32.mxu0 0.0
    %245 = vmatmul.mubr.f32.gmra.mrb[0].mxu0 %v163
    %v246 = vpop.f32.mrb[0].mxu0
    %v247 = vadd.f32 %v168, %v246
    %v248 = vpop.f32.mrb[0].mxu0
    %v249 = vadd.f32 %v172, %v248
    %250 = vdwg.mxu0
    %251 = vmatprep.subr.mxu0 0.0
    %252 = vmatpush1.msra.mxu0 %v67
    %253 = vmatprep.subr.mxu0 0.0
    %254 = vmatpush1.msra.mxu0 %v70
    %255 = vmatprep.subr.mxu0 0.0
    %256 = vmatpush1.msra.mxu0 %v73
    %257 = vmatprep.subr.mxu0 0.0
    %258 = vmatpush1.msra.mxu0 %v76
    %259 = vmatprep.subr.mxu0 0.0
    %260 = vmatpush1.msra.mxu0 %v79
    %261 = vmatprep.subr.mxu0 0.0
    %262 = vmatpush1.msra.mxu0 %v82
    %263 = vmatprep.subr.mxu0 0.0
    %264 = vmatpush1.msra.mxu0 %v85
    %265 = vmatprep.subr.mxu0 0.0
    %266 = vmatpush1.msra.mxu0 %v88
    %267 = vmatprep.subr.mxu0 0.0
    %268 = vmatpush1.msra.mxu0 %v91
    %269 = vmatprep.subr.mxu0 0.0
    %270 = vmatpush1.msra.mxu0 %v94
    %271 = vmatprep.subr.mxu0 0.0
    %272 = vmatpush1.msra.mxu0 %v97
    %273 = vmatprep.subr.mxu0 0.0
    %274 = vmatpush1.msra.mxu0 %v100
    %275 = vmatprep.subr.mxu0 0.0
    %276 = vmatpush1.msra.mxu0 %v103
    %277 = vmatprep.subr.mxu0 0.0
    %278 = vmatpush1.msra.mxu0 %v106
    %279 = vmatprep.subr.mxu0 0.0
    %280 = vmatpush1.msra.mxu0 %v109
    %281 = vmatprep.subr.mxu0 0.0
    %282 = vmatpush1.msra.mxu0 %v112
    %283 = vmatprep.subr.mxu0 0.0
    %284 = vmatpush1.msra.mxu0 0.0
    %285 = vmatprep.subr.mxu0 0.0
    %286 = vmatpush1.msra.mxu0 0.0
    %287 = vmatprep.subr.mxu0 0.0
    %288 = vmatpush1.msra.mxu0 0.0
    %289 = vmatprep.subr.mxu0 0.0
    %290 = vmatpush1.msra.mxu0 0.0
    %291 = vmatprep.subr.mxu0 0.0
    %292 = vmatpush1.msra.mxu0 0.0
    %293 = vmatprep.subr.mxu0 0.0
    %294 = vmatpush1.msra.mxu0 0.0
    %295 = vmatprep.subr.mxu0 0.0
    %296 = vmatpush1.msra.mxu0 0.0
    %297 = vmatprep.subr.mxu0 0.0
    %298 = vmatpush1.msra.mxu0 0.0
    %299 = vmatprep.subr.mxu0 0.0
    %300 = vmatpush1.msra.mxu0 0.0
    %301 = vmatprep.subr.mxu0 0.0
    %302 = vmatpush1.msra.mxu0 0.0
    %303 = vmatprep.subr.mxu0 0.0
    %304 = vmatpush1.msra.mxu0 0.0
    %305 = vmatprep.subr.mxu0 0.0
    %306 = vmatpush1.msra.mxu0 0.0
    %307 = vmatprep.subr.mxu0 0.0
    %308 = vmatpush1.msra.mxu0 0.0
    %309 = vmatprep.subr.mxu0 0.0
    %310 = vmatpush1.msra.mxu0 0.0
    %311 = vmatprep.subr.mxu0 0.0
    %312 = vmatpush1.msra.mxu0 0.0
    %313 = vmatprep.subr.mxu0 0.0
    %314 = vmatpush1.msra.mxu0 0.0
    %315 = vmatprep.mubr.f32.mxu0 0.0
    %316 = vmatmul.mubr.f32.gmra.mrb[0].mxu0 %v163
    %v317 = vpop.f32.mrb[0].mxu0
    %v318 = vadd.f32 %v176, %v317
    %v319 = vpop.f32.mrb[0].mxu0
    %320 = vdwg.mxu0
    %v322 = vlaneseq
    %v323 = vshrl.u32 %v322, 7
    %v324 = vsub.s32 0, %v323
    %v325 = vrot.slane %v162, %v324
    %v326 = vlaneseq
    %v327 = vshrl.u32 %v326, 7
    %v328 = vsub.s32 1, %v327
    %v329 = vrot.slane %v162, %v328
    %v330 = vlaneseq
    %v331 = vshrl.u32 %v330, 7
    %v332 = vsub.s32 2, %v331
    %v333 = vrot.slane %v162, %v332
    %337 = vmatprep.subr.mxu0 %v114
    %338 = vmatpush1.msra.mxu0 %v113
    %339 = vmatprep.subr.mxu0 %v117
    %340 = vmatpush1.msra.mxu0 %v116
    %341 = vmatprep.subr.mxu0 %v120
    %342 = vmatpush1.msra.mxu0 %v119
    %343 = vmatprep.subr.mxu0 %v123
    %344 = vmatpush1.msra.mxu0 %v122
    %345 = vmatprep.subr.mxu0 %v126
    %346 = vmatpush1.msra.mxu0 %v125
    %347 = vmatprep.subr.mxu0 %v129
    %348 = vmatpush1.msra.mxu0 %v128
    %349 = vmatprep.subr.mxu0 %v132
    %350 = vmatpush1.msra.mxu0 %v131
    %351 = vmatprep.subr.mxu0 %v135
    %352 = vmatpush1.msra.mxu0 %v134
    %353 = vmatprep.subr.mxu0 %v138
    %354 = vmatpush1.msra.mxu0 %v137
    %355 = vmatprep.subr.mxu0 %v141
    %356 = vmatpush1.msra.mxu0 %v140
    %357 = vmatprep.subr.mxu0 %v144
    %358 = vmatpush1.msra.mxu0 %v143
    %359 = vmatprep.subr.mxu0 %v147
    %360 = vmatpush1.msra.mxu0 %v146
    %361 = vmatprep.subr.mxu0 %v150
    %362 = vmatpush1.msra.mxu0 %v149
    %363 = vmatprep.subr.mxu0 %v153
    %364 = vmatpush1.msra.mxu0 %v152
    %365 = vmatprep.subr.mxu0 %v156
    %366 = vmatpush1.msra.mxu0 %v155
    %367 = vmatprep.subr.mxu0 %v159
    %368 = vmatpush1.msra.mxu0 %v158
    %369 = vmatprep.subr.mxu0 0.0
    %370 = vmatpush1.msra.mxu0 0.0
    %371 = vmatprep.subr.mxu0 0.0
    %372 = vmatpush1.msra.mxu0 0.0
    %373 = vmatprep.subr.mxu0 0.0
    %374 = vmatpush1.msra.mxu0 0.0
    %375 = vmatprep.subr.mxu0 0.0
    %376 = vmatpush1.msra.mxu0 0.0
    %377 = vmatprep.subr.mxu0 0.0
    %378 = vmatpush1.msra.mxu0 0.0
    %379 = vmatprep.subr.mxu0 0.0
    %380 = vmatpush1.msra.mxu0 0.0
    %381 = vmatprep.subr.mxu0 0.0
    %382 = vmatpush1.msra.mxu0 0.0
    %383 = vmatprep.subr.mxu0 0.0
    %384 = vmatpush1.msra.mxu0 0.0
    %385 = vmatprep.subr.mxu0 0.0
    %386 = vmatpush1.msra.mxu0 0.0
    %387 = vmatprep.subr.mxu0 0.0
    %388 = vmatpush1.msra.mxu0 0.0
    %389 = vmatprep.subr.mxu0 0.0
    %390 = vmatpush1.msra.mxu0 0.0
    %391 = vmatprep.subr.mxu0 0.0
    %392 = vmatpush1.msra.mxu0 0.0
    %393 = vmatprep.subr.mxu0 0.0
    %394 = vmatpush1.msra.mxu0 0.0
    %395 = vmatprep.subr.mxu0 0.0
    %396 = vmatpush1.msra.mxu0 0.0
    %397 = vmatprep.subr.mxu0 0.0
    %398 = vmatpush1.msra.mxu0 0.0
    %399 = vmatprep.subr.mxu0 0.0
    %400 = vmatpush1.msra.mxu0 0.0
    %401 = vmatprep.mubr.f32.mxu0 0.0
    %402 = vmatmul.mubr.f32.gmra.mrb[0].mxu0 0.0
    %v403 = vpop.f32.mrb[0].mxu0
    %v404 = vadd.f32 %v325, %v403
    %v405 = vpop.f32.mrb[0].mxu0
    %v406 = vadd.f32 %v329, %v405
    %407 = vdwg.mxu0
    %408 = vmatprep.subr.mxu0 0.0
    %409 = vmatpush1.msra.mxu0 %v115
    %410 = vmatprep.subr.mxu0 0.0
    %411 = vmatpush1.msra.mxu0 %v118
    %412 = vmatprep.subr.mxu0 0.0
    %413 = vmatpush1.msra.mxu0 %v121
    %414 = vmatprep.subr.mxu0 0.0
    %415 = vmatpush1.msra.mxu0 %v124
    %416 = vmatprep.subr.mxu0 0.0
    %417 = vmatpush1.msra.mxu0 %v127
    %418 = vmatprep.subr.mxu0 0.0
    %419 = vmatpush1.msra.mxu0 %v130
    %420 = vmatprep.subr.mxu0 0.0
    %421 = vmatpush1.msra.mxu0 %v133
    %422 = vmatprep.subr.mxu0 0.0
    %423 = vmatpush1.msra.mxu0 %v136
    %424 = vmatprep.subr.mxu0 0.0
    %425 = vmatpush1.msra.mxu0 %v139
    %426 = vmatprep.subr.mxu0 0.0
    %427 = vmatpush1.msra.mxu0 %v142
    %428 = vmatprep.subr.mxu0 0.0
    %429 = vmatpush1.msra.mxu0 %v145
    %430 = vmatprep.subr.mxu0 0.0
    %431 = vmatpush1.msra.mxu0 %v148
    %432 = vmatprep.subr.mxu0 0.0
    %433 = vmatpush1.msra.mxu0 %v151
    %434 = vmatprep.subr.mxu0 0.0
    %435 = vmatpush1.msra.mxu0 %v154
    %436 = vmatprep.subr.mxu0 0.0
    %437 = vmatpush1.msra.mxu0 %v157
    %438 = vmatprep.subr.mxu0 0.0
    %439 = vmatpush1.msra.mxu0 %v160
    %440 = vmatprep.subr.mxu0 0.0
    %441 = vmatpush1.msra.mxu0 0.0
    %442 = vmatprep.subr.mxu0 0.0
    %443 = vmatpush1.msra.mxu0 0.0
    %444 = vmatprep.subr.mxu0 0.0
    %445 = vmatpush1.msra.mxu0 0.0
    %446 = vmatprep.subr.mxu0 0.0
    %447 = vmatpush1.msra.mxu0 0.0
    %448 = vmatprep.subr.mxu0 0.0
    %449 = vmatpush1.msra.mxu0 0.0
    %450 = vmatprep.subr.mxu0 0.0
    %451 = vmatpush1.msra.mxu0 0.0
    %452 = vmatprep.subr.mxu0 0.0
    %453 = vmatpush1.msra.mxu0 0.0
    %454 = vmatprep.subr.mxu0 0.0
    %455 = vmatpush1.msra.mxu0 0.0
    %456 = vmatprep.subr.mxu0 0.0
    %457 = vmatpush1.msra.mxu0 0.0
    %458 = vmatprep.subr.mxu0 0.0
    %459 = vmatpush1.msra.mxu0 0.0
    %460 = vmatprep.subr.mxu0 0.0
    %461 = vmatpush1.msra.mxu0 0.0
    %462 = vmatprep.subr.mxu0 0.0
    %463 = vmatpush1.msra.mxu0 0.0
    %464 = vmatprep.subr.mxu0 0.0
    %465 = vmatpush1.msra.mxu0 0.0
    %466 = vmatprep.subr.mxu0 0.0
    %467 = vmatpush1.msra.mxu0 0.0
    %468 = vmatprep.subr.mxu0 0.0
    %469 = vmatpush1.msra.mxu0 0.0
    %470 = vmatprep.subr.mxu0 0.0
    %471 = vmatpush1.msra.mxu0 0.0
    %472 = vmatprep.mubr.f32.mxu0 0.0
    %473 = vmatmul.mubr.f32.gmra.mrb[0].mxu0 0.0
    %v474 = vpop.f32.mrb[0].mxu0
    %v475 = vadd.f32 %v333, %v474
    %v476 = vpop.f32.mrb[0].mxu0
    %477 = vdwg.mxu0
    %v478 = vadd.f32 %v247, %v404
    %v479 = vxor.u32 %v478, 2147483648
    %v480 = vmul.f32 %v479, 1.442695
    %v481 = vpow.pop %v480
    %v482 = vadd.f32 %v481, 1.0
    %v483 = vrcp.pop %v482
    %v484 = vmul.f32 1.0, %v483
    %v485 = vadd.f32 %v249, %v406
    %v486 = vxor.u32 %v485, 2147483648
    %v487 = vmul.f32 %v486, 1.442695
    %v488 = vpow.pop %v487
    %v489 = vadd.f32 %v488, 1.0
    %v490 = vrcp.pop %v489
    %v491 = vmul.f32 1.0, %v490
    %v492 = vmul.f32 %v484, %v475
    %v493 = vadd.f32 %v318, %v492
    %v494 = vtanh.pop %v493
    %v495 = vsub.f32 1.0, %v491
    %v496 = vmul.f32 %v495, %v494
    %v497 = vmul.f32 %v491, 0.0
    %v498 = vadd.f32 %v496, %v497
    %499 = vst [vmem:[#allocation8] sm:$0xff] %v498
    %s500 = scalar_lea.vmem [#allocation2], 8
    %v501 = vld [vmem:[%s500] sm:$0xff]
    %502 = vmatprep.subr.mxu0 %v66
    %503 = vmatpush1.msra.mxu0 %v65
    %504 = vmatprep.subr.mxu0 %v69
    %505 = vmatpush1.msra.mxu0 %v68
    %506 = vmatprep.subr.mxu0 %v72
    %507 = vmatpush1.msra.mxu0 %v71
    %508 = vmatprep.subr.mxu0 %v75
    %509 = vmatpush1.msra.mxu0 %v74
    %510 = vmatprep.subr.mxu0 %v78
    %511 = vmatpush1.msra.mxu0 %v77
    %512 = vmatprep.subr.mxu0 %v81
    %513 = vmatpush1.msra.mxu0 %v80
    %514 = vmatprep.subr.mxu0 %v84
    %515 = vmatpush1.msra.mxu0 %v83
    %516 = vmatprep.subr.mxu0 %v87
    %517 = vmatpush1.msra.mxu0 %v86
    %518 = vmatprep.subr.mxu0 %v90
    %519 = vmatpush1.msra.mxu0 %v89
    %520 = vmatprep.subr.mxu0 %v93
    %521 = vmatpush1.msra.mxu0 %v92
    %522 = vmatprep.subr.mxu0 %v96
    %523 = vmatpush1.msra.mxu0 %v95
    %524 = vmatprep.subr.mxu0 %v99
    %525 = vmatpush1.msra.mxu0 %v98
    %526 = vmatprep.subr.mxu0 %v102
    %527 = vmatpush1.msra.mxu0 %v101
    %528 = vmatprep.subr.mxu0 %v105
    %529 = vmatpush1.msra.mxu0 %v104
    %530 = vmatprep.subr.mxu0 %v108
    %531 = vmatpush1.msra.mxu0 %v107
    %532 = vmatprep.subr.mxu0 %v111
    %533 = vmatpush1.msra.mxu0 %v110
    %534 = vmatprep.subr.mxu0 0.0
    %535 = vmatpush1.msra.mxu0 0.0
    %536 = vmatprep.subr.mxu0 0.0
    %537 = vmatpush1.msra.mxu0 0.0
    %538 = vmatprep.subr.mxu0 0.0
    %539 = vmatpush1.msra.mxu0 0.0
    %540 = vmatprep.subr.mxu0 0.0
    %541 = vmatpush1.msra.mxu0 0.0
    %542 = vmatprep.subr.mxu0 0.0
    %543 = vmatpush1.msra.mxu0 0.0
    %544 = vmatprep.subr.mxu0 0.0
    %545 = vmatpush1.msra.mxu0 0.0
    %546 = vmatprep.subr.mxu0 0.0
    %547 = vmatpush1.msra.mxu0 0.0
    %548 = vmatprep.subr.mxu0 0.0
    %549 = vmatpush1.msra.mxu0 0.0
    %550 = vmatprep.subr.mxu0 0.0
    %551 = vmatpush1.msra.mxu0 0.0
    %552 = vmatprep.subr.mxu0 0.0
    %553 = vmatpush1.msra.mxu0 0.0
    %554 = vmatprep.subr.mxu0 0.0
    %555 = vmatpush1.msra.mxu0 0.0
    %556 = vmatprep.subr.mxu0 0.0
    %557 = vmatpush1.msra.mxu0 0.0
    %558 = vmatprep.subr.mxu0 0.0
    %559 = vmatpush1.msra.mxu0 0.0
    %560 = vmatprep.subr.mxu0 0.0
    %561 = vmatpush1.msra.mxu0 0.0
    %562 = vmatprep.subr.mxu0 0.0
    %563 = vmatpush1.msra.mxu0 0.0
    %564 = vmatprep.subr.mxu0 0.0
    %565 = vmatpush1.msra.mxu0 0.0
    %566 = vmatprep.mubr.f32.mxu0 0.0
    %567 = vmatmul.mubr.f32.gmra.mrb[0].mxu0 %v501
    %v568 = vpop.f32.mrb[0].mxu0
    %v569 = vadd.f32 %v168, %v568
    %v570 = vpop.f32.mrb[0].mxu0
    %v571 = vadd.f32 %v172, %v570
    %572 = vdwg.mxu0
    %573 = vmatprep.subr.mxu0 0.0
    %574 = vmatpush1.msra.mxu0 %v67
    %575 = vmatprep.subr.mxu0 0.0
    %576 = vmatpush1.msra.mxu0 %v70
    %577 = vmatprep.subr.mxu0 0.0
    %578 = vmatpush1.msra.mxu0 %v73
    %579 = vmatprep.subr.mxu0 0.0
    %580 = vmatpush1.msra.mxu0 %v76
    %581 = vmatprep.subr.mxu0 0.0
    %582 = vmatpush1.msra.mxu0 %v79
    %583 = vmatprep.subr.mxu0 0.0
    %584 = vmatpush1.msra.mxu0 %v82
    %585 = vmatprep.subr.mxu0 0.0
    %586 = vmatpush1.msra.mxu0 %v85
    %587 = vmatprep.subr.mxu0 0.0
    %588 = vmatpush1.msra.mxu0 %v88
    %589 = vmatprep.subr.mxu0 0.0
    %590 = vmatpush1.msra.mxu0 %v91
    %591 = vmatprep.subr.mxu0 0.0
    %592 = vmatpush1.msra.mxu0 %v94
    %593 = vmatprep.subr.mxu0 0.0
    %594 = vmatpush1.msra.mxu0 %v97
    %595 = vmatprep.subr.mxu0 0.0
    %596 = vmatpush1.msra.mxu0 %v100
    %597 = vmatprep.subr.mxu0 0.0
    %598 = vmatpush1.msra.mxu0 %v103
    %599 = vmatprep.subr.mxu0 0.0
    %600 = vmatpush1.msra.mxu0 %v106
    %601 = vmatprep.subr.mxu0 0.0
    %602 = vmatpush1.msra.mxu0 %v109
    %603 = vmatprep.subr.mxu0 0.0
    %604 = vmatpush1.msra.mxu0 %v112
    %605 = vmatprep.subr.mxu0 0.0
    %606 = vmatpush1.msra.mxu0 0.0
    %607 = vmatprep.subr.mxu0 0.0
    %608 = vmatpush1.msra.mxu0 0.0
    %609 = vmatprep.subr.mxu0 0.0
    %610 = vmatpush1.msra.mxu0 0.0
    %611 = vmatprep.subr.mxu0 0.0
    %612 = vmatpush1.msra.mxu0 0.0
    %613 = vmatprep.subr.mxu0 0.0
    %614 = vmatpush1.msra.mxu0 0.0
    %615 = vmatprep.subr.mxu0 0.0
    %616 = vmatpush1.msra.mxu0 0.0
    %617 = vmatprep.subr.mxu0 0.0
    %618 = vmatpush1.msra.mxu0 0.0
    %619 = vmatprep.subr.mxu0 0.0
    %620 = vmatpush1.msra.mxu0 0.0
    %621 = vmatprep.subr.mxu0 0.0
    %622 = vmatpush1.msra.mxu0 0.0
    %623 = vmatprep.subr.mxu0 0.0
    %624 = vmatpush1.msra.mxu0 0.0
    %625 = vmatprep.subr.mxu0 0.0
    %626 = vmatpush1.msra.mxu0 0.0
    %627 = vmatprep.subr.mxu0 0.0
    %628 = vmatpush1.msra.mxu0 0.0
    %629 = vmatprep.subr.mxu0 0.0
    %630 = vmatpush1.msra.mxu0 0.0
    %631 = vmatprep.subr.mxu0 0.0
    %632 = vmatpush1.msra.mxu0 0.0
    %633 = vmatprep.subr.mxu0 0.0
    %634 = vmatpush1.msra.mxu0 0.0
    %635 = vmatprep.subr.mxu0 0.0
    %636 = vmatpush1.msra.mxu0 0.0
    %637 = vmatprep.mubr.f32.mxu0 0.0
    %638 = vmatmul.mubr.f32.gmra.mrb[0].mxu0 %v501
    %v639 = vpop.f32.mrb[0].mxu0
    %v640 = vadd.f32 %v176, %v639
    %v641 = vpop.f32.mrb[0].mxu0
    %642 = vdwg.mxu0
    %643 = vmatprep.subr.mxu0 %v114
    %644 = vmatpush1.msra.mxu0 %v113
    %645 = vmatprep.subr.mxu0 %v117
    %646 = vmatpush1.msra.mxu0 %v116
    %647 = vmatprep.subr.mxu0 %v120
    %648 = vmatpush1.msra.mxu0 %v119
    %649 = vmatprep.subr.mxu0 %v123
    %650 = vmatpush1.msra.mxu0 %v122
    %651 = vmatprep.subr.mxu0 %v126
    %652 = vmatpush1.msra.mxu0 %v125
    %653 = vmatprep.subr.mxu0 %v129
    %654 = vmatpush1.msra.mxu0 %v128
    %655 = vmatprep.subr.mxu0 %v132
    %656 = vmatpush1.msra.mxu0 %v131
    %657 = vmatprep.subr.mxu0 %v135
    %658 = vmatpush1.msra.mxu0 %v134
    %659 = vmatprep.subr.mxu0 %v138
    %660 = vmatpush1.msra.mxu0 %v137
    %661 = vmatprep.subr.mxu0 %v141
    %662 = vmatpush1.msra.mxu0 %v140
    %663 = vmatprep.subr.mxu0 %v144
    %664 = vmatpush1.msra.mxu0 %v143
    %665 = vmatprep.subr.mxu0 %v147
    %666 = vmatpush1.msra.mxu0 %v146
    %667 = vmatprep.subr.mxu0 %v150
    %668 = vmatpush1.msra.mxu0 %v149
    %669 = vmatprep.subr.mxu0 %v153
    %670 = vmatpush1.msra.mxu0 %v152
    %671 = vmatprep.subr.mxu0 %v156
    %672 = vmatpush1.msra.mxu0 %v155
    %673 = vmatprep.subr.mxu0 %v159
    %674 = vmatpush1.msra.mxu0 %v158
    %675 = vmatprep.subr.mxu0 0.0
    %676 = vmatpush1.msra.mxu0 0.0
    %677 = vmatprep.subr.mxu0 0.0
    %678 = vmatpush1.msra.mxu0 0.0
    %679 = vmatprep.subr.mxu0 0.0
    %680 = vmatpush1.msra.mxu0 0.0
    %681 = vmatprep.subr.mxu0 0.0
    %682 = vmatpush1.msra.mxu0 0.0
    %683 = vmatprep.subr.mxu0 0.0
    %684 = vmatpush1.msra.mxu0 0.0
    %685 = vmatprep.subr.mxu0 0.0
    %686 = vmatpush1.msra.mxu0 0.0
    %687 = vmatprep.subr.mxu0 0.0
    %688 = vmatpush1.msra.mxu0 0.0
    %689 = vmatprep.subr.mxu0 0.0
    %690 = vmatpush1.msra.mxu0 0.0
    %691 = vmatprep.subr.mxu0 0.0
    %692 = vmatpush1.msra.mxu0 0.0
    %693 = vmatprep.subr.mxu0 0.0
    %694 = vmatpush1.msra.mxu0 0.0
    %695 = vmatprep.subr.mxu0 0.0
    %696 = vmatpush1.msra.mxu0 0.0
    %697 = vmatprep.subr.mxu0 0.0
    %698 = vmatpush1.msra.mxu0 0.0
    %699 = vmatprep.subr.mxu0 0.0
    %700 = vmatpush1.msra.mxu0 0.0
    %701 = vmatprep.subr.mxu0 0.0
    %702 = vmatpush1.msra.mxu0 0.0
    %703 = vmatprep.subr.mxu0 0.0
    %704 = vmatpush1.msra.mxu0 0.0
    %705 = vmatprep.subr.mxu0 0.0
    %706 = vmatpush1.msra.mxu0 0.0
    %707 = vmatprep.mubr.f32.mxu0 0.0
    %708 = vmatmul.mubr.f32.gmra.mrb[0].mxu0 %v498
    %v709 = vpop.f32.mrb[0].mxu0
    %v710 = vadd.f32 %v325, %v709
    %v711 = vpop.f32.mrb[0].mxu0
    %v712 = vadd.f32 %v329, %v711
    %713 = vdwg.mxu0
    %714 = vmatprep.subr.mxu0 0.0
    %715 = vmatpush1.msra.mxu0 %v115
    %716 = vmatprep.subr.mxu0 0.0
    %717 = vmatpush1.msra.mxu0 %v118
    %718 = vmatprep.subr.mxu0 0.0
    %719 = vmatpush1.msra.mxu0 %v121
    %720 = vmatprep.subr.mxu0 0.0
    %721 = vmatpush1.msra.mxu0 %v124
    %722 = vmatprep.subr.mxu0 0.0
    %723 = vmatpush1.msra.mxu0 %v127
    %724 = vmatprep.subr.mxu0 0.0
    %725 = vmatpush1.msra.mxu0 %v130
    %726 = vmatprep.subr.mxu0 0.0
    %727 = vmatpush1.msra.mxu0 %v133
    %728 = vmatprep.subr.mxu0 0.0
    %729 = vmatpush1.msra.mxu0 %v136
    %730 = vmatprep.subr.mxu0 0.0
    %731 = vmatpush1.msra.mxu0 %v139
    %732 = vmatprep.subr.mxu0 0.0
    %733 = vmatpush1.msra.mxu0 %v142
    %734 = vmatprep.subr.mxu0 0.0
    %735 = vmatpush1.msra.mxu0 %v145
    %736 = vmatprep.subr.mxu0 0.0
    %737 = vmatpush1.msra.mxu0 %v148
    %738 = vmatprep.subr.mxu0 0.0
    %739 = vmatpush1.msra.mxu0 %v151
    %740 = vmatprep.subr.mxu0 0.0
    %741 = vmatpush1.msra.mxu0 %v154
    %742 = vmatprep.subr.mxu0 0.0
    %743 = vmatpush1.msra.mxu0 %v157
    %744 = vmatprep.subr.mxu0 0.0
    %745 = vmatpush1.msra.mxu0 %v160
    %746 = vmatprep.subr.mxu0 0.0
    %747 = vmatpush1.msra.mxu0 0.0
    %748 = vmatprep.subr.mxu0 0.0
    %749 = vmatpush1.msra.mxu0 0.0
    %750 = vmatprep.subr.mxu0 0.0
    %751 = vmatpush1.msra.mxu0 0.0
    %752 = vmatprep.subr.mxu0 0.0
    %753 = vmatpush1.msra.mxu0 0.0
    %754 = vmatprep.subr.mxu0 0.0
    %755 = vmatpush1.msra.mxu0 0.0
    %756 = vmatprep.subr.mxu0 0.0
    %757 = vmatpush1.msra.mxu0 0.0
    %758 = vmatprep.subr.mxu0 0.0
    %759 = vmatpush1.msra.mxu0 0.0
    %760 = vmatprep.subr.mxu0 0.0
    %761 = vmatpush1.msra.mxu0 0.0
    %762 = vmatprep.subr.mxu0 0.0
    %763 = vmatpush1.msra.mxu0 0.0
    %764 = vmatprep.subr.mxu0 0.0
    %765 = vmatpush1.msra.mxu0 0.0
    %766 = vmatprep.subr.mxu0 0.0
    %767 = vmatpush1.msra.mxu0 0.0
    %768 = vmatprep.subr.mxu0 0.0
    %769 = vmatpush1.msra.mxu0 0.0
    %770 = vmatprep.subr.mxu0 0.0
    %771 = vmatpush1.msra.mxu0 0.0
    %772 = vmatprep.subr.mxu0 0.0
    %773 = vmatpush1.msra.mxu0 0.0
    %774 = vmatprep.subr.mxu0 0.0
    %775 = vmatpush1.msra.mxu0 0.0
    %776 = vmatprep.subr.mxu0 0.0
    %777 = vmatpush1.msra.mxu0 0.0
    %778 = vmatprep.mubr.f32.mxu0 0.0
    %779 = vmatmul.mubr.f32.gmra.mrb[0].mxu0 %v498
    %v780 = vpop.f32.mrb[0].mxu0
    %v781 = vadd.f32 %v333, %v780
    %v782 = vpop.f32.mrb[0].mxu0
    %783 = vdwg.mxu0
    %v784 = vadd.f32 %v569, %v710
    %v785 = vxor.u32 %v784, 2147483648
    %v786 = vmul.f32 %v785, 1.442695
    %v787 = vpow.pop %v786
    %v788 = vadd.f32 %v787, 1.0
    %v789 = vrcp.pop %v788
    %v790 = vmul.f32 1.0, %v789
    %v791 = vadd.f32 %v571, %v712
    %v792 = vxor.u32 %v791, 2147483648
    %v793 = vmul.f32 %v792, 1.442695
    %v794 = vpow.pop %v793
    %v795 = vadd.f32 %v794, 1.0
    %v796 = vrcp.pop %v795
    %v797 = vmul.f32 1.0, %v796
    %v798 = vmul.f32 %v790, %v781
    %v799 = vadd.f32 %v640, %v798
    %v800 = vtanh.pop %v799
    %v801 = vsub.f32 1.0, %v797
    %v802 = vmul.f32 %v801, %v800
    %v803 = vmul.f32 %v797, %v498
    %v804 = vadd.f32 %v802, %v803
    %s805 = scalar_lea.vmem [#allocation8], 8
    %806 = vst [vmem:[%s805] sm:$0xff] %v804
    %s807 = scalar_lea.vmem [#allocation2], 16
    %v808 = vld [vmem:[%s807] sm:$0xff]
    %809 = vmatprep.subr.mxu0 %v66
    %810 = vmatpush1.msra.mxu0 %v65
    %811 = vmatprep.subr.mxu0 %v69
    %812 = vmatpush1.msra.mxu0 %v68
    %813 = vmatprep.subr.mxu0 %v72
    %814 = vmatpush1.msra.mxu0 %v71
    %815 = vmatprep.subr.mxu0 %v75
    %816 = vmatpush1.msra.mxu0 %v74
    %817 = vmatprep.subr.mxu0 %v78
    %818 = vmatpush1.msra.mxu0 %v77
    %819 = vmatprep.subr.mxu0 %v81
    %820 = vmatpush1.msra.mxu0 %v80
    %821 = vmatprep.subr.mxu0 %v84
    %822 = vmatpush1.msra.mxu0 %v83
    %823 = vmatprep.subr.mxu0 %v87
    %824 = vmatpush1.msra.mxu0 %v86
    %825 = vmatprep.subr.mxu0 %v90
    %826 = vmatpush1.msra.mxu0 %v89
    %827 = vmatprep.subr.mxu0 %v93
    %828 = vmatpush1.msra.mxu0 %v92
    %829 = vmatprep.subr.mxu0 %v96
    %830 = vmatpush1.msra.mxu0 %v95
    %831 = vmatprep.subr.mxu0 %v99
    %832 = vmatpush1.msra.mxu0 %v98
    %833 = vmatprep.subr.mxu0 %v102
    %834 = vmatpush1.msra.mxu0 %v101
    %835 = vmatprep.subr.mxu0 %v105
    %836 = vmatpush1.msra.mxu0 %v104
    %837 = vmatprep.subr.mxu0 %v108
    %838 = vmatpush1.msra.mxu0 %v107
    %839 = vmatprep.subr.mxu0 %v111
    %840 = vmatpush1.msra.mxu0 %v110
    %841 = vmatprep.subr.mxu0 0.0
    %842 = vmatpush1.msra.mxu0 0.0
    %843 = vmatprep.subr.mxu0 0.0
    %844 = vmatpush1.msra.mxu0 0.0
    %845 = vmatprep.subr.mxu0 0.0
    %846 = vmatpush1.msra.mxu0 0.0
    %847 = vmatprep.subr.mxu0 0.0
    %848 = vmatpush1.msra.mxu0 0.0
    %849 = vmatprep.subr.mxu0 0.0
    %850 = vmatpush1.msra.mxu0 0.0
    %851 = vmatprep.subr.mxu0 0.0
    %852 = vmatpush1.msra.mxu0 0.0
    %853 = vmatprep.subr.mxu0 0.0
    %854 = vmatpush1.msra.mxu0 0.0
    %855 = vmatprep.subr.mxu0 0.0
    %856 = vmatpush1.msra.mxu0 0.0
    %857 = vmatprep.subr.mxu0 0.0
    %858 = vmatpush1.msra.mxu0 0.0
    %859 = vmatprep.subr.mxu0 0.0
    %860 = vmatpush1.msra.mxu0 0.0
    %861 = vmatprep.subr.mxu0 0.0
    %862 = vmatpush1.msra.mxu0 0.0
    %863 = vmatprep.subr.mxu0 0.0
    %864 = vmatpush1.msra.mxu0 0.0
    %865 = vmatprep.subr.mxu0 0.0
    %866 = vmatpush1.msra.mxu0 0.0
    %867 = vmatprep.subr.mxu0 0.0
    %868 = vmatpush1.msra.mxu0 0.0
    %869 = vmatprep.subr.mxu0 0.0
    %870 = vmatpush1.msra.mxu0 0.0
    %871 = vmatprep.subr.mxu0 0.0
    %872 = vmatpush1.msra.mxu0 0.0
    %873 = vmatprep.mubr.f32.mxu0 0.0
    %874 = vmatmul.mubr.f32.gmra.mrb[0].mxu0 %v808
    %v875 = vpop.f32.mrb[0].mxu0
    %v876 = vadd.f32 %v168, %v875
    %v877 = vpop.f32.mrb[0].mxu0
    %v878 = vadd.f32 %v172, %v877
    %879 = vdwg.mxu0
    %880 = vmatprep.subr.mxu0 0.0
    %881 = vmatpush1.msra.mxu0 %v67
    %882 = vmatprep.subr.mxu0 0.0
    %883 = vmatpush1.msra.mxu0 %v70
    %884 = vmatprep.subr.mxu0 0.0
    %885 = vmatpush1.msra.mxu0 %v73
    %886 = vmatprep.subr.mxu0 0.0
    %887 = vmatpush1.msra.mxu0 %v76
    %888 = vmatprep.subr.mxu0 0.0
    %889 = vmatpush1.msra.mxu0 %v79
    %890 = vmatprep.subr.mxu0 0.0
    %891 = vmatpush1.msra.mxu0 %v82
    %892 = vmatprep.subr.mxu0 0.0
    %893 = vmatpush1.msra.mxu0 %v85
    %894 = vmatprep.subr.mxu0 0.0
    %895 = vmatpush1.msra.mxu0 %v88
    %896 = vmatprep.subr.mxu0 0.0
    %897 = vmatpush1.msra.mxu0 %v91
    %898 = vmatprep.subr.mxu0 0.0
    %899 = vmatpush1.msra.mxu0 %v94
    %900 = vmatprep.subr.mxu0 0.0
    %901 = vmatpush1.msra.mxu0 %v97
    %902 = vmatprep.subr.mxu0 0.0
    %903 = vmatpush1.msra.mxu0 %v100
    %904 = vmatprep.subr.mxu0 0.0
    %905 = vmatpush1.msra.mxu0 %v103
    %906 = vmatprep.subr.mxu0 0.0
    %907 = vmatpush1.msra.mxu0 %v106
    %908 = vmatprep.subr.mxu0 0.0
    %909 = vmatpush1.msra.mxu0 %v109
    %910 = vmatprep.subr.mxu0 0.0
    %911 = vmatpush1.msra.mxu0 %v112
    %912 = vmatprep.subr.mxu0 0.0
    %913 = vmatpush1.msra.mxu0 0.0
    %914 = vmatprep.subr.mxu0 0.0
    %915 = vmatpush1.msra.mxu0 0.0
    %916 = vmatprep.subr.mxu0 0.0
    %917 = vmatpush1.msra.mxu0 0.0
    %918 = vmatprep.subr.mxu0 0.0
    %919 = vmatpush1.msra.mxu0 0.0
    %920 = vmatprep.subr.mxu0 0.0
    %921 = vmatpush1.msra.mxu0 0.0
    %922 = vmatprep.subr.mxu0 0.0
    %923 = vmatpush1.msra.mxu0 0.0
    %924 = vmatprep.subr.mxu0 0.0
    %925 = vmatpush1.msra.mxu0 0.0
    %926 = vmatprep.subr.mxu0 0.0
    %927 = vmatpush1.msra.mxu0 0.0
    %928 = vmatprep.subr.mxu0 0.0
    %929 = vmatpush1.msra.mxu0 0.0
    %930 = vmatprep.subr.mxu0 0.0
    %931 = vmatpush1.msra.mxu0 0.0
    %932 = vmatprep.subr.mxu0 0.0
    %933 = vmatpush1.msra.mxu0 0.0
    %934 = vmatprep.subr.mxu0 0.0
    %935 = vmatpush1.msra.mxu0 0.0
    %936 = vmatprep.subr.mxu0 0.0
    %937 = vmatpush1.msra.mxu0 0.0
    %938 = vmatprep.subr.mxu0 0.0
    %939 = vmatpush1.msra.mxu0 0.0
    %940 = vmatprep.subr.mxu0 0.0
    %941 = vmatpush1.msra.mxu0 0.0
    %942 = vmatprep.subr.mxu0 0.0
    %943 = vmatpush1.msra.mxu0 0.0
    %944 = vmatprep.mubr.f32.mxu0 0.0
    %945 = vmatmul.mubr.f32.gmra.mrb[0].mxu0 %v808
    %v946 = vpop.f32.mrb[0].mxu0
    %v947 = vadd.f32 %v176, %v946
    %v948 = vpop.f32.mrb[0].mxu0
    %949 = vdwg.mxu0
    %950 = vmatprep.subr.mxu0 %v114
    %951 = vmatpush1.msra.mxu0 %v113
    %952 = vmatprep.subr.mxu0 %v117
    %953 = vmatpush1.msra.mxu0 %v116
    %954 = vmatprep.subr.mxu0 %v120
    %955 = vmatpush1.msra.mxu0 %v119
    %956 = vmatprep.subr.mxu0 %v123
    %957 = vmatpush1.msra.mxu0 %v122
    %958 = vmatprep.subr.mxu0 %v126
    %959 = vmatpush1.msra.mxu0 %v125
    %960 = vmatprep.subr.mxu0 %v129
    %961 = vmatpush1.msra.mxu0 %v128
    %962 = vmatprep.subr.mxu0 %v132
    %963 = vmatpush1.msra.mxu0 %v131
    %964 = vmatprep.subr.mxu0 %v135
    %965 = vmatpush1.msra.mxu0 %v134
    %966 = vmatprep.subr.mxu0 %v138
    %967 = vmatpush1.msra.mxu0 %v137
    %968 = vmatprep.subr.mxu0 %v141
    %969 = vmatpush1.msra.mxu0 %v140
    %970 = vmatprep.subr.mxu0 %v144
    %971 = vmatpush1.msra.mxu0 %v143
    %972 = vmatprep.subr.mxu0 %v147
    %973 = vmatpush1.msra.mxu0 %v146
    %974 = vmatprep.subr.mxu0 %v150
    %975 = vmatpush1.msra.mxu0 %v149
    %976 = vmatprep.subr.mxu0 %v153
    %977 = vmatpush1.msra.mxu0 %v152
    %978 = vmatprep.subr.mxu0 %v156
    %979 = vmatpush1.msra.mxu0 %v155
    %980 = vmatprep.subr.mxu0 %v159
    %981 = vmatpush1.msra.mxu0 %v158
    %982 = vmatprep.subr.mxu0 0.0
    %983 = vmatpush1.msra.mxu0 0.0
    %984 = vmatprep.subr.mxu0 0.0
    %985 = vmatpush1.msra.mxu0 0.0
    %986 = vmatprep.subr.mxu0 0.0
    %987 = vmatpush1.msra.mxu0 0.0
    %988 = vmatprep.subr.mxu0 0.0
    %989 = vmatpush1.msra.mxu0 0.0
    %990 = vmatprep.subr.mxu0 0.0
    %991 = vmatpush1.msra.mxu0 0.0
    %992 = vmatprep.subr.mxu0 0.0
    %993 = vmatpush1.msra.mxu0 0.0
    %994 = vmatprep.subr.mxu0 0.0
    %995 = vmatpush1.msra.mxu0 0.0
    %996 = vmatprep.subr.mxu0 0.0
    %997 = vmatpush1.msra.mxu0 0.0
    %998 = vmatprep.subr.mxu0 0.0
    %999 = vmatpush1.msra.mxu0 0.0
    %1000 = vmatprep.subr.mxu0 0.0
    %1001 = vmatpush1.msra.mxu0 0.0
    %1002 = vmatprep.subr.mxu0 0.0
    %1003 = vmatpush1.msra.mxu0 0.0
    %1004 = vmatprep.subr.mxu0 0.0
    %1005 = vmatpush1.msra.mxu0 0.0
    %1006 = vmatprep.subr.mxu0 0.0
    %1007 = vmatpush1.msra.mxu0 0.0
    %1008 = vmatprep.subr.mxu0 0.0
    %1009 = vmatpush1.msra.mxu0 0.0
    %1010 = vmatprep.subr.mxu0 0.0
    %1011 = vmatpush1.msra.mxu0 0.0
    %1012 = vmatprep.subr.mxu0 0.0
    %1013 = vmatpush1.msra.mxu0 0.0
    %1014 = vmatprep.mubr.f32.mxu0 0.0
    %1015 = vmatmul.mubr.f32.gmra.mrb[0].mxu0 %v804
    %v1016 = vpop.f32.mrb[0].mxu0
    %v1017 = vadd.f32 %v325, %v1016
    %v1018 = vpop.f32.mrb[0].mxu0
    %v1019 = vadd.f32 %v329, %v1018
    %1020 = vdwg.mxu0
    %1021 = vmatprep.subr.mxu0 0.0
    %1022 = vmatpush1.msra.mxu0 %v115
    %1023 = vmatprep.subr.mxu0 0.0
    %1024 = vmatpush1.msra.mxu0 %v118
    %1025 = vmatprep.subr.mxu0 0.0
    %1026 = vmatpush1.msra.mxu0 %v121
    %1027 = vmatprep.subr.mxu0 0.0
    %1028 = vmatpush1.msra.mxu0 %v124
    %1029 = vmatprep.subr.mxu0 0.0
    %1030 = vmatpush1.msra.mxu0 %v127
    %1031 = vmatprep.subr.mxu0 0.0
    %1032 = vmatpush1.msra.mxu0 %v130
    %1033 = vmatprep.subr.mxu0 0.0
    %1034 = vmatpush1.msra.mxu0 %v133
    %1035 = vmatprep.subr.mxu0 0.0
    %1036 = vmatpush1.msra.mxu0 %v136
    %1037 = vmatprep.subr.mxu0 0.0
    %1038 = vmatpush1.msra.mxu0 %v139
    %1039 = vmatprep.subr.mxu0 0.0
    %1040 = vmatpush1.msra.mxu0 %v142
    %1041 = vmatprep.subr.mxu0 0.0
    %1042 = vmatpush1.msra.mxu0 %v145
    %1043 = vmatprep.subr.mxu0 0.0
    %1044 = vmatpush1.msra.mxu0 %v148
    %1045 = vmatprep.subr.mxu0 0.0
    %1046 = vmatpush1.msra.mxu0 %v151
    %1047 = vmatprep.subr.mxu0 0.0
    %1048 = vmatpush1.msra.mxu0 %v154
    %1049 = vmatprep.subr.mxu0 0.0
    %1050 = vmatpush1.msra.mxu0 %v157
    %1051 = vmatprep.subr.mxu0 0.0
    %1052 = vmatpush1.msra.mxu0 %v160
    %1053 = vmatprep.subr.mxu0 0.0
    %1054 = vmatpush1.msra.mxu0 0.0
    %1055 = vmatprep.subr.mxu0 0.0
    %1056 = vmatpush1.msra.mxu0 0.0
    %1057 = vmatprep.subr.mxu0 0.0
    %1058 = vmatpush1.msra.mxu0 0.0
    %1059 = vmatprep.subr.mxu0 0.0
    %1060 = vmatpush1.msra.mxu0 0.0
    %1061 = vmatprep.subr.mxu0 0.0
    %1062 = vmatpush1.msra.mxu0 0.0
    %1063 = vmatprep.subr.mxu0 0.0
    %1064 = vmatpush1.msra.mxu0 0.0
    %1065 = vmatprep.subr.mxu0 0.0
    %1066 = vmatpush1.msra.mxu0 0.0
    %1067 = vmatprep.subr.mxu0 0.0
    %1068 = vmatpush1.msra.mxu0 0.0
    %1069 = vmatprep.subr.mxu0 0.0
    %1070 = vmatpush1.msra.mxu0 0.0
    %1071 = vmatprep.subr.mxu0 0.0
    %1072 = vmatpush1.msra.mxu0 0.0
    %1073 = vmatprep.subr.mxu0 0.0
    %1074 = vmatpush1.msra.mxu0 0.0
    %1075 = vmatprep.subr.mxu0 0.0
    %1076 = vmatpush1.msra.mxu0 0.0
    %1077 = vmatprep.subr.mxu0 0.0
    %1078 = vmatpush1.msra.mxu0 0.0
    %1079 = vmatprep.subr.mxu0 0.0
    %1080 = vmatpush1.msra.mxu0 0.0
    %1081 = vmatprep.subr.mxu0 0.0
    %1082 = vmatpush1.msra.mxu0 0.0
    %1083 = vmatprep.subr.mxu0 0.0
    %1084 = vmatpush1.msra.mxu0 0.0
    %1085 = vmatprep.mubr.f32.mxu0 0.0
    %1086 = vmatmul.mubr.f32.gmra.mrb[0].mxu0 %v804
    %v1087 = vpop.f32.mrb[0].mxu0
    %v1088 = vadd.f32 %v333, %v1087
    %v1089 = vpop.f32.mrb[0].mxu0
    %1090 = vdwg.mxu0
    %v1091 = vadd.f32 %v876, %v1017
    %v1092 = vxor.u32 %v1091, 2147483648
    %v1093 = vmul.f32 %v1092, 1.442695
    %v1094 = vpow.pop %v1093
    %v1095 = vadd.f32 %v1094, 1.0
    %v1096 = vrcp.pop %v1095
    %v1097 = vmul.f32 1.0, %v1096
    %v1098 = vadd.f32 %v878, %v1019
    %v1099 = vxor.u32 %v1098, 2147483648
    %v1100 = vmul.f32 %v1099, 1.442695
    %v1101 = vpow.pop %v1100
    %v1102 = vadd.f32 %v1101, 1.0
    %v1103 = vrcp.pop %v1102
    %v1104 = vmul.f32 1.0, %v1103
    %v1105 = vmul.f32 %v1097, %v1088
    %v1106 = vadd.f32 %v947, %v1105
    %v1107 = vtanh.pop %v1106
    %v1108 = vsub.f32 1.0, %v1104
    %v1109 = vmul.f32 %v1108, %v1107
    %v1110 = vmul.f32 %v1104, %v804
    %v1111 = vadd.f32 %v1109, %v1110
    %s1112 = scalar_lea.vmem [#allocation8], 16
    %1113 = vst [vmem:[%s1112] sm:$0xff] %v1111
    %s1114 = scalar_lea.vmem [#allocation2], 24
    %v1115 = vld [vmem:[%s1114] sm:$0xff]
    %1116 = vmatprep.subr.mxu0 %v66
    %1117 = vmatpush1.msra.mxu0 %v65
    %1118 = vmatprep.subr.mxu0 %v69
    %1119 = vmatpush1.msra.mxu0 %v68
    %1120 = vmatprep.subr.mxu0 %v72
    %1121 = vmatpush1.msra.mxu0 %v71
    %1122 = vmatprep.subr.mxu0 %v75
    %1123 = vmatpush1.msra.mxu0 %v74
    %1124 = vmatprep.subr.mxu0 %v78
    %1125 = vmatpush1.msra.mxu0 %v77
    %1126 = vmatprep.subr.mxu0 %v81
    %1127 = vmatpush1.msra.mxu0 %v80
    %1128 = vmatprep.subr.mxu0 %v84
    %1129 = vmatpush1.msra.mxu0 %v83
    %1130 = vmatprep.subr.mxu0 %v87
    %1131 = vmatpush1.msra.mxu0 %v86
    %1132 = vmatprep.subr.mxu0 %v90
    %1133 = vmatpush1.msra.mxu0 %v89
    %1134 = vmatprep.subr.mxu0 %v93
    %1135 = vmatpush1.msra.mxu0 %v92
    %1136 = vmatprep.subr.mxu0 %v96
    %1137 = vmatpush1.msra.mxu0 %v95
    %1138 = vmatprep.subr.mxu0 %v99
    %1139 = vmatpush1.msra.mxu0 %v98
    %1140 = vmatprep.subr.mxu0 %v102
    %1141 = vmatpush1.msra.mxu0 %v101
    %1142 = vmatprep.subr.mxu0 %v105
    %1143 = vmatpush1.msra.mxu0 %v104
    %1144 = vmatprep.subr.mxu0 %v108
    %1145 = vmatpush1.msra.mxu0 %v107
    %1146 = vmatprep.subr.mxu0 %v111
    %1147 = vmatpush1.msra.mxu0 %v110
    %1148 = vmatprep.subr.mxu0 0.0
    %1149 = vmatpush1.msra.mxu0 0.0
    %1150 = vmatprep.subr.mxu0 0.0
    %1151 = vmatpush1.msra.mxu0 0.0
    %1152 = vmatprep.subr.mxu0 0.0
    %1153 = vmatpush1.msra.mxu0 0.0
    %1154 = vmatprep.subr.mxu0 0.0
    %1155 = vmatpush1.msra.mxu0 0.0
    %1156 = vmatprep.subr.mxu0 0.0
    %1157 = vmatpush1.msra.mxu0 0.0
    %1158 = vmatprep.subr.mxu0 0.0
    %1159 = vmatpush1.msra.mxu0 0.0
    %1160 = vmatprep.subr.mxu0 0.0
    %1161 = vmatpush1.msra.mxu0 0.0
    %1162 = vmatprep.subr.mxu0 0.0
    %1163 = vmatpush1.msra.mxu0 0.0
    %1164 = vmatprep.subr.mxu0 0.0
    %1165 = vmatpush1.msra.mxu0 0.0
    %1166 = vmatprep.subr.mxu0 0.0
    %1167 = vmatpush1.msra.mxu0 0.0
    %1168 = vmatprep.subr.mxu0 0.0
    %1169 = vmatpush1.msra.mxu0 0.0
    %1170 = vmatprep.subr.mxu0 0.0
    %1171 = vmatpush1.msra.mxu0 0.0
    %1172 = vmatprep.subr.mxu0 0.0
    %1173 = vmatpush1.msra.mxu0 0.0
    %1174 = vmatprep.subr.mxu0 0.0
    %1175 = vmatpush1.msra.mxu0 0.0
    %1176 = vmatprep.subr.mxu0 0.0
    %1177 = vmatpush1.msra.mxu0 0.0
    %1178 = vmatprep.subr.mxu0 0.0
    %1179 = vmatpush1.msra.mxu0 0.0
    %1180 = vmatprep.mubr.f32.mxu0 0.0
    %1181 = vmatmul.mubr.f32.gmra.mrb[0].mxu0 %v1115
    %v1182 = vpop.f32.mrb[0].mxu0
    %v1183 = vadd.f32 %v168, %v1182
    %v1184 = vpop.f32.mrb[0].mxu0
    %v1185 = vadd.f32 %v172, %v1184
    %1186 = vdwg.mxu0
    %1187 = vmatprep.subr.mxu0 0.0
    %1188 = vmatpush1.msra.mxu0 %v67
    %1189 = vmatprep.subr.mxu0 0.0
    %1190 = vmatpush1.msra.mxu0 %v70
    %1191 = vmatprep.subr.mxu0 0.0
    %1192 = vmatpush1.msra.mxu0 %v73
    %1193 = vmatprep.subr.mxu0 0.0
    %1194 = vmatpush1.msra.mxu0 %v76
    %1195 = vmatprep.subr.mxu0 0.0
    %1196 = vmatpush1.msra.mxu0 %v79
    %1197 = vmatprep.subr.mxu0 0.0
    %1198 = vmatpush1.msra.mxu0 %v82
    %1199 = vmatprep.subr.mxu0 0.0
    %1200 = vmatpush1.msra.mxu0 %v85
    %1201 = vmatprep.subr.mxu0 0.0
    %1202 = vmatpush1.msra.mxu0 %v88
    %1203 = vmatprep.subr.mxu0 0.0
    %1204 = vmatpush1.msra.mxu0 %v91
    %1205 = vmatprep.subr.mxu0 0.0
    %1206 = vmatpush1.msra.mxu0 %v94
    %1207 = vmatprep.subr.mxu0 0.0
    %1208 = vmatpush1.msra.mxu0 %v97
    %1209 = vmatprep.subr.mxu0 0.0
    %1210 = vmatpush1.msra.mxu0 %v100
    %1211 = vmatprep.subr.mxu0 0.0
    %1212 = vmatpush1.msra.mxu0 %v103
    %1213 = vmatprep.subr.mxu0 0.0
    %1214 = vmatpush1.msra.mxu0 %v106
    %1215 = vmatprep.subr.mxu0 0.0
    %1216 = vmatpush1.msra.mxu0 %v109
    %1217 = vmatprep.subr.mxu0 0.0
    %1218 = vmatpush1.msra.mxu0 %v112
    %1219 = vmatprep.subr.mxu0 0.0
    %1220 = vmatpush1.msra.mxu0 0.0
    %1221 = vmatprep.subr.mxu0 0.0
    %1222 = vmatpush1.msra.mxu0 0.0
    %1223 = vmatprep.subr.mxu0 0.0
    %1224 = vmatpush1.msra.mxu0 0.0
    %1225 = vmatprep.subr.mxu0 0.0
    %1226 = vmatpush1.msra.mxu0 0.0
    %1227 = vmatprep.subr.mxu0 0.0
    %1228 = vmatpush1.msra.mxu0 0.0
    %1229 = vmatprep.subr.mxu0 0.0
    %1230 = vmatpush1.msra.mxu0 0.0
    %1231 = vmatprep.subr.mxu0 0.0
    %1232 = vmatpush1.msra.mxu0 0.0
    %1233 = vmatprep.subr.mxu0 0.0
    %1234 = vmatpush1.msra.mxu0 0.0
    %1235 = vmatprep.subr.mxu0 0.0
    %1236 = vmatpush1.msra.mxu0 0.0
    %1237 = vmatprep.subr.mxu0 0.0
    %1238 = vmatpush1.msra.mxu0 0.0
    %1239 = vmatprep.subr.mxu0 0.0
    %1240 = vmatpush1.msra.mxu0 0.0
    %1241 = vmatprep.subr.mxu0 0.0
    %1242 = vmatpush1.msra.mxu0 0.0
    %1243 = vmatprep.subr.mxu0 0.0
    %1244 = vmatpush1.msra.mxu0 0.0
    %1245 = vmatprep.subr.mxu0 0.0
    %1246 = vmatpush1.msra.mxu0 0.0
    %1247 = vmatprep.subr.mxu0 0.0
    %1248 = vmatpush1.msra.mxu0 0.0
    %1249 = vmatprep.subr.mxu0 0.0
    %1250 = vmatpush1.msra.mxu0 0.0
    %1251 = vmatprep.mubr.f32.mxu0 0.0
    %1252 = vmatmul.mubr.f32.gmra.mrb[0].mxu0 %v1115
    %v1253 = vpop.f32.mrb[0].mxu0
    %v1254 = vadd.f32 %v176, %v1253
    %v1255 = vpop.f32.mrb[0].mxu0
    %1256 = vdwg.mxu0
    %1257 = vmatprep.subr.mxu0 %v114
    %1258 = vmatpush1.msra.mxu0 %v113
    %1259 = vmatprep.subr.mxu0 %v117
    %1260 = vmatpush1.msra.mxu0 %v116
    %1261 = vmatprep.subr.mxu0 %v120
    %1262 = vmatpush1.msra.mxu0 %v119
    %1263 = vmatprep.subr.mxu0 %v123
    %1264 = vmatpush1.msra.mxu0 %v122
    %1265 = vmatprep.subr.mxu0 %v126
    %1266 = vmatpush1.msra.mxu0 %v125
    %1267 = vmatprep.subr.mxu0 %v129
    %1268 = vmatpush1.msra.mxu0 %v128
    %1269 = vmatprep.subr.mxu0 %v132
    %1270 = vmatpush1.msra.mxu0 %v131
    %1271 = vmatprep.subr.mxu0 %v135
    %1272 = vmatpush1.msra.mxu0 %v134
    %1273 = vmatprep.subr.mxu0 %v138
    %1274 = vmatpush1.msra.mxu0 %v137
    %1275 = vmatprep.subr.mxu0 %v141
    %1276 = vmatpush1.msra.mxu0 %v140
    %1277 = vmatprep.subr.mxu0 %v144
    %1278 = vmatpush1.msra.mxu0 %v143
    %1279 = vmatprep.subr.mxu0 %v147
    %1280 = vmatpush1.msra.mxu0 %v146
    %1281 = vmatprep.subr.mxu0 %v150
    %1282 = vmatpush1.msra.mxu0 %v149
    %1283 = vmatprep.subr.mxu0 %v153
    %1284 = vmatpush1.msra.mxu0 %v152
    %1285 = vmatprep.subr.mxu0 %v156
    %1286 = vmatpush1.msra.mxu0 %v155
    %1287 = vmatprep.subr.mxu0 %v159
    %1288 = vmatpush1.msra.mxu0 %v158
    %1289 = vmatprep.subr.mxu0 0.0
    %1290 = vmatpush1.msra.mxu0 0.0
    %1291 = vmatprep.subr.mxu0 0.0
    %1292 = vmatpush1.msra.mxu0 0.0
    %1293 = vmatprep.subr.mxu0 0.0
    %1294 = vmatpush1.msra.mxu0 0.0
    %1295 = vmatprep.subr.mxu0 0.0
    %1296 = vmatpush1.msra.mxu0 0.0
    %1297 = vmatprep.subr.mxu0 0.0
    %1298 = vmatpush1.msra.mxu0 0.0
    %1299 = vmatprep.subr.mxu0 0.0
    %1300 = vmatpush1.msra.mxu0 0.0
    %1301 = vmatprep.subr.mxu0 0.0
    %1302 = vmatpush1.msra.mxu0 0.0
    %1303 = vmatprep.subr.mxu0 0.0
    %1304 = vmatpush1.msra.mxu0 0.0
    %1305 = vmatprep.subr.mxu0 0.0
    %1306 = vmatpush1.msra.mxu0 0.0
    %1307 = vmatprep.subr.mxu0 0.0
    %1308 = vmatpush1.msra.mxu0 0.0
    %1309 = vmatprep.subr.mxu0 0.0
    %1310 = vmatpush1.msra.mxu0 0.0
    %1311 = vmatprep.subr.mxu0 0.0
    %1312 = vmatpush1.msra.mxu0 0.0
    %1313 = vmatprep.subr.mxu0 0.0
    %1314 = vmatpush1.msra.mxu0 0.0
    %1315 = vmatprep.subr.mxu0 0.0
    %1316 = vmatpush1.msra.mxu0 0.0
    %1317 = vmatprep.subr.mxu0 0.0
    %1318 = vmatpush1.msra.mxu0 0.0
    %1319 = vmatprep.subr.mxu0 0.0
    %1320 = vmatpush1.msra.mxu0 0.0
    %1321 = vmatprep.mubr.f32.mxu0 0.0
    %1322 = vmatmul.mubr.f32.gmra.mrb[0].mxu0 %v1111
    %v1323 = vpop.f32.mrb[0].mxu0
    %v1324 = vadd.f32 %v325, %v1323
    %v1325 = vpop.f32.mrb[0].mxu0
    %v1326 = vadd.f32 %v329, %v1325
    %1327 = vdwg.mxu0
    %1328 = vmatprep.subr.mxu0 0.0
    %1329 = vmatpush1.msra.mxu0 %v115
    %1330 = vmatprep.subr.mxu0 0.0
    %1331 = vmatpush1.msra.mxu0 %v118
    %1332 = vmatprep.subr.mxu0 0.0
    %1333 = vmatpush1.msra.mxu0 %v121
    %1334 = vmatprep.subr.mxu0 0.0
    %1335 = vmatpush1.msra.mxu0 %v124
    %1336 = vmatprep.subr.mxu0 0.0
    %1337 = vmatpush1.msra.mxu0 %v127
    %1338 = vmatprep.subr.mxu0 0.0
    %1339 = vmatpush1.msra.mxu0 %v130
    %1340 = vmatprep.subr.mxu0 0.0
    %1341 = vmatpush1.msra.mxu0 %v133
    %1342 = vmatprep.subr.mxu0 0.0
    %1343 = vmatpush1.msra.mxu0 %v136
    %1344 = vmatprep.subr.mxu0 0.0
    %1345 = vmatpush1.msra.mxu0 %v139
    %1346 = vmatprep.subr.mxu0 0.0
    %1347 = vmatpush1.msra.mxu0 %v142
    %1348 = vmatprep.subr.mxu0 0.0
    %1349 = vmatpush1.msra.mxu0 %v145
    %1350 = vmatprep.subr.mxu0 0.0
    %1351 = vmatpush1.msra.mxu0 %v148
    %1352 = vmatprep.subr.mxu0 0.0
    %1353 = vmatpush1.msra.mxu0 %v151
    %1354 = vmatprep.subr.mxu0 0.0
    %1355 = vmatpush1.msra.mxu0 %v154
    %1356 = vmatprep.subr.mxu0 0.0
    %1357 = vmatpush1.msra.mxu0 %v157
    %1358 = vmatprep.subr.mxu0 0.0
    %1359 = vmatpush1.msra.mxu0 %v160
    %1360 = vmatprep.subr.mxu0 0.0
    %1361 = vmatpush1.msra.mxu0 0.0
    %1362 = vmatprep.subr.mxu0 0.0
    %1363 = vmatpush1.msra.mxu0 0.0
    %1364 = vmatprep.subr.mxu0 0.0
    %1365 = vmatpush1.msra.mxu0 0.0
    %1366 = vmatprep.subr.mxu0 0.0
    %1367 = vmatpush1.msra.mxu0 0.0
    %1368 = vmatprep.subr.mxu0 0.0
    %1369 = vmatpush1.msra.mxu0 0.0
    %1370 = vmatprep.subr.mxu0 0.0
    %1371 = vmatpush1.msra.mxu0 0.0
    %1372 = vmatprep.subr.mxu0 0.0
    %1373 = vmatpush1.msra.mxu0 0.0
    %1374 = vmatprep.subr.mxu0 0.0
    %1375 = vmatpush1.msra.mxu0 0.0
    %1376 = vmatprep.subr.mxu0 0.0
    %1377 = vmatpush1.msra.mxu0 0.0
    %1378 = vmatprep.subr.mxu0 0.0
    %1379 = vmatpush1.msra.mxu0 0.0
    %1380 = vmatprep.subr.mxu0 0.0
    %1381 = vmatpush1.msra.mxu0 0.0
    %1382 = vmatprep.subr.mxu0 0.0
    %1383 = vmatpush1.msra.mxu0 0.0
    %1384 = vmatprep.subr.mxu0 0.0
    %1385 = vmatpush1.msra.mxu0 0.0
    %1386 = vmatprep.subr.mxu0 0.0
    %1387 = vmatpush1.msra.mxu0 0.0
    %1388 = vmatprep.subr.mxu0 0.0
    %1389 = vmatpush1.msra.mxu0 0.0
    %1390 = vmatprep.subr.mxu0 0.0
    %1391 = vmatpush1.msra.mxu0 0.0
    %1392 = vmatprep.mubr.f32.mxu0 0.0
    %1393 = vmatmul.mubr.f32.gmra.mrb[0].mxu0 %v1111
    %v1394 = vpop.f32.mrb[0].mxu0
    %v1395 = vadd.f32 %v333, %v1394
    %v1396 = vpop.f32.mrb[0].mxu0
    %1397 = vdwg.mxu0
    %v1398 = vadd.f32 %v1183, %v1324
    %v1399 = vxor.u32 %v1398, 2147483648
    %v1400 = vmul.f32 %v1399, 1.442695
    %v1401 = vpow.pop %v1400
    %v1402 = vadd.f32 %v1401, 1.0
    %v1403 = vrcp.pop %v1402
    %v1404 = vmul.f32 1.0, %v1403
    %v1405 = vadd.f32 %v1185, %v1326
    %v1406 = vxor.u32 %v1405, 2147483648
    %v1407 = vmul.f32 %v1406, 1.442695
    %v1408 = vpow.pop %v1407
    %v1409 = vadd.f32 %v1408, 1.0
    %v1410 = vrcp.pop %v1409
    %v1411 = vmul.f32 1.0, %v1410
    %v1412 = vmul.f32 %v1404, %v1395
    %v1413 = vadd.f32 %v1254, %v1412
    %v1414 = vtanh.pop %v1413
    %v1415 = vsub.f32 1.0, %v1411
    %v1416 = vmul.f32 %v1415, %v1414
    %v1417 = vmul.f32 %v1411, %v1111
    %v1418 = vadd.f32 %v1416, %v1417
    %s1419 = scalar_lea.vmem [#allocation8], 24
    %1420 = vst [vmem:[%s1419] sm:$0xff] %v1418
    %s1421 = scalar_lea.vmem [#allocation2], 32
    %v1422 = vld [vmem:[%s1421] sm:$0xff]
    %1423 = vmatprep.subr.mxu0 %v66
    %1424 = vmatpush1.msra.mxu0 %v65
    %1425 = vmatprep.subr.mxu0 %v69
    %1426 = vmatpush1.msra.mxu0 %v68
    %1427 = vmatprep.subr.mxu0 %v72
    %1428 = vmatpush1.msra.mxu0 %v71
    %1429 = vmatprep.subr.mxu0 %v75
    %1430 = vmatpush1.msra.mxu0 %v74
    %1431 = vmatprep.subr.mxu0 %v78
    %1432 = vmatpush1.msra.mxu0 %v77
    %1433 = vmatprep.subr.mxu0 %v81
    %1434 = vmatpush1.msra.mxu0 %v80
    %1435 = vmatprep.subr.mxu0 %v84
    %1436 = vmatpush1.msra.mxu0 %v83
    %1437 = vmatprep.subr.mxu0 %v87
    %1438 = vmatpush1.msra.mxu0 %v86
    %1439 = vmatprep.subr.mxu0 %v90
    %1440 = vmatpush1.msra.mxu0 %v89
    %1441 = vmatprep.subr.mxu0 %v93
    %1442 = vmatpush1.msra.mxu0 %v92
    %1443 = vmatprep.subr.mxu0 %v96
    %1444 = vmatpush1.msra.mxu0 %v95
    %1445 = vmatprep.subr.mxu0 %v99
    %1446 = vmatpush1.msra.mxu0 %v98
    %1447 = vmatprep.subr.mxu0 %v102
    %1448 = vmatpush1.msra.mxu0 %v101
    %1449 = vmatprep.subr.mxu0 %v105
    %1450 = vmatpush1.msra.mxu0 %v104
    %1451 = vmatprep.subr.mxu0 %v108
    %1452 = vmatpush1.msra.mxu0 %v107
    %1453 = vmatprep.subr.mxu0 %v111
    %1454 = vmatpush1.msra.mxu0 %v110
    %1455 = vmatprep.subr.mxu0 0.0
    %1456 = vmatpush1.msra.mxu0 0.0
    %1457 = vmatprep.subr.mxu0 0.0
    %1458 = vmatpush1.msra.mxu0 0.0
    %1459 = vmatprep.subr.mxu0 0.0
    %1460 = vmatpush1.msra.mxu0 0.0
    %1461 = vmatprep.subr.mxu0 0.0
    %1462 = vmatpush1.msra.mxu0 0.0
    %1463 = vmatprep.subr.mxu0 0.0
    %1464 = vmatpush1.msra.mxu0 0.0
    %1465 = vmatprep.subr.mxu0 0.0
    %1466 = vmatpush1.msra.mxu0 0.0
    %1467 = vmatprep.subr.mxu0 0.0
    %1468 = vmatpush1.msra.mxu0 0.0
    %1469 = vmatprep.subr.mxu0 0.0
    %1470 = vmatpush1.msra.mxu0 0.0
    %1471 = vmatprep.subr.mxu0 0.0
    %1472 = vmatpush1.msra.mxu0 0.0
    %1473 = vmatprep.subr.mxu0 0.0
    %1474 = vmatpush1.msra.mxu0 0.0
    %1475 = vmatprep.subr.mxu0 0.0
    %1476 = vmatpush1.msra.mxu0 0.0
    %1477 = vmatprep.subr.mxu0 0.0
    %1478 = vmatpush1.msra.mxu0 0.0
    %1479 = vmatprep.subr.mxu0 0.0
    %1480 = vmatpush1.msra.mxu0 0.0
    %1481 = vmatprep.subr.mxu0 0.0
    %1482 = vmatpush1.msra.mxu0 0.0
    %1483 = vmatprep.subr.mxu0 0.0
    %1484 = vmatpush1.msra.mxu0 0.0
    %1485 = vmatprep.subr.mxu0 0.0
    %1486 = vmatpush1.msra.mxu0 0.0
    %1487 = vmatprep.mubr.f32.mxu0 0.0
    %1488 = vmatmul.mubr.f32.gmra.mrb[0].mxu0 %v1422
    %v1489 = vpop.f32.mrb[0].mxu0
    %v1490 = vadd.f32 %v168, %v1489
    %v1491 = vpop.f32.mrb[0].mxu0
    %v1492 = vadd.f32 %v172, %v1491
    %1493 = vdwg.mxu0
    %1494 = vmatprep.subr.mxu0 0.0
    %1495 = vmatpush1.msra.mxu0 %v67
    %1496 = vmatprep.subr.mxu0 0.0
    %1497 = vmatpush1.msra.mxu0 %v70
    %1498 = vmatprep.subr.mxu0 0.0
    %1499 = vmatpush1.msra.mxu0 %v73
    %1500 = vmatprep.subr.mxu0 0.0
    %1501 = vmatpush1.msra.mxu0 %v76
    %1502 = vmatprep.subr.mxu0 0.0
    %1503 = vmatpush1.msra.mxu0 %v79
    %1504 = vmatprep.subr.mxu0 0.0
    %1505 = vmatpush1.msra.mxu0 %v82
    %1506 = vmatprep.subr.mxu0 0.0
    %1507 = vmatpush1.msra.mxu0 %v85
    %1508 = vmatprep.subr.mxu0 0.0
    %1509 = vmatpush1.msra.mxu0 %v88
    %1510 = vmatprep.subr.mxu0 0.0
    %1511 = vmatpush1.msra.mxu0 %v91
    %1512 = vmatprep.subr.mxu0 0.0
    %1513 = vmatpush1.msra.mxu0 %v94
    %1514 = vmatprep.subr.mxu0 0.0
    %1515 = vmatpush1.msra.mxu0 %v97
    %1516 = vmatprep.subr.mxu0 0.0
    %1517 = vmatpush1.msra.mxu0 %v100
    %1518 = vmatprep.subr.mxu0 0.0
    %1519 = vmatpush1.msra.mxu0 %v103
    %1520 = vmatprep.subr.mxu0 0.0
    %1521 = vmatpush1.msra.mxu0 %v106
    %1522 = vmatprep.subr.mxu0 0.0
    %1523 = vmatpush1.msra.mxu0 %v109
    %1524 = vmatprep.subr.mxu0 0.0
    %1525 = vmatpush1.msra.mxu0 %v112
    %1526 = vmatprep.subr.mxu0 0.0
    %1527 = vmatpush1.msra.mxu0 0.0
    %1528 = vmatprep.subr.mxu0 0.0
    %1529 = vmatpush1.msra.mxu0 0.0
    %1530 = vmatprep.subr.mxu0 0.0
    %1531 = vmatpush1.msra.mxu0 0.0
    %1532 = vmatprep.subr.mxu0 0.0
    %1533 = vmatpush1.msra.mxu0 0.0
    %1534 = vmatprep.subr.mxu0 0.0
    %1535 = vmatpush1.msra.mxu0 0.0
    %1536 = vmatprep.subr.mxu0 0.0
    %1537 = vmatpush1.msra.mxu0 0.0
    %1538 = vmatprep.subr.mxu0 0.0
    %1539 = vmatpush1.msra.mxu0 0.0
    %1540 = vmatprep.subr.mxu0 0.0
    %1541 = vmatpush1.msra.mxu0 0.0
    %1542 = vmatprep.subr.mxu0 0.0
    %1543 = vmatpush1.msra.mxu0 0.0
    %1544 = vmatprep.subr.mxu0 0.0
    %1545 = vmatpush1.msra.mxu0 0.0
    %1546 = vmatprep.subr.mxu0 0.0
    %1547 = vmatpush1.msra.mxu0 0.0
    %1548 = vmatprep.subr.mxu0 0.0
    %1549 = vmatpush1.msra.mxu0 0.0
    %1550 = vmatprep.subr.mxu0 0.0
    %1551 = vmatpush1.msra.mxu0 0.0
    %1552 = vmatprep.subr.mxu0 0.0
    %1553 = vmatpush1.msra.mxu0 0.0
    %1554 = vmatprep.subr.mxu0 0.0
    %1555 = vmatpush1.msra.mxu0 0.0
    %1556 = vmatprep.subr.mxu0 0.0
    %1557 = vmatpush1.msra.mxu0 0.0
    %1558 = vmatprep.mubr.f32.mxu0 0.0
    %1559 = vmatmul.mubr.f32.gmra.mrb[0].mxu0 %v1422
    %v1560 = vpop.f32.mrb[0].mxu0
    %v1561 = vadd.f32 %v176, %v1560
    %v1562 = vpop.f32.mrb[0].mxu0
    %1563 = vdwg.mxu0
    %1564 = vmatprep.subr.mxu0 %v114
    %1565 = vmatpush1.msra.mxu0 %v113
    %1566 = vmatprep.subr.mxu0 %v117
    %1567 = vmatpush1.msra.mxu0 %v116
    %1568 = vmatprep.subr.mxu0 %v120
    %1569 = vmatpush1.msra.mxu0 %v119
    %1570 = vmatprep.subr.mxu0 %v123
    %1571 = vmatpush1.msra.mxu0 %v122
    %1572 = vmatprep.subr.mxu0 %v126
    %1573 = vmatpush1.msra.mxu0 %v125
    %1574 = vmatprep.subr.mxu0 %v129
    %1575 = vmatpush1.msra.mxu0 %v128
    %1576 = vmatprep.subr.mxu0 %v132
    %1577 = vmatpush1.msra.mxu0 %v131
    %1578 = vmatprep.subr.mxu0 %v135
    %1579 = vmatpush1.msra.mxu0 %v134
    %1580 = vmatprep.subr.mxu0 %v138
    %1581 = vmatpush1.msra.mxu0 %v137
    %1582 = vmatprep.subr.mxu0 %v141
    %1583 = vmatpush1.msra.mxu0 %v140
    %1584 = vmatprep.subr.mxu0 %v144
    %1585 = vmatpush1.msra.mxu0 %v143
    %1586 = vmatprep.subr.mxu0 %v147
    %1587 = vmatpush1.msra.mxu0 %v146
    %1588 = vmatprep.subr.mxu0 %v150
    %1589 = vmatpush1.msra.mxu0 %v149
    %1590 = vmatprep.subr.mxu0 %v153
    %1591 = vmatpush1.msra.mxu0 %v152
    %1592 = vmatprep.subr.mxu0 %v156
    %1593 = vmatpush1.msra.mxu0 %v155
    %1594 = vmatprep.subr.mxu0 %v159
    %1595 = vmatpush1.msra.mxu0 %v158
    %1596 = vmatprep.subr.mxu0 0.0
    %1597 = vmatpush1.msra.mxu0 0.0
    %1598 = vmatprep.subr.mxu0 0.0
    %1599 = vmatpush1.msra.mxu0 0.0
    %1600 = vmatprep.subr.mxu0 0.0
    %1601 = vmatpush1.msra.mxu0 0.0
    %1602 = vmatprep.subr.mxu0 0.0
    %1603 = vmatpush1.msra.mxu0 0.0
    %1604 = vmatprep.subr.mxu0 0.0
    %1605 = vmatpush1.msra.mxu0 0.0
    %1606 = vmatprep.subr.mxu0 0.0
    %1607 = vmatpush1.msra.mxu0 0.0
    %1608 = vmatprep.subr.mxu0 0.0
    %1609 = vmatpush1.msra.mxu0 0.0
    %1610 = vmatprep.subr.mxu0 0.0
    %1611 = vmatpush1.msra.mxu0 0.0
    %1612 = vmatprep.subr.mxu0 0.0
    %1613 = vmatpush1.msra.mxu0 0.0
    %1614 = vmatprep.subr.mxu0 0.0
    %1615 = vmatpush1.msra.mxu0 0.0
    %1616 = vmatprep.subr.mxu0 0.0
    %1617 = vmatpush1.msra.mxu0 0.0
    %1618 = vmatprep.subr.mxu0 0.0
    %1619 = vmatpush1.msra.mxu0 0.0
    %1620 = vmatprep.subr.mxu0 0.0
    %1621 = vmatpush1.msra.mxu0 0.0
    %1622 = vmatprep.subr.mxu0 0.0
    %1623 = vmatpush1.msra.mxu0 0.0
    %1624 = vmatprep.subr.mxu0 0.0
    %1625 = vmatpush1.msra.mxu0 0.0
    %1626 = vmatprep.subr.mxu0 0.0
    %1627 = vmatpush1.msra.mxu0 0.0
    %1628 = vmatprep.mubr.f32.mxu0 0.0
    %1629 = vmatmul.mubr.f32.gmra.mrb[0].mxu0 %v1418
    %v1630 = vpop.f32.mrb[0].mxu0
    %v1631 = vadd.f32 %v325, %v1630
    %v1632 = vpop.f32.mrb[0].mxu0
    %v1633 = vadd.f32 %v329, %v1632
    %1634 = vdwg.mxu0
    %1635 = vmatprep.subr.mxu0 0.0
    %1636 = vmatpush1.msra.mxu0 %v115
    %1637 = vmatprep.subr.mxu0 0.0
    %1638 = vmatpush1.msra.mxu0 %v118
    %1639 = vmatprep.subr.mxu0 0.0
    %1640 = vmatpush1.msra.mxu0 %v121
    %1641 = vmatprep.subr.mxu0 0.0
    %1642 = vmatpush1.msra.mxu0 %v124
    %1643 = vmatprep.subr.mxu0 0.0
    %1644 = vmatpush1.msra.mxu0 %v127
    %1645 = vmatprep.subr.mxu0 0.0
    %1646 = vmatpush1.msra.mxu0 %v130
    %1647 = vmatprep.subr.mxu0 0.0
    %1648 = vmatpush1.msra.mxu0 %v133
    %1649 = vmatprep.subr.mxu0 0.0
    %1650 = vmatpush1.msra.mxu0 %v136
    %1651 = vmatprep.subr.mxu0 0.0
    %1652 = vmatpush1.msra.mxu0 %v139
    %1653 = vmatprep.subr.mxu0 0.0
    %1654 = vmatpush1.msra.mxu0 %v142
    %1655 = vmatprep.subr.mxu0 0.0
    %1656 = vmatpush1.msra.mxu0 %v145
    %1657 = vmatprep.subr.mxu0 0.0
    %1658 = vmatpush1.msra.mxu0 %v148
    %1659 = vmatprep.subr.mxu0 0.0
    %1660 = vmatpush1.msra.mxu0 %v151
    %1661 = vmatprep.subr.mxu0 0.0
    %1662 = vmatpush1.msra.mxu0 %v154
    %1663 = vmatprep.subr.mxu0 0.0
    %1664 = vmatpush1.msra.mxu0 %v157
    %1665 = vmatprep.subr.mxu0 0.0
    %1666 = vmatpush1.msra.mxu0 %v160
    %1667 = vmatprep.subr.mxu0 0.0
    %1668 = vmatpush1.msra.mxu0 0.0
    %1669 = vmatprep.subr.mxu0 0.0
    %1670 = vmatpush1.msra.mxu0 0.0
    %1671 = vmatprep.subr.mxu0 0.0
    %1672 = vmatpush1.msra.mxu0 0.0
    %1673 = vmatprep.subr.mxu0 0.0
    %1674 = vmatpush1.msra.mxu0 0.0
    %1675 = vmatprep.subr.mxu0 0.0
    %1676 = vmatpush1.msra.mxu0 0.0
    %1677 = vmatprep.subr.mxu0 0.0
    %1678 = vmatpush1.msra.mxu0 0.0
    %1679 = vmatprep.subr.mxu0 0.0
    %1680 = vmatpush1.msra.mxu0 0.0
    %1681 = vmatprep.subr.mxu0 0.0
    %1682 = vmatpush1.msra.mxu0 0.0
    %1683 = vmatprep.subr.mxu0 0.0
    %1684 = vmatpush1.msra.mxu0 0.0
    %1685 = vmatprep.subr.mxu0 0.0
    %1686 = vmatpush1.msra.mxu0 0.0
    %1687 = vmatprep.subr.mxu0 0.0
    %1688 = vmatpush1.msra.mxu0 0.0
    %1689 = vmatprep.subr.mxu0 0.0
    %1690 = vmatpush1.msra.mxu0 0.0
    %1691 = vmatprep.subr.mxu0 0.0
    %1692 = vmatpush1.msra.mxu0 0.0
    %1693 = vmatprep.subr.mxu0 0.0
    %1694 = vmatpush1.msra.mxu0 0.0
    %1695 = vmatprep.subr.mxu0 0.0
    %1696 = vmatpush1.msra.mxu0 0.0
    %1697 = vmatprep.subr.mxu0 0.0
    %1698 = vmatpush1.msra.mxu0 0.0
    %1699 = vmatprep.mubr.f32.mxu0 0.0
    %1700 = vmatmul.mubr.f32.gmra.mrb[0].mxu0 %v1418
    %v1701 = vpop.f32.mrb[0].mxu0
    %v1702 = vadd.f32 %v333, %v1701
    %v1703 = vpop.f32.mrb[0].mxu0
    %1704 = vdwg.mxu0
    %v1705 = vadd.f32 %v1490, %v1631
    %v1706 = vxor.u32 %v1705, 2147483648
    %v1707 = vmul.f32 %v1706, 1.442695
    %v1708 = vpow.pop %v1707
    %v1709 = vadd.f32 %v1708, 1.0
    %v1710 = vrcp.pop %v1709
    %v1711 = vmul.f32 1.0, %v1710
    %v1712 = vadd.f32 %v1492, %v1633
    %v1713 = vxor.u32 %v1712, 2147483648
    %v1714 = vmul.f32 %v1713, 1.442695
    %v1715 = vpow.pop %v1714
    %v1716 = vadd.f32 %v1715, 1.0
    %v1717 = vrcp.pop %v1716
    %v1718 = vmul.f32 1.0, %v1717
    %v1719 = vmul.f32 %v1711, %v1702
    %v1720 = vadd.f32 %v1561, %v1719
    %v1721 = vtanh.pop %v1720
    %v1722 = vsub.f32 1.0, %v1718
    %v1723 = vmul.f32 %v1722, %v1721
    %v1724 = vmul.f32 %v1718, %v1418
    %v1725 = vadd.f32 %v1723, %v1724
    %s1726 = scalar_lea.vmem [#allocation8], 32
    %1727 = vst [vmem:[%s1726] sm:$0xff] %v1725
    %s1728 = scalar_lea.vmem [#allocation2], 40
    %v1729 = vld [vmem:[%s1728] sm:$0xff]
    %1730 = vmatprep.subr.mxu0 %v66
    %1731 = vmatpush1.msra.mxu0 %v65
    %1732 = vmatprep.subr.mxu0 %v69
    %1733 = vmatpush1.msra.mxu0 %v68
    %1734 = vmatprep.subr.mxu0 %v72
    %1735 = vmatpush1.msra.mxu0 %v71
    %1736 = vmatprep.subr.mxu0 %v75
    %1737 = vmatpush1.msra.mxu0 %v74
    %1738 = vmatprep.subr.mxu0 %v78
    %1739 = vmatpush1.msra.mxu0 %v77
    %1740 = vmatprep.subr.mxu0 %v81
    %1741 = vmatpush1.msra.mxu0 %v80
    %1742 = vmatprep.subr.mxu0 %v84
    %1743 = vmatpush1.msra.mxu0 %v83
    %1744 = vmatprep.subr.mxu0 %v87
    %1745 = vmatpush1.msra.mxu0 %v86
    %1746 = vmatprep.subr.mxu0 %v90
    %1747 = vmatpush1.msra.mxu0 %v89
    %1748 = vmatprep.subr.mxu0 %v93
    %1749 = vmatpush1.msra.mxu0 %v92
    %1750 = vmatprep.subr.mxu0 %v96
    %1751 = vmatpush1.msra.mxu0 %v95
    %1752 = vmatprep.subr.mxu0 %v99
    %1753 = vmatpush1.msra.mxu0 %v98
    %1754 = vmatprep.subr.mxu0 %v102
    %1755 = vmatpush1.msra.mxu0 %v101
    %1756 = vmatprep.subr.mxu0 %v105
    %1757 = vmatpush1.msra.mxu0 %v104
    %1758 = vmatprep.subr.mxu0 %v108
    %1759 = vmatpush1.msra.mxu0 %v107
    %1760 = vmatprep.subr.mxu0 %v111
    %1761 = vmatpush1.msra.mxu0 %v110
    %1762 = vmatprep.subr.mxu0 0.0
    %1763 = vmatpush1.msra.mxu0 0.0
    %1764 = vmatprep.subr.mxu0 0.0
    %1765 = vmatpush1.msra.mxu0 0.0
    %1766 = vmatprep.subr.mxu0 0.0
    %1767 = vmatpush1.msra.mxu0 0.0
    %1768 = vmatprep.subr.mxu0 0.0
    %1769 = vmatpush1.msra.mxu0 0.0
    %1770 = vmatprep.subr.mxu0 0.0
    %1771 = vmatpush1.msra.mxu0 0.0
    %1772 = vmatprep.subr.mxu0 0.0
    %1773 = vmatpush1.msra.mxu0 0.0
    %1774 = vmatprep.subr.mxu0 0.0
    %1775 = vmatpush1.msra.mxu0 0.0
    %1776 = vmatprep.subr.mxu0 0.0
    %1777 = vmatpush1.msra.mxu0 0.0
    %1778 = vmatprep.subr.mxu0 0.0
    %1779 = vmatpush1.msra.mxu0 0.0
    %1780 = vmatprep.subr.mxu0 0.0
    %1781 = vmatpush1.msra.mxu0 0.0
    %1782 = vmatprep.subr.mxu0 0.0
    %1783 = vmatpush1.msra.mxu0 0.0
    %1784 = vmatprep.subr.mxu0 0.0
    %1785 = vmatpush1.msra.mxu0 0.0
    %1786 = vmatprep.subr.mxu0 0.0
    %1787 = vmatpush1.msra.mxu0 0.0
    %1788 = vmatprep.subr.mxu0 0.0
    %1789 = vmatpush1.msra.mxu0 0.0
    %1790 = vmatprep.subr.mxu0 0.0
    %1791 = vmatpush1.msra.mxu0 0.0
    %1792 = vmatprep.subr.mxu0 0.0
    %1793 = vmatpush1.msra.mxu0 0.0
    %1794 = vmatprep.mubr.f32.mxu0 0.0
    %1795 = vmatmul.mubr.f32.gmra.mrb[0].mxu0 %v1729
    %v1796 = vpop.f32.mrb[0].mxu0
    %v1797 = vadd.f32 %v168, %v1796
    %v1798 = vpop.f32.mrb[0].mxu0
    %v1799 = vadd.f32 %v172, %v1798
    %1800 = vdwg.mxu0
    %1801 = vmatprep.subr.mxu0 0.0
    %1802 = vmatpush1.msra.mxu0 %v67
    %1803 = vmatprep.subr.mxu0 0.0
    %1804 = vmatpush1.msra.mxu0 %v70
    %1805 = vmatprep.subr.mxu0 0.0
    %1806 = vmatpush1.msra.mxu0 %v73
    %1807 = vmatprep.subr.mxu0 0.0
    %1808 = vmatpush1.msra.mxu0 %v76
    %1809 = vmatprep.subr.mxu0 0.0
    %1810 = vmatpush1.msra.mxu0 %v79
    %1811 = vmatprep.subr.mxu0 0.0
    %1812 = vmatpush1.msra.mxu0 %v82
    %1813 = vmatprep.subr.mxu0 0.0
    %1814 = vmatpush1.msra.mxu0 %v85
    %1815 = vmatprep.subr.mxu0 0.0
    %1816 = vmatpush1.msra.mxu0 %v88
    %1817 = vmatprep.subr.mxu0 0.0
    %1818 = vmatpush1.msra.mxu0 %v91
    %1819 = vmatprep.subr.mxu0 0.0
    %1820 = vmatpush1.msra.mxu0 %v94
    %1821 = vmatprep.subr.mxu0 0.0
    %1822 = vmatpush1.msra.mxu0 %v97
    %1823 = vmatprep.subr.mxu0 0.0
    %1824 = vmatpush1.msra.mxu0 %v100
    %1825 = vmatprep.subr.mxu0 0.0
    %1826 = vmatpush1.msra.mxu0 %v103
    %1827 = vmatprep.subr.mxu0 0.0
    %1828 = vmatpush1.msra.mxu0 %v106
    %1829 = vmatprep.subr.mxu0 0.0
    %1830 = vmatpush1.msra.mxu0 %v109
    %1831 = vmatprep.subr.mxu0 0.0
    %1832 = vmatpush1.msra.mxu0 %v112
    %1833 = vmatprep.subr.mxu0 0.0
    %1834 = vmatpush1.msra.mxu0 0.0
    %1835 = vmatprep.subr.mxu0 0.0
    %1836 = vmatpush1.msra.mxu0 0.0
    %1837 = vmatprep.subr.mxu0 0.0
    %1838 = vmatpush1.msra.mxu0 0.0
    %1839 = vmatprep.subr.mxu0 0.0
    %1840 = vmatpush1.msra.mxu0 0.0
    %1841 = vmatprep.subr.mxu0 0.0
    %1842 = vmatpush1.msra.mxu0 0.0
    %1843 = vmatprep.subr.mxu0 0.0
    %1844 = vmatpush1.msra.mxu0 0.0
    %1845 = vmatprep.subr.mxu0 0.0
    %1846 = vmatpush1.msra.mxu0 0.0
    %1847 = vmatprep.subr.mxu0 0.0
    %1848 = vmatpush1.msra.mxu0 0.0
    %1849 = vmatprep.subr.mxu0 0.0
    %1850 = vmatpush1.msra.mxu0 0.0
    %1851 = vmatprep.subr.mxu0 0.0
    %1852 = vmatpush1.msra.mxu0 0.0
    %1853 = vmatprep.subr.mxu0 0.0
    %1854 = vmatpush1.msra.mxu0 0.0
    %1855 = vmatprep.subr.mxu0 0.0
    %1856 = vmatpush1.msra.mxu0 0.0
    %1857 = vmatprep.subr.mxu0 0.0
    %1858 = vmatpush1.msra.mxu0 0.0
    %1859 = vmatprep.subr.mxu0 0.0
    %1860 = vmatpush1.msra.mxu0 0.0
    %1861 = vmatprep.subr.mxu0 0.0
    %1862 = vmatpush1.msra.mxu0 0.0
    %1863 = vmatprep.subr.mxu0 0.0
    %1864 = vmatpush1.msra.mxu0 0.0
    %1865 = vmatprep.mubr.f32.mxu0 0.0
    %1866 = vmatmul.mubr.f32.gmra.mrb[0].mxu0 %v1729
    %v1867 = vpop.f32.mrb[0].mxu0
    %v1868 = vadd.f32 %v176, %v1867
    %v1869 = vpop.f32.mrb[0].mxu0
    %1870 = vdwg.mxu0
    %1871 = vmatprep.subr.mxu0 %v114
    %1872 = vmatpush1.msra.mxu0 %v113
    %1873 = vmatprep.subr.mxu0 %v117
    %1874 = vmatpush1.msra.mxu0 %v116
    %1875 = vmatprep.subr.mxu0 %v120
    %1876 = vmatpush1.msra.mxu0 %v119
    %1877 = vmatprep.subr.mxu0 %v123
    %1878 = vmatpush1.msra.mxu0 %v122
    %1879 = vmatprep.subr.mxu0 %v126
    %1880 = vmatpush1.msra.mxu0 %v125
    %1881 = vmatprep.subr.mxu0 %v129
    %1882 = vmatpush1.msra.mxu0 %v128
    %1883 = vmatprep.subr.mxu0 %v132
    %1884 = vmatpush1.msra.mxu0 %v131
    %1885 = vmatprep.subr.mxu0 %v135
    %1886 = vmatpush1.msra.mxu0 %v134
    %1887 = vmatprep.subr.mxu0 %v138
    %1888 = vmatpush1.msra.mxu0 %v137
    %1889 = vmatprep.subr.mxu0 %v141
    %1890 = vmatpush1.msra.mxu0 %v140
    %1891 = vmatprep.subr.mxu0 %v144
    %1892 = vmatpush1.msra.mxu0 %v143
    %1893 = vmatprep.subr.mxu0 %v147
    %1894 = vmatpush1.msra.mxu0 %v146
    %1895 = vmatprep.subr.mxu0 %v150
    %1896 = vmatpush1.msra.mxu0 %v149
    %1897 = vmatprep.subr.mxu0 %v153
    %1898 = vmatpush1.msra.mxu0 %v152
    %1899 = vmatprep.subr.mxu0 %v156
    %1900 = vmatpush1.msra.mxu0 %v155
    %1901 = vmatprep.subr.mxu0 %v159
    %1902 = vmatpush1.msra.mxu0 %v158
    %1903 = vmatprep.subr.mxu0 0.0
    %1904 = vmatpush1.msra.mxu0 0.0
    %1905 = vmatprep.subr.mxu0 0.0
    %1906 = vmatpush1.msra.mxu0 0.0
    %1907 = vmatprep.subr.mxu0 0.0
    %1908 = vmatpush1.msra.mxu0 0.0
    %1909 = vmatprep.subr.mxu0 0.0
    %1910 = vmatpush1.msra.mxu0 0.0
    %1911 = vmatprep.subr.mxu0 0.0
    %1912 = vmatpush1.msra.mxu0 0.0
    %1913 = vmatprep.subr.mxu0 0.0
    %1914 = vmatpush1.msra.mxu0 0.0
    %1915 = vmatprep.subr.mxu0 0.0
    %1916 = vmatpush1.msra.mxu0 0.0
    %1917 = vmatprep.subr.mxu0 0.0
    %1918 = vmatpush1.msra.mxu0 0.0
    %1919 = vmatprep.subr.mxu0 0.0
    %1920 = vmatpush1.msra.mxu0 0.0
    %1921 = vmatprep.subr.mxu0 0.0
    %1922 = vmatpush1.msra.mxu0 0.0
    %1923 = vmatprep.subr.mxu0 0.0
    %1924 = vmatpush1.msra.mxu0 0.0
    %1925 = vmatprep.subr.mxu0 0.0
    %1926 = vmatpush1.msra.mxu0 0.0
    %1927 = vmatprep.subr.mxu0 0.0
    %1928 = vmatpush1.msra.mxu0 0.0
    %1929 = vmatprep.subr.mxu0 0.0
    %1930 = vmatpush1.msra.mxu0 0.0
    %1931 = vmatprep.subr.mxu0 0.0
    %1932 = vmatpush1.msra.mxu0 0.0
    %1933 = vmatprep.subr.mxu0 0.0
    %1934 = vmatpush1.msra.mxu0 0.0
    %1935 = vmatprep.mubr.f32.mxu0 0.0
    %1936 = vmatmul.mubr.f32.gmra.mrb[0].mxu0 %v1725
    %v1937 = vpop.f32.mrb[0].mxu0
    %v1938 = vadd.f32 %v325, %v1937
    %v1939 = vpop.f32.mrb[0].mxu0
    %v1940 = vadd.f32 %v329, %v1939
    %1941 = vdwg.mxu0
    %1942 = vmatprep.subr.mxu0 0.0
    %1943 = vmatpush1.msra.mxu0 %v115
    %1944 = vmatprep.subr.mxu0 0.0
    %1945 = vmatpush1.msra.mxu0 %v118
    %1946 = vmatprep.subr.mxu0 0.0
    %1947 = vmatpush1.msra.mxu0 %v121
    %1948 = vmatprep.subr.mxu0 0.0
    %1949 = vmatpush1.msra.mxu0 %v124
    %1950 = vmatprep.subr.mxu0 0.0
    %1951 = vmatpush1.msra.mxu0 %v127
    %1952 = vmatprep.subr.mxu0 0.0
    %1953 = vmatpush1.msra.mxu0 %v130
    %1954 = vmatprep.subr.mxu0 0.0
    %1955 = vmatpush1.msra.mxu0 %v133
    %1956 = vmatprep.subr.mxu0 0.0
    %1957 = vmatpush1.msra.mxu0 %v136
    %1958 = vmatprep.subr.mxu0 0.0
    %1959 = vmatpush1.msra.mxu0 %v139
    %1960 = vmatprep.subr.mxu0 0.0
    %1961 = vmatpush1.msra.mxu0 %v142
    %1962 = vmatprep.subr.mxu0 0.0
    %1963 = vmatpush1.msra.mxu0 %v145
    %1964 = vmatprep.subr.mxu0 0.0
    %1965 = vmatpush1.msra.mxu0 %v148
    %1966 = vmatprep.subr.mxu0 0.0
    %1967 = vmatpush1.msra.mxu0 %v151
    %1968 = vmatprep.subr.mxu0 0.0
    %1969 = vmatpush1.msra.mxu0 %v154
    %1970 = vmatprep.subr.mxu0 0.0
    %1971 = vmatpush1.msra.mxu0 %v157
    %1972 = vmatprep.subr.mxu0 0.0
    %1973 = vmatpush1.msra.mxu0 %v160
    %1974 = vmatprep.subr.mxu0 0.0
    %1975 = vmatpush1.msra.mxu0 0.0
    %1976 = vmatprep.subr.mxu0 0.0
    %1977 = vmatpush1.msra.mxu0 0.0
    %1978 = vmatprep.subr.mxu0 0.0
    %1979 = vmatpush1.msra.mxu0 0.0
    %1980 = vmatprep.subr.mxu0 0.0
    %1981 = vmatpush1.msra.mxu0 0.0
    %1982 = vmatprep.subr.mxu0 0.0
    %1983 = vmatpush1.msra.mxu0 0.0
    %1984 = vmatprep.subr.mxu0 0.0
    %1985 = vmatpush1.msra.mxu0 0.0
    %1986 = vmatprep.subr.mxu0 0.0
    %1987 = vmatpush1.msra.mxu0 0.0
    %1988 = vmatprep.subr.mxu0 0.0
    %1989 = vmatpush1.msra.mxu0 0.0
    %1990 = vmatprep.subr.mxu0 0.0
    %1991 = vmatpush1.msra.mxu0 0.0
    %1992 = vmatprep.subr.mxu0 0.0
    %1993 = vmatpush1.msra.mxu0 0.0
    %1994 = vmatprep.subr.mxu0 0.0
    %1995 = vmatpush1.msra.mxu0 0.0
    %1996 = vmatprep.subr.mxu0 0.0
    %1997 = vmatpush1.msra.mxu0 0.0
    %1998 = vmatprep.subr.mxu0 0.0
    %1999 = vmatpush1.msra.mxu0 0.0
    %2000 = vmatprep.subr.mxu0 0.0
    %2001 = vmatpush1.msra.mxu0 0.0
    %2002 = vmatprep.subr.mxu0 0.0
    %2003 = vmatpush1.msra.mxu0 0.0
    %2004 = vmatprep.subr.mxu0 0.0
    %2005 = vmatpush1.msra.mxu0 0.0
    %2006 = vmatprep.mubr.f32.mxu0 0.0
    %2007 = vmatmul.mubr.f32.gmra.mrb[0].mxu0 %v1725
    %v2008 = vpop.f32.mrb[0].mxu0
    %v2009 = vadd.f32 %v333, %v2008
    %v2010 = vpop.f32.mrb[0].mxu0
    %2011 = vdwg.mxu0
    %v2012 = vadd.f32 %v1797, %v1938
    %v2013 = vxor.u32 %v2012, 2147483648
    %v2014 = vmul.f32 %v2013, 1.442695
    %v2015 = vpow.pop %v2014
    %v2016 = vadd.f32 %v2015, 1.0
    %v2017 = vrcp.pop %v2016
    %v2018 = vmul.f32 1.0, %v2017
    %v2019 = vadd.f32 %v1799, %v1940
    %v2020 = vxor.u32 %v2019, 2147483648
    %v2021 = vmul.f32 %v2020, 1.442695
    %v2022 = vpow.pop %v2021
    %v2023 = vadd.f32 %v2022, 1.0
    %v2024 = vrcp.pop %v2023
    %v2025 = vmul.f32 1.0, %v2024
    %v2026 = vmul.f32 %v2018, %v2009
    %v2027 = vadd.f32 %v1868, %v2026
    %v2028 = vtanh.pop %v2027
    %v2029 = vsub.f32 1.0, %v2025
    %v2030 = vmul.f32 %v2029, %v2028
    %v2031 = vmul.f32 %v2025, %v1725
    %v2032 = vadd.f32 %v2030, %v2031
    %s2033 = scalar_lea.vmem [#allocation8], 40
    %2034 = vst [vmem:[%s2033] sm:$0xff] %v2032
    %s2035 = scalar_lea.vmem [#allocation2], 48
    %v2036 = vld [vmem:[%s2035] sm:$0xff]
    %2037 = vmatprep.subr.mxu0 %v66
    %2038 = vmatpush1.msra.mxu0 %v65
    %2039 = vmatprep.subr.mxu0 %v69
    %2040 = vmatpush1.msra.mxu0 %v68
    %2041 = vmatprep.subr.mxu0 %v72
    %2042 = vmatpush1.msra.mxu0 %v71
    %2043 = vmatprep.subr.mxu0 %v75
    %2044 = vmatpush1.msra.mxu0 %v74
    %2045 = vmatprep.subr.mxu0 %v78
    %2046 = vmatpush1.msra.mxu0 %v77
    %2047 = vmatprep.subr.mxu0 %v81
    %2048 = vmatpush1.msra.mxu0 %v80
    %2049 = vmatprep.subr.mxu0 %v84
    %2050 = vmatpush1.msra.mxu0 %v83
    %2051 = vmatprep.subr.mxu0 %v87
    %2052 = vmatpush1.msra.mxu0 %v86
    %2053 = vmatprep.subr.mxu0 %v90
    %2054 = vmatpush1.msra.mxu0 %v89
    %2055 = vmatprep.subr.mxu0 %v93
    %2056 = vmatpush1.msra.mxu0 %v92
    %2057 = vmatprep.subr.mxu0 %v96
    %2058 = vmatpush1.msra.mxu0 %v95
    %2059 = vmatprep.subr.mxu0 %v99
    %2060 = vmatpush1.msra.mxu0 %v98
    %2061 = vmatprep.subr.mxu0 %v102
    %2062 = vmatpush1.msra.mxu0 %v101
    %2063 = vmatprep.subr.mxu0 %v105
    %2064 = vmatpush1.msra.mxu0 %v104
    %2065 = vmatprep.subr.mxu0 %v108
    %2066 = vmatpush1.msra.mxu0 %v107
    %2067 = vmatprep.subr.mxu0 %v111
    %2068 = vmatpush1.msra.mxu0 %v110
    %2069 = vmatprep.subr.mxu0 0.0
    %2070 = vmatpush1.msra.mxu0 0.0
    %2071 = vmatprep.subr.mxu0 0.0
    %2072 = vmatpush1.msra.mxu0 0.0
    %2073 = vmatprep.subr.mxu0 0.0
    %2074 = vmatpush1.msra.mxu0 0.0
    %2075 = vmatprep.subr.mxu0 0.0
    %2076 = vmatpush1.msra.mxu0 0.0
    %2077 = vmatprep.subr.mxu0 0.0
    %2078 = vmatpush1.msra.mxu0 0.0
    %2079 = vmatprep.subr.mxu0 0.0
    %2080 = vmatpush1.msra.mxu0 0.0
    %2081 = vmatprep.subr.mxu0 0.0
    %2082 = vmatpush1.msra.mxu0 0.0
    %2083 = vmatprep.subr.mxu0 0.0
    %2084 = vmatpush1.msra.mxu0 0.0
    %2085 = vmatprep.subr.mxu0 0.0
    %2086 = vmatpush1.msra.mxu0 0.0
    %2087 = vmatprep.subr.mxu0 0.0
    %2088 = vmatpush1.msra.mxu0 0.0
    %2089 = vmatprep.subr.mxu0 0.0
    %2090 = vmatpush1.msra.mxu0 0.0
    %2091 = vmatprep.subr.mxu0 0.0
    %2092 = vmatpush1.msra.mxu0 0.0
    %2093 = vmatprep.subr.mxu0 0.0
    %2094 = vmatpush1.msra.mxu0 0.0
    %2095 = vmatprep.subr.mxu0 0.0
    %2096 = vmatpush1.msra.mxu0 0.0
    %2097 = vmatprep.subr.mxu0 0.0
    %2098 = vmatpush1.msra.mxu0 0.0
    %2099 = vmatprep.subr.mxu0 0.0
    %2100 = vmatpush1.msra.mxu0 0.0
    %2101 = vmatprep.mubr.f32.mxu0 0.0
    %2102 = vmatmul.mubr.f32.gmra.mrb[0].mxu0 %v2036
    %v2103 = vpop.f32.mrb[0].mxu0
    %v2104 = vadd.f32 %v168, %v2103
    %v2105 = vpop.f32.mrb[0].mxu0
    %v2106 = vadd.f32 %v172, %v2105
    %2107 = vdwg.mxu0
    %2108 = vmatprep.subr.mxu0 0.0
    %2109 = vmatpush1.msra.mxu0 %v67
    %2110 = vmatprep.subr.mxu0 0.0
    %2111 = vmatpush1.msra.mxu0 %v70
    %2112 = vmatprep.subr.mxu0 0.0
    %2113 = vmatpush1.msra.mxu0 %v73
    %2114 = vmatprep.subr.mxu0 0.0
    %2115 = vmatpush1.msra.mxu0 %v76
    %2116 = vmatprep.subr.mxu0 0.0
    %2117 = vmatpush1.msra.mxu0 %v79
    %2118 = vmatprep.subr.mxu0 0.0
    %2119 = vmatpush1.msra.mxu0 %v82
    %2120 = vmatprep.subr.mxu0 0.0
    %2121 = vmatpush1.msra.mxu0 %v85
    %2122 = vmatprep.subr.mxu0 0.0
    %2123 = vmatpush1.msra.mxu0 %v88
    %2124 = vmatprep.subr.mxu0 0.0
    %2125 = vmatpush1.msra.mxu0 %v91
    %2126 = vmatprep.subr.mxu0 0.0
    %2127 = vmatpush1.msra.mxu0 %v94
    %2128 = vmatprep.subr.mxu0 0.0
    %2129 = vmatpush1.msra.mxu0 %v97
    %2130 = vmatprep.subr.mxu0 0.0
    %2131 = vmatpush1.msra.mxu0 %v100
    %2132 = vmatprep.subr.mxu0 0.0
    %2133 = vmatpush1.msra.mxu0 %v103
    %2134 = vmatprep.subr.mxu0 0.0
    %2135 = vmatpush1.msra.mxu0 %v106
    %2136 = vmatprep.subr.mxu0 0.0
    %2137 = vmatpush1.msra.mxu0 %v109
    %2138 = vmatprep.subr.mxu0 0.0
    %2139 = vmatpush1.msra.mxu0 %v112
    %2140 = vmatprep.subr.mxu0 0.0
    %2141 = vmatpush1.msra.mxu0 0.0
    %2142 = vmatprep.subr.mxu0 0.0
    %2143 = vmatpush1.msra.mxu0 0.0
    %2144 = vmatprep.subr.mxu0 0.0
    %2145 = vmatpush1.msra.mxu0 0.0
    %2146 = vmatprep.subr.mxu0 0.0
    %2147 = vmatpush1.msra.mxu0 0.0
    %2148 = vmatprep.subr.mxu0 0.0
    %2149 = vmatpush1.msra.mxu0 0.0
    %2150 = vmatprep.subr.mxu0 0.0
    %2151 = vmatpush1.msra.mxu0 0.0
    %2152 = vmatprep.subr.mxu0 0.0
    %2153 = vmatpush1.msra.mxu0 0.0
    %2154 = vmatprep.subr.mxu0 0.0
    %2155 = vmatpush1.msra.mxu0 0.0
    %2156 = vmatprep.subr.mxu0 0.0
    %2157 = vmatpush1.msra.mxu0 0.0
    %2158 = vmatprep.subr.mxu0 0.0
    %2159 = vmatpush1.msra.mxu0 0.0
    %2160 = vmatprep.subr.mxu0 0.0
    %2161 = vmatpush1.msra.mxu0 0.0
    %2162 = vmatprep.subr.mxu0 0.0
    %2163 = vmatpush1.msra.mxu0 0.0
    %2164 = vmatprep.subr.mxu0 0.0
    %2165 = vmatpush1.msra.mxu0 0.0
    %2166 = vmatprep.subr.mxu0 0.0
    %2167 = vmatpush1.msra.mxu0 0.0
    %2168 = vmatprep.subr.mxu0 0.0
    %2169 = vmatpush1.msra.mxu0 0.0
    %2170 = vmatprep.subr.mxu0 0.0
    %2171 = vmatpush1.msra.mxu0 0.0
    %2172 = vmatprep.mubr.f32.mxu0 0.0
    %2173 = vmatmul.mubr.f32.gmra.mrb[0].mxu0 %v2036
    %v2174 = vpop.f32.mrb[0].mxu0
    %v2175 = vadd.f32 %v176, %v2174
    %v2176 = vpop.f32.mrb[0].mxu0
    %2177 = vdwg.mxu0
    %2178 = vmatprep.subr.mxu0 %v114
    %2179 = vmatpush1.msra.mxu0 %v113
    %2180 = vmatprep.subr.mxu0 %v117
    %2181 = vmatpush1.msra.mxu0 %v116
    %2182 = vmatprep.subr.mxu0 %v120
    %2183 = vmatpush1.msra.mxu0 %v119
    %2184 = vmatprep.subr.mxu0 %v123
    %2185 = vmatpush1.msra.mxu0 %v122
    %2186 = vmatprep.subr.mxu0 %v126
    %2187 = vmatpush1.msra.mxu0 %v125
    %2188 = vmatprep.subr.mxu0 %v129
    %2189 = vmatpush1.msra.mxu0 %v128
    %2190 = vmatprep.subr.mxu0 %v132
    %2191 = vmatpush1.msra.mxu0 %v131
    %2192 = vmatprep.subr.mxu0 %v135
    %2193 = vmatpush1.msra.mxu0 %v134
    %2194 = vmatprep.subr.mxu0 %v138
    %2195 = vmatpush1.msra.mxu0 %v137
    %2196 = vmatprep.subr.mxu0 %v141
    %2197 = vmatpush1.msra.mxu0 %v140
    %2198 = vmatprep.subr.mxu0 %v144
    %2199 = vmatpush1.msra.mxu0 %v143
    %2200 = vmatprep.subr.mxu0 %v147
    %2201 = vmatpush1.msra.mxu0 %v146
    %2202 = vmatprep.subr.mxu0 %v150
    %2203 = vmatpush1.msra.mxu0 %v149
    %2204 = vmatprep.subr.mxu0 %v153
    %2205 = vmatpush1.msra.mxu0 %v152
    %2206 = vmatprep.subr.mxu0 %v156
    %2207 = vmatpush1.msra.mxu0 %v155
    %2208 = vmatprep.subr.mxu0 %v159
    %2209 = vmatpush1.msra.mxu0 %v158
    %2210 = vmatprep.subr.mxu0 0.0
    %2211 = vmatpush1.msra.mxu0 0.0
    %2212 = vmatprep.subr.mxu0 0.0
    %2213 = vmatpush1.msra.mxu0 0.0
    %2214 = vmatprep.subr.mxu0 0.0
    %2215 = vmatpush1.msra.mxu0 0.0
    %2216 = vmatprep.subr.mxu0 0.0
    %2217 = vmatpush1.msra.mxu0 0.0
    %2218 = vmatprep.subr.mxu0 0.0
    %2219 = vmatpush1.msra.mxu0 0.0
    %2220 = vmatprep.subr.mxu0 0.0
    %2221 = vmatpush1.msra.mxu0 0.0
    %2222 = vmatprep.subr.mxu0 0.0
    %2223 = vmatpush1.msra.mxu0 0.0
    %2224 = vmatprep.subr.mxu0 0.0
    %2225 = vmatpush1.msra.mxu0 0.0
    %2226 = vmatprep.subr.mxu0 0.0
    %2227 = vmatpush1.msra.mxu0 0.0
    %2228 = vmatprep.subr.mxu0 0.0
    %2229 = vmatpush1.msra.mxu0 0.0
    %2230 = vmatprep.subr.mxu0 0.0
    %2231 = vmatpush1.msra.mxu0 0.0
    %2232 = vmatprep.subr.mxu0 0.0
    %2233 = vmatpush1.msra.mxu0 0.0
    %2234 = vmatprep.subr.mxu0 0.0
    %2235 = vmatpush1.msra.mxu0 0.0
    %2236 = vmatprep.subr.mxu0 0.0
    %2237 = vmatpush1.msra.mxu0 0.0
    %2238 = vmatprep.subr.mxu0 0.0
    %2239 = vmatpush1.msra.mxu0 0.0
    %2240 = vmatprep.subr.mxu0 0.0
    %2241 = vmatpush1.msra.mxu0 0.0
    %2242 = vmatprep.mubr.f32.mxu0 0.0
    %2243 = vmatmul.mubr.f32.gmra.mrb[0].mxu0 %v2032
    %v2244 = vpop.f32.mrb[0].mxu0
    %v2245 = vadd.f32 %v325, %v2244
    %v2246 = vpop.f32.mrb[0].mxu0
    %v2247 = vadd.f32 %v329, %v2246
    %2248 = vdwg.mxu0
    %2249 = vmatprep.subr.mxu0 0.0
    %2250 = vmatpush1.msra.mxu0 %v115
    %2251 = vmatprep.subr.mxu0 0.0
    %2252 = vmatpush1.msra.mxu0 %v118
    %2253 = vmatprep.subr.mxu0 0.0
    %2254 = vmatpush1.msra.mxu0 %v121
    %2255 = vmatprep.subr.mxu0 0.0
    %2256 = vmatpush1.msra.mxu0 %v124
    %2257 = vmatprep.subr.mxu0 0.0
    %2258 = vmatpush1.msra.mxu0 %v127
    %2259 = vmatprep.subr.mxu0 0.0
    %2260 = vmatpush1.msra.mxu0 %v130
    %2261 = vmatprep.subr.mxu0 0.0
    %2262 = vmatpush1.msra.mxu0 %v133
    %2263 = vmatprep.subr.mxu0 0.0
    %2264 = vmatpush1.msra.mxu0 %v136
    %2265 = vmatprep.subr.mxu0 0.0
    %2266 = vmatpush1.msra.mxu0 %v139
    %2267 = vmatprep.subr.mxu0 0.0
    %2268 = vmatpush1.msra.mxu0 %v142
    %2269 = vmatprep.subr.mxu0 0.0
    %2270 = vmatpush1.msra.mxu0 %v145
    %2271 = vmatprep.subr.mxu0 0.0
    %2272 = vmatpush1.msra.mxu0 %v148
    %2273 = vmatprep.subr.mxu0 0.0
    %2274 = vmatpush1.msra.mxu0 %v151
    %2275 = vmatprep.subr.mxu0 0.0
    %2276 = vmatpush1.msra.mxu0 %v154
    %2277 = vmatprep.subr.mxu0 0.0
    %2278 = vmatpush1.msra.mxu0 %v157
    %2279 = vmatprep.subr.mxu0 0.0
    %2280 = vmatpush1.msra.mxu0 %v160
    %2281 = vmatprep.subr.mxu0 0.0
    %2282 = vmatpush1.msra.mxu0 0.0
    %2283 = vmatprep.subr.mxu0 0.0
    %2284 = vmatpush1.msra.mxu0 0.0
    %2285 = vmatprep.subr.mxu0 0.0
    %2286 = vmatpush1.msra.mxu0 0.0
    %2287 = vmatprep.subr.mxu0 0.0
    %2288 = vmatpush1.msra.mxu0 0.0
    %2289 = vmatprep.subr.mxu0 0.0
    %2290 = vmatpush1.msra.mxu0 0.0
    %2291 = vmatprep.subr.mxu0 0.0
    %2292 = vmatpush1.msra.mxu0 0.0
    %2293 = vmatprep.subr.mxu0 0.0
    %2294 = vmatpush1.msra.mxu0 0.0
    %2295 = vmatprep.subr.mxu0 0.0
    %2296 = vmatpush1.msra.mxu0 0.0
    %2297 = vmatprep.subr.mxu0 0.0
    %2298 = vmatpush1.msra.mxu0 0.0
    %2299 = vmatprep.subr.mxu0 0.0
    %2300 = vmatpush1.msra.mxu0 0.0
    %2301 = vmatprep.subr.mxu0 0.0
    %2302 = vmatpush1.msra.mxu0 0.0
    %2303 = vmatprep.subr.mxu0 0.0
    %2304 = vmatpush1.msra.mxu0 0.0
    %2305 = vmatprep.subr.mxu0 0.0
    %2306 = vmatpush1.msra.mxu0 0.0
    %2307 = vmatprep.subr.mxu0 0.0
    %2308 = vmatpush1.msra.mxu0 0.0
    %2309 = vmatprep.subr.mxu0 0.0
    %2310 = vmatpush1.msra.mxu0 0.0
    %2311 = vmatprep.subr.mxu0 0.0
    %2312 = vmatpush1.msra.mxu0 0.0
    %2313 = vmatprep.mubr.f32.mxu0 0.0
    %2314 = vmatmul.mubr.f32.gmra.mrb[0].mxu0 %v2032
    %v2315 = vpop.f32.mrb[0].mxu0
    %v2316 = vadd.f32 %v333, %v2315
    %v2317 = vpop.f32.mrb[0].mxu0
    %2318 = vdwg.mxu0
    %v2319 = vadd.f32 %v2104, %v2245
    %v2320 = vxor.u32 %v2319, 2147483648
    %v2321 = vmul.f32 %v2320, 1.442695
    %v2322 = vpow.pop %v2321
    %v2323 = vadd.f32 %v2322, 1.0
    %v2324 = vrcp.pop %v2323
    %v2325 = vmul.f32 1.0, %v2324
    %v2326 = vadd.f32 %v2106, %v2247
    %v2327 = vxor.u32 %v2326, 2147483648
    %v2328 = vmul.f32 %v2327, 1.442695
    %v2329 = vpow.pop %v2328
    %v2330 = vadd.f32 %v2329, 1.0
    %v2331 = vrcp.pop %v2330
    %v2332 = vmul.f32 1.0, %v2331
    %v2333 = vmul.f32 %v2325, %v2316
    %v2334 = vadd.f32 %v2175, %v2333
    %v2335 = vtanh.pop %v2334
    %v2336 = vsub.f32 1.0, %v2332
    %v2337 = vmul.f32 %v2336, %v2335
    %v2338 = vmul.f32 %v2332, %v2032
    %v2339 = vadd.f32 %v2337, %v2338
    %s2340 = scalar_lea.vmem [#allocation8], 48
    %2341 = vst [vmem:[%s2340] sm:$0xff] %v2339
    %s2342 = scalar_lea.vmem [#allocation2], 56
    %v2343 = vld [vmem:[%s2342] sm:$0xff]
    %2344 = vmatprep.subr.mxu0 %v66
    %2345 = vmatpush1.msra.mxu0 %v65
    %2346 = vmatprep.subr.mxu0 %v69
    %2347 = vmatpush1.msra.mxu0 %v68
    %2348 = vmatprep.subr.mxu0 %v72
    %2349 = vmatpush1.msra.mxu0 %v71
    %2350 = vmatprep.subr.mxu0 %v75
    %2351 = vmatpush1.msra.mxu0 %v74
    %2352 = vmatprep.subr.mxu0 %v78
    %2353 = vmatpush1.msra.mxu0 %v77
    %2354 = vmatprep.subr.mxu0 %v81
    %2355 = vmatpush1.msra.mxu0 %v80
    %2356 = vmatprep.subr.mxu0 %v84
    %2357 = vmatpush1.msra.mxu0 %v83
    %2358 = vmatprep.subr.mxu0 %v87
    %2359 = vmatpush1.msra.mxu0 %v86
    %2360 = vmatprep.subr.mxu0 %v90
    %2361 = vmatpush1.msra.mxu0 %v89
    %2362 = vmatprep.subr.mxu0 %v93
    %2363 = vmatpush1.msra.mxu0 %v92
    %2364 = vmatprep.subr.mxu0 %v96
    %2365 = vmatpush1.msra.mxu0 %v95
    %2366 = vmatprep.subr.mxu0 %v99
    %2367 = vmatpush1.msra.mxu0 %v98
    %2368 = vmatprep.subr.mxu0 %v102
    %2369 = vmatpush1.msra.mxu0 %v101
    %2370 = vmatprep.subr.mxu0 %v105
    %2371 = vmatpush1.msra.mxu0 %v104
    %2372 = vmatprep.subr.mxu0 %v108
    %2373 = vmatpush1.msra.mxu0 %v107
    %2374 = vmatprep.subr.mxu0 %v111
    %2375 = vmatpush1.msra.mxu0 %v110
    %2376 = vmatprep.subr.mxu0 0.0
    %2377 = vmatpush1.msra.mxu0 0.0
    %2378 = vmatprep.subr.mxu0 0.0
    %2379 = vmatpush1.msra.mxu0 0.0
    %2380 = vmatprep.subr.mxu0 0.0
    %2381 = vmatpush1.msra.mxu0 0.0
    %2382 = vmatprep.subr.mxu0 0.0
    %2383 = vmatpush1.msra.mxu0 0.0
    %2384 = vmatprep.subr.mxu0 0.0
    %2385 = vmatpush1.msra.mxu0 0.0
    %2386 = vmatprep.subr.mxu0 0.0
    %2387 = vmatpush1.msra.mxu0 0.0
    %2388 = vmatprep.subr.mxu0 0.0
    %2389 = vmatpush1.msra.mxu0 0.0
    %2390 = vmatprep.subr.mxu0 0.0
    %2391 = vmatpush1.msra.mxu0 0.0
    %2392 = vmatprep.subr.mxu0 0.0
    %2393 = vmatpush1.msra.mxu0 0.0
    %2394 = vmatprep.subr.mxu0 0.0
    %2395 = vmatpush1.msra.mxu0 0.0
    %2396 = vmatprep.subr.mxu0 0.0
    %2397 = vmatpush1.msra.mxu0 0.0
    %2398 = vmatprep.subr.mxu0 0.0
    %2399 = vmatpush1.msra.mxu0 0.0
    %2400 = vmatprep.subr.mxu0 0.0
    %2401 = vmatpush1.msra.mxu0 0.0
    %2402 = vmatprep.subr.mxu0 0.0
    %2403 = vmatpush1.msra.mxu0 0.0
    %2404 = vmatprep.subr.mxu0 0.0
    %2405 = vmatpush1.msra.mxu0 0.0
    %2406 = vmatprep.subr.mxu0 0.0
    %2407 = vmatpush1.msra.mxu0 0.0
    %2408 = vmatprep.mubr.f32.mxu0 0.0
    %2409 = vmatmul.mubr.f32.gmra.mrb[0].mxu0 %v2343
    %v2410 = vpop.f32.mrb[0].mxu0
    %v2411 = vadd.f32 %v168, %v2410
    %v2412 = vpop.f32.mrb[0].mxu0
    %v2413 = vadd.f32 %v172, %v2412
    %2414 = vdwg.mxu0
    %2415 = vmatprep.subr.mxu0 0.0
    %2416 = vmatpush1.msra.mxu0 %v67
    %2417 = vmatprep.subr.mxu0 0.0
    %2418 = vmatpush1.msra.mxu0 %v70
    %2419 = vmatprep.subr.mxu0 0.0
    %2420 = vmatpush1.msra.mxu0 %v73
    %2421 = vmatprep.subr.mxu0 0.0
    %2422 = vmatpush1.msra.mxu0 %v76
    %2423 = vmatprep.subr.mxu0 0.0
    %2424 = vmatpush1.msra.mxu0 %v79
    %2425 = vmatprep.subr.mxu0 0.0
    %2426 = vmatpush1.msra.mxu0 %v82
    %2427 = vmatprep.subr.mxu0 0.0
    %2428 = vmatpush1.msra.mxu0 %v85
    %2429 = vmatprep.subr.mxu0 0.0
    %2430 = vmatpush1.msra.mxu0 %v88
    %2431 = vmatprep.subr.mxu0 0.0
    %2432 = vmatpush1.msra.mxu0 %v91
    %2433 = vmatprep.subr.mxu0 0.0
    %2434 = vmatpush1.msra.mxu0 %v94
    %2435 = vmatprep.subr.mxu0 0.0
    %2436 = vmatpush1.msra.mxu0 %v97
    %2437 = vmatprep.subr.mxu0 0.0
    %2438 = vmatpush1.msra.mxu0 %v100
    %2439 = vmatprep.subr.mxu0 0.0
    %2440 = vmatpush1.msra.mxu0 %v103
    %2441 = vmatprep.subr.mxu0 0.0
    %2442 = vmatpush1.msra.mxu0 %v106
    %2443 = vmatprep.subr.mxu0 0.0
    %2444 = vmatpush1.msra.mxu0 %v109
    %2445 = vmatprep.subr.mxu0 0.0
    %2446 = vmatpush1.msra.mxu0 %v112
    %2447 = vmatprep.subr.mxu0 0.0
    %2448 = vmatpush1.msra.mxu0 0.0
    %2449 = vmatprep.subr.mxu0 0.0
    %2450 = vmatpush1.msra.mxu0 0.0
    %2451 = vmatprep.subr.mxu0 0.0
    %2452 = vmatpush1.msra.mxu0 0.0
    %2453 = vmatprep.subr.mxu0 0.0
    %2454 = vmatpush1.msra.mxu0 0.0
    %2455 = vmatprep.subr.mxu0 0.0
    %2456 = vmatpush1.msra.mxu0 0.0
    %2457 = vmatprep.subr.mxu0 0.0
    %2458 = vmatpush1.msra.mxu0 0.0
    %2459 = vmatprep.subr.mxu0 0.0
    %2460 = vmatpush1.msra.mxu0 0.0
    %2461 = vmatprep.subr.mxu0 0.0
    %2462 = vmatpush1.msra.mxu0 0.0
    %2463 = vmatprep.subr.mxu0 0.0
    %2464 = vmatpush1.msra.mxu0 0.0
    %2465 = vmatprep.subr.mxu0 0.0
    %2466 = vmatpush1.msra.mxu0 0.0
    %2467 = vmatprep.subr.mxu0 0.0
    %2468 = vmatpush1.msra.mxu0 0.0
    %2469 = vmatprep.subr.mxu0 0.0
    %2470 = vmatpush1.msra.mxu0 0.0
    %2471 = vmatprep.subr.mxu0 0.0
    %2472 = vmatpush1.msra.mxu0 0.0
    %2473 = vmatprep.subr.mxu0 0.0
    %2474 = vmatpush1.msra.mxu0 0.0
    %2475 = vmatprep.subr.mxu0 0.0
    %2476 = vmatpush1.msra.mxu0 0.0
    %2477 = vmatprep.subr.mxu0 0.0
    %2478 = vmatpush1.msra.mxu0 0.0
    %2479 = vmatprep.mubr.f32.mxu0 0.0
    %2480 = vmatmul.mubr.f32.gmra.mrb[0].mxu0 %v2343
    %v2481 = vpop.f32.mrb[0].mxu0
    %v2482 = vadd.f32 %v176, %v2481
    %v2483 = vpop.f32.mrb[0].mxu0
    %2484 = vdwg.mxu0
    %2485 = vmatprep.subr.mxu0 %v114
    %2486 = vmatpush1.msra.mxu0 %v113
    %2487 = vmatprep.subr.mxu0 %v117
    %2488 = vmatpush1.msra.mxu0 %v116
    %2489 = vmatprep.subr.mxu0 %v120
    %2490 = vmatpush1.msra.mxu0 %v119
    %2491 = vmatprep.subr.mxu0 %v123
    %2492 = vmatpush1.msra.mxu0 %v122
    %2493 = vmatprep.subr.mxu0 %v126
    %2494 = vmatpush1.msra.mxu0 %v125
    %2495 = vmatprep.subr.mxu0 %v129
    %2496 = vmatpush1.msra.mxu0 %v128
    %2497 = vmatprep.subr.mxu0 %v132
    %2498 = vmatpush1.msra.mxu0 %v131
    %2499 = vmatprep.subr.mxu0 %v135
    %2500 = vmatpush1.msra.mxu0 %v134
    %2501 = vmatprep.subr.mxu0 %v138
    %2502 = vmatpush1.msra.mxu0 %v137
    %2503 = vmatprep.subr.mxu0 %v141
    %2504 = vmatpush1.msra.mxu0 %v140
    %2505 = vmatprep.subr.mxu0 %v144
    %2506 = vmatpush1.msra.mxu0 %v143
    %2507 = vmatprep.subr.mxu0 %v147
    %2508 = vmatpush1.msra.mxu0 %v146
    %2509 = vmatprep.subr.mxu0 %v150
    %2510 = vmatpush1.msra.mxu0 %v149
    %2511 = vmatprep.subr.mxu0 %v153
    %2512 = vmatpush1.msra.mxu0 %v152
    %2513 = vmatprep.subr.mxu0 %v156
    %2514 = vmatpush1.msra.mxu0 %v155
    %2515 = vmatprep.subr.mxu0 %v159
    %2516 = vmatpush1.msra.mxu0 %v158
    %2517 = vmatprep.subr.mxu0 0.0
    %2518 = vmatpush1.msra.mxu0 0.0
    %2519 = vmatprep.subr.mxu0 0.0
    %2520 = vmatpush1.msra.mxu0 0.0
    %2521 = vmatprep.subr.mxu0 0.0
    %2522 = vmatpush1.msra.mxu0 0.0
    %2523 = vmatprep.subr.mxu0 0.0
    %2524 = vmatpush1.msra.mxu0 0.0
    %2525 = vmatprep.subr.mxu0 0.0
    %2526 = vmatpush1.msra.mxu0 0.0
    %2527 = vmatprep.subr.mxu0 0.0
    %2528 = vmatpush1.msra.mxu0 0.0
    %2529 = vmatprep.subr.mxu0 0.0
    %2530 = vmatpush1.msra.mxu0 0.0
    %2531 = vmatprep.subr.mxu0 0.0
    %2532 = vmatpush1.msra.mxu0 0.0
    %2533 = vmatprep.subr.mxu0 0.0
    %2534 = vmatpush1.msra.mxu0 0.0
    %2535 = vmatprep.subr.mxu0 0.0
    %2536 = vmatpush1.msra.mxu0 0.0
    %2537 = vmatprep.subr.mxu0 0.0
    %2538 = vmatpush1.msra.mxu0 0.0
    %2539 = vmatprep.subr.mxu0 0.0
    %2540 = vmatpush1.msra.mxu0 0.0
    %2541 = vmatprep.subr.mxu0 0.0
    %2542 = vmatpush1.msra.mxu0 0.0
    %2543 = vmatprep.subr.mxu0 0.0
    %2544 = vmatpush1.msra.mxu0 0.0
    %2545 = vmatprep.subr.mxu0 0.0
    %2546 = vmatpush1.msra.mxu0 0.0
    %2547 = vmatprep.subr.mxu0 0.0
    %2548 = vmatpush1.msra.mxu0 0.0
    %2549 = vmatprep.mubr.f32.mxu0 0.0
    %2550 = vmatmul.mubr.f32.gmra.mrb[0].mxu0 %v2339
    %v2551 = vpop.f32.mrb[0].mxu0
    %v2552 = vadd.f32 %v325, %v2551
    %v2553 = vpop.f32.mrb[0].mxu0
    %v2554 = vadd.f32 %v329, %v2553
    %2555 = vdwg.mxu0
    %2556 = vmatprep.subr.mxu0 0.0
    %2557 = vmatpush1.msra.mxu0 %v115
    %2558 = vmatprep.subr.mxu0 0.0
    %2559 = vmatpush1.msra.mxu0 %v118
    %2560 = vmatprep.subr.mxu0 0.0
    %2561 = vmatpush1.msra.mxu0 %v121
    %2562 = vmatprep.subr.mxu0 0.0
    %2563 = vmatpush1.msra.mxu0 %v124
    %2564 = vmatprep.subr.mxu0 0.0
    %2565 = vmatpush1.msra.mxu0 %v127
    %2566 = vmatprep.subr.mxu0 0.0
    %2567 = vmatpush1.msra.mxu0 %v130
    %2568 = vmatprep.subr.mxu0 0.0
    %2569 = vmatpush1.msra.mxu0 %v133
    %2570 = vmatprep.subr.mxu0 0.0
    %2571 = vmatpush1.msra.mxu0 %v136
    %2572 = vmatprep.subr.mxu0 0.0
    %2573 = vmatpush1.msra.mxu0 %v139
    %2574 = vmatprep.subr.mxu0 0.0
    %2575 = vmatpush1.msra.mxu0 %v142
    %2576 = vmatprep.subr.mxu0 0.0
    %2577 = vmatpush1.msra.mxu0 %v145
    %2578 = vmatprep.subr.mxu0 0.0
    %2579 = vmatpush1.msra.mxu0 %v148
    %2580 = vmatprep.subr.mxu0 0.0
    %2581 = vmatpush1.msra.mxu0 %v151
    %2582 = vmatprep.subr.mxu0 0.0
    %2583 = vmatpush1.msra.mxu0 %v154
    %2584 = vmatprep.subr.mxu0 0.0
    %2585 = vmatpush1.msra.mxu0 %v157
    %2586 = vmatprep.subr.mxu0 0.0
    %2587 = vmatpush1.msra.mxu0 %v160
    %2588 = vmatprep.subr.mxu0 0.0
    %2589 = vmatpush1.msra.mxu0 0.0
    %2590 = vmatprep.subr.mxu0 0.0
    %2591 = vmatpush1.msra.mxu0 0.0
    %2592 = vmatprep.subr.mxu0 0.0
    %2593 = vmatpush1.msra.mxu0 0.0
    %2594 = vmatprep.subr.mxu0 0.0
    %2595 = vmatpush1.msra.mxu0 0.0
    %2596 = vmatprep.subr.mxu0 0.0
    %2597 = vmatpush1.msra.mxu0 0.0
    %2598 = vmatprep.subr.mxu0 0.0
    %2599 = vmatpush1.msra.mxu0 0.0
    %2600 = vmatprep.subr.mxu0 0.0
    %2601 = vmatpush1.msra.mxu0 0.0
    %2602 = vmatprep.subr.mxu0 0.0
    %2603 = vmatpush1.msra.mxu0 0.0
    %2604 = vmatprep.subr.mxu0 0.0
    %2605 = vmatpush1.msra.mxu0 0.0
    %2606 = vmatprep.subr.mxu0 0.0
    %2607 = vmatpush1.msra.mxu0 0.0
    %2608 = vmatprep.subr.mxu0 0.0
    %2609 = vmatpush1.msra.mxu0 0.0
    %2610 = vmatprep.subr.mxu0 0.0
    %2611 = vmatpush1.msra.mxu0 0.0
    %2612 = vmatprep.subr.mxu0 0.0
    %2613 = vmatpush1.msra.mxu0 0.0
    %2614 = vmatprep.subr.mxu0 0.0
    %2615 = vmatpush1.msra.mxu0 0.0
    %2616 = vmatprep.subr.mxu0 0.0
    %2617 = vmatpush1.msra.mxu0 0.0
    %2618 = vmatprep.subr.mxu0 0.0
    %2619 = vmatpush1.msra.mxu0 0.0
    %2620 = vmatprep.mubr.f32.mxu0 0.0
    %2621 = vmatmul.mubr.f32.gmra.mrb[0].mxu0 %v2339
    %v2622 = vpop.f32.mrb[0].mxu0
    %v2623 = vadd.f32 %v333, %v2622
    %v2624 = vpop.f32.mrb[0].mxu0
    %2625 = vdwg.mxu0
    %v2626 = vadd.f32 %v2411, %v2552
    %v2627 = vxor.u32 %v2626, 2147483648
    %v2628 = vmul.f32 %v2627, 1.442695
    %v2629 = vpow.pop %v2628
    %v2630 = vadd.f32 %v2629, 1.0
    %v2631 = vrcp.pop %v2630
    %v2632 = vmul.f32 1.0, %v2631
    %v2633 = vadd.f32 %v2413, %v2554
    %v2634 = vxor.u32 %v2633, 2147483648
    %v2635 = vmul.f32 %v2634, 1.442695
    %v2636 = vpow.pop %v2635
    %v2637 = vadd.f32 %v2636, 1.0
    %v2638 = vrcp.pop %v2637
    %v2639 = vmul.f32 1.0, %v2638
    %v2640 = vmul.f32 %v2632, %v2623
    %v2641 = vadd.f32 %v2482, %v2640
    %v2642 = vtanh.pop %v2641
    %v2643 = vsub.f32 1.0, %v2639
    %v2644 = vmul.f32 %v2643, %v2642
    %v2645 = vmul.f32 %v2639, %v2339
    %v2646 = vadd.f32 %v2644, %v2645
    %s2647 = scalar_lea.vmem [#allocation8], 56
    %2648 = vst [vmem:[%s2647] sm:$0xff] %v2646
    %2649 = vst [vmem:[#allocation9] sm:$0xff] %v2646
    // Predicated region
    $region34: #{tpu_custom_call.1} parent=1 // pred_check
      _
    $region35: #{tpu_custom_call.1} parent=1 // pred_check_branch
      %2651 = sbr.rel (0) target = $region37
    $region36: #{tpu_custom_call.1} parent=1 // pred_region
      %s2653 = ssub.s32 1024, 1024
      %2654 = vsyncadd [#allocation4], %s2653
      %s2655 = sshll.u32 [#allocation8], 4
      %s2656 = int_to_ptr.vmem [resolvable:$true] %s2655
      %2661 = dma.vmem_to_hbm [thread:$0]  %s2656, 1024, %s5, [#allocation4], 128, 128, 8
    $region37: #{tpu_custom_call.1} parent=1 // pred_fallthru
      _
    // Predicated region
    $region38: #{tpu_custom_call.1} parent=1 // pred_check
      _
    $region39: #{tpu_custom_call.1} parent=1 // pred_check_branch
      %2663 = sbr.rel (0) target = $region41
    $region40: #{tpu_custom_call.1} parent=1 // pred_region
      %s2665 = ssub.s32 128, 128
      %2666 = vsyncadd [#allocation10], %s2665
      %s2668 = sshll.u32 [#allocation9], 4
      %s2669 = int_to_ptr.vmem [resolvable:$true] %s2668
      %2671 = dma.vmem_to_hbm [thread:$0]  %s2669, 128, %s6, [#allocation10]
    $region41: #{tpu_custom_call.1} parent=1 // pred_fallthru
      _
    // Predicated region
    $region42: #{tpu_custom_call.1} parent=1 // pred_check
      _
    $region43: #{tpu_custom_call.1} parent=1 // pred_check_branch
      %2673 = sbr.rel (0) target = $region45
    $region44: #{tpu_custom_call.1} parent=1 // pred_region
      %2674 = dma.done [#allocation4], 1024
    $region45: #{tpu_custom_call.1} parent=1 // pred_fallthru
      _
    // Predicated region
    $region46: #{tpu_custom_call.1} parent=1 // pred_check
      _
    $region47: #{tpu_custom_call.1} parent=1 // pred_check_branch
      %2676 = sbr.rel (0) target = $region49
    $region48: #{tpu_custom_call.1} parent=1 // pred_region
      %2677 = dma.done [#allocation10], 128
    $region49: #{tpu_custom_call.1} parent=1 // pred_fallthru
      _
    %2678 = vsyncpa [#allocation3], 1
    %2679 = vsyncpa [#allocation6], 1
    %2680 = vsyncpa [#allocation4], 1
    %2681 = vsyncpa [#allocation10], 1

</llo_original>
